<compile_context>
chip_gen: v7x
topology: tpu7x:2x2x1
jax: 0.10.0
libtpu: 0.0.40
codegen_flags: <defaults>
</compile_context>

<pallas_src>
import functools

import jax
import jax.numpy as jnp
from jax.experimental import pallas as pl
from jax.experimental.pallas import tpu as pltpu


# ----------------------------------------------------------------------------
# Packed-parameter channel MLP (three 1x1x1 convs, eval-mode BN folded)
# ----------------------------------------------------------------------------
def pack_mlp_params(params, G, in_scale=1.0):
    """Fold BN scale (and optionally the 1/Cg group-mean) into the conv weights
    and pack everything into one [32, 32] f32 tile."""
    w0, s0, b0, w1, s1, b1, w2, b2 = params
    P = jnp.zeros((32, 32), jnp.float32)
    P = P.at[0:16, 0:G].set(w0 * s0 * in_scale)
    P = P.at[0:16, G].set(b0[:, 0])
    P = P.at[16:24, 0:16].set(w1 * s1)
    P = P.at[16:24, 16].set(b1[:, 0])
    P = P.at[24, 0:8].set(w2[0])
    P = P.at[24, 8].set(b2[0, 0])
    return P


def _unpack_mlp(P, G):
    """Slice the packed [32,32] tile; weights as bf16 (MXU operands), biases f32."""
    return (P[0:16, 0:G].astype(jnp.bfloat16), P[0:16, G:G + 1],
            P[16:24, 0:16].astype(jnp.bfloat16), P[16:24, 16:17],
            P[24:25, 0:8].astype(jnp.bfloat16), P[24:25, 8:9])


def _mlp3(x, p):
    """x: [G, N] f32 -> [1, N] f32.  bf16 MXU operands, f32 accumulation."""
    w0, b0, w1, b1, w2, b2 = p
    h = jnp.maximum(jnp.dot(w0, x.astype(jnp.bfloat16),
                            preferred_element_type=jnp.float32) + b0, 0.0)
    h = jnp.maximum(jnp.dot(w1, h.astype(jnp.bfloat16),
                            preferred_element_type=jnp.float32) + b1, 0.0)
    return jnp.dot(w2, h.astype(jnp.bfloat16),
                   preferred_element_type=jnp.float32) + b2


def _pick_tile_hw(HW, C, D, G, budget_bytes=20 * 1024 * 1024):
    """Largest multiple-of-128 divisor of HW whose kernel-1 working set
    (double-buffered bf16 warped block + f32 ref block + f32 accumulator
    scratch + output blocks) fits a conservative (v7x-safe) VMEM budget."""
    assert HW % 128 == 0, "H*W must be a multiple of 128 for these kernels"
    best = 128
    for t in range(128, HW + 1, 128):
        if HW % t:
            continue
        need = (2 * C * D * t * 2      # warped block, bf16, double buffered
                + 2 * C * t * 4        # ref block, f32, double buffered
                + G * D * t * 4        # sim accumulator scratch
                + (D + 2) * t * 4)     # s_raw / view-weight blocks
        if need <= budget_bytes:
            best = t
    return best


# ----------------------------------------------------------------------------
# Fused kernel 1: corr + PixelwiseNet + accumulate + normalize + SimilarityNet
# ----------------------------------------------------------------------------
def fused_corr_pixelwise_simnet(warped, ref_flat, pixP, simP, *, G, D, HW, tile_hw):
    """warped:   [V, B, C, T*D*tile_hw] bf16 (channels cg-major,
                 lane order = (hw tile, depth, pixel-in-tile))
       ref_flat: [B, C, HW] f32 (same channel order, plain pixel order)
       Returns view_weights [B, V, 1, HW] f32, s_raw [B, D, HW] f32."""
    V, B, C, L = warped.shape
    Cg = C // G
    T = HW // tile_hw
    DT = D * tile_hw
    assert L == T * DT

    def kernel(w_ref, r_ref, pP_ref, sP_ref, vw_ref, sraw_ref, sim_acc, wsum_acc):
        v = pl.program_id(2)
        r = r_ref[0]                                      # [C, tile_hw] f32
        pix = _unpack_mlp(pP_ref[...], G)

        # Per-depth correlation + PixelwiseNet (no D-fold lane replication).
        sims = []
        vw = None
        for d in range(D):
            wd = w_ref[0, 0, :, pl.ds(d * tile_hw, tile_hw)].astype(jnp.float32)
            sim_d = wd[0:G, :] * r[0:G, :]
            for cg in range(1, Cg):
                sim_d = sim_d + wd[cg * G:(cg + 1) * G, :] * r[cg * G:(cg + 1) * G, :]
            sims.append(sim_d)                  # Cg * similarity (1/Cg folded into w0)
            sig = jax.nn.sigmoid(_mlp3(sim_d, pix))       # [1, tile_hw]
            vw = sig if vw is None else jnp.maximum(vw, sig)

        vw_ref[0, 0] = vw

        # Running sums across views live in VMEM scratch; the view axis MUST be
        # the innermost, sequential ("arbitrary") grid axis for this to hold.
        @pl.when(v == 0)
        def _():
            sim_acc[...] = jnp.zeros_like(sim_acc)
            wsum_acc[...] = jnp.zeros_like(wsum_acc)

        wsum_acc[...] = wsum_acc[...] + vw
        for d in range(D):
            sl = pl.ds(d * tile_hw, tile_hw)
            sim_acc[:, sl] = sim_acc[:, sl] + sims[d] * vw

        # Last view: normalise (EUP reciprocal) and run SimilarityNet per depth.
        @pl.when(v == pl.num_programs(2) - 1)
        def _():
            simn = _unpack_mlp(sP_ref[...], G)
            inv = pl.reciprocal(wsum_acc[...], approx=True)          # [1, tile_hw]
            for d in range(D):
                sim_avg = sim_acc[:, pl.ds(d * tile_hw, tile_hw)] * inv
                sraw_ref[0, pl.ds(d, 1), :] = _mlp3(sim_avg, simn)   # [1, tile_hw]

    mlp_flops = 2 * (16 * G + 16 * 8 + 8)
    cost = pl.CostEstimate(
        flops=int(B * V * D * HW * (2 * C + mlp_flops + 2 * G)
                  + B * D * HW * (mlp_flops + 2 * G)),
        transcendentals=int(B * V * D * HW + B * HW),
        bytes_accessed=int(warped.size * warped.dtype.itemsize
                           + V * ref_flat.size * ref_flat.dtype.itemsize
                           + B * V * HW * 4 + B * D * HW * 4 + 2 * 32 * 32 * 4))

    return pl.pallas_call(
        kernel,
        out_shape=(jax.ShapeDtypeStruct((B, V, 1, HW), jnp.float32),
                   jax.ShapeDtypeStruct((B, D, HW), jnp.float32)),
        grid_spec=pltpu.PrefetchScalarGridSpec(
            num_scalar_prefetch=0,
            grid=(T, B, V),                    # hw tile leading, view innermost
            in_specs=[
                pl.BlockSpec((1, 1, C, DT), lambda t, b, v: (v, b, 0, t)),
                pl.BlockSpec((1, C, tile_hw), lambda t, b, v: (b, 0, t)),
                pl.BlockSpec((32, 32), lambda t, b, v: (0, 0)),
                pl.BlockSpec((32, 32), lambda t, b, v: (0, 0)),
            ],
            out_specs=(pl.BlockSpec((1, 1, 1, tile_hw), lambda t, b, v: (b, v, 0, t)),
                       pl.BlockSpec((1, D, tile_hw), lambda t, b, v: (b, 0, t))),
            scratch_shapes=[pltpu.VMEM((G, DT), jnp.float32),
                            pltpu.VMEM((1, tile_hw), jnp.float32)],
        ),
        compiler_params=pltpu.CompilerParams(
            dimension_semantics=("parallel", "parallel", "arbitrary"),
            vmem_limit_bytes=64 * 1024 * 1024),
        cost_estimate=cost,
    )(warped, ref_flat, pixP, simP)


# ----------------------------------------------------------------------------
# Fused kernel 2: neighbor-weighted sum + softmax over depth + depth regression
# ----------------------------------------------------------------------------
def fused_score_softmax_regress(sampled, weight, depth_sample, *, tile_hw=None):
    """sampled, weight: [B, K, D, HW] (bf16 ok); depth_sample: [B, D, HW] f32.
       Returns score [B, D, HW] f32, depth [B, 1, HW] f32."""
    B, K, D, HW = sampled.shape
    if tile_hw is None:
        tile_hw = HW
    T = HW // tile_hw
    assert HW % tile_hw == 0

    def kernel(x_ref, w_ref, dep_ref, score_ref, depth_ref):
        # Unrolled K reduction over (8,128)-aligned [D, tile] slabs; f32 accum.
        s = x_ref[0, 0].astype(jnp.float32) * w_ref[0, 0].astype(jnp.float32)
        for k in range(1, K):
            s = s + x_ref[0, k].astype(jnp.float32) * w_ref[0, k].astype(jnp.float32)
        m = jnp.max(s, axis=0, keepdims=True)                         # [1, tile]
        e = jnp.exp(s - m)
        p = e * pl.reciprocal(jnp.sum(e, axis=0, keepdims=True), approx=True)
        score_ref[0] = p
        depth_ref[0] = jnp.sum(dep_ref[0] * p, axis=0, keepdims=True)

    cost = pl.CostEstimate(
        flops=int(B * D * HW * (2 * K + 8)),
        transcendentals=int(B * D * HW),
        bytes_accessed=int(sampled.size * sampled.dtype.itemsize
                           + weight.size * weight.dtype.itemsize
                           + depth_sample.size * 4 + B * D * HW * 4 + B * HW * 4))

    return pl.pallas_call(
        kernel,
        out_shape=(jax.ShapeDtypeStruct((B, D, HW), jnp.float32),
                   jax.ShapeDtypeStruct((B, 1, HW), jnp.float32)),
        grid_spec=pltpu.PrefetchScalarGridSpec(
            num_scalar_prefetch=0,
            grid=(B, T),
            in_specs=[pl.BlockSpec((1, K, D, tile_hw), lambda b, t: (b, 0, 0, t)),
                      pl.BlockSpec((1, K, D, tile_hw), lambda b, t: (b, 0, 0, t)),
                      pl.BlockSpec((1, D, tile_hw), lambda b, t: (b, 0, t))],
            out_specs=(pl.BlockSpec((1, D, tile_hw), lambda b, t: (b, 0, t)),
                       pl.BlockSpec((1, 1, tile_hw), lambda b, t: (b, 0, t))),
        ),
        compiler_params=pltpu.CompilerParams(
            dimension_semantics=("parallel", "parallel"),
            vmem_limit_bytes=64 * 1024 * 1024),
        cost_estimate=cost,
    )(sampled, weight, depth_sample)


# ----------------------------------------------------------------------------
# Plain-JAX glue: bilinear grid sampling & homography warping
# ----------------------------------------------------------------------------
def grid_sample_2d(img, grid, padding_mode, align_corners):
    """F.grid_sample (bilinear).  img: [B,C,H,W], grid: [B,Ho,Wo,2] (x,y in [-1,1])."""
    B, C, H, W = img.shape
    gx = grid[..., 0]
    gy = grid[..., 1]
    if align_corners:
        x = (gx + 1.0) * 0.5 * (W - 1)
        y = (gy + 1.0) * 0.5 * (H - 1)
    else:
        x = ((gx + 1.0) * W - 1.0) * 0.5
        y = ((gy + 1.0) * H - 1.0) * 0.5
    x0 = jnp.floor(x)
    y0 = jnp.floor(y)
    x1 = x0 + 1.0
    y1 = y0 + 1.0
    wx1 = x - x0
    wx0 = 1.0 - wx1
    wy1 = y - y0
    wy0 = 1.0 - wy1
    flat = img.reshape(B, C, H * W)

    def gather(ix, iy):
        ixc = jnp.clip(ix, 0, W - 1).astype(jnp.int32)
        iyc = jnp.clip(iy, 0, H - 1).astype(jnp.int32)
        idx = (iyc * W + ixc).reshape(B, 1, -1)
        g = jnp.take_along_axis(flat, idx, axis=2).reshape((B, C) + ix.shape[1:])
        if padding_mode == "zeros":
            valid = ((ix >= 0) & (ix <= W - 1) & (iy >= 0) & (iy <= H - 1))
            g = g * valid[:, None].astype(img.dtype)
        return g

    out = (gather(x0, y0) * (wx0 * wy0)[:, None]
           + gather(x1, y0) * (wx1 * wy0)[:, None]
           + gather(x0, y1) * (wx0 * wy1)[:, None]
           + gather(x1, y1) * (wx1 * wy1)[:, None])
    return out


def _warp_grid_coords(src_proj, ref_proj, depth_samples, H, W):
    """Normalized warp coordinates x_n, y_n of shape [B, D, HW]."""
    B = src_proj.shape[0]
    D = depth_samples.shape[1]
    HW = H * W
    proj = src_proj @ jnp.linalg.inv(ref_proj)                        # [B,4,4]
    rot = proj[:, :3, :3]
    trans = proj[:, :3, 3:4]
    yy, xx = jnp.meshgrid(jnp.arange(H, dtype=jnp.float32),
                          jnp.arange(W, dtype=jnp.float32), indexing="ij")
    xyz = jnp.stack([xx.reshape(-1), yy.reshape(-1),
                     jnp.ones(HW, jnp.float32)], axis=0)              # [3, HW]
    xyz = jnp.broadcast_to(xyz[None], (B, 3, HW))
    rot_xyz = rot @ xyz                                               # [B,3,HW]
    rot_depth_xyz = rot_xyz[:, :, None, :] * depth_samples.reshape(B, 1, D, HW)
    proj_xyz = rot_depth_xyz + trans.reshape(B, 3, 1, 1)              # [B,3,D,HW]
    neg = proj_xyz[:, 2] <= 1e-3
    px = jnp.where(neg, float(W), proj_xyz[:, 0])
    py = jnp.where(neg, float(H), proj_xyz[:, 1])
    pz = jnp.where(neg, 1.0, proj_xyz[:, 2])
    x_n = px / pz / ((W - 1) / 2.0) - 1.0
    y_n = py / pz / ((H - 1) / 2.0) - 1.0
    return x_n, y_n


def differentiable_warping(src_fea, src_proj, ref_proj, depth_samples):
    """Standard PatchmatchNet homography warping.  -> [B, C, D, H, W]."""
    B, C, H, W = src_fea.shape
    D = depth_samples.shape[1]
    x_n, y_n = _warp_grid_coords(src_proj, ref_proj, depth_samples, H, W)
    grid = jnp.stack([x_n, y_n], axis=-1).reshape(B, D * H, W, 2)
    warped = grid_sample_2d(src_fea, grid, padding_mode="zeros", align_corners=True)
    return warped.reshape(B, C, D, H, W)


def differentiable_warping_tiled(src_fea, src_proj, ref_proj, depth_samples, *, tile_hw):
    """Homography warp whose output lane order is (hw tile, depth, pixel-in-tile):
    returns [B, C, T*D*tile_hw] ready for the fused Pallas kernel (no transpose
    of the big warped tensor; only the small coordinate grid is reordered)."""
    B, C, H, W = src_fea.shape
    D = depth_samples.shape[1]
    HW = H * W
    T = HW // tile_hw
    x_n, y_n = _warp_grid_coords(src_proj, ref_proj, depth_samples, H, W)
    grid = jnp.stack([x_n, y_n], axis=-1)                             # [B, D, HW, 2]
    grid = grid.reshape(B, D, T, tile_hw, 2).transpose(0, 2, 1, 3, 4)
    grid = grid.reshape(B, T * D * tile_hw, 1, 2)
    warped = grid_sample_2d(src_fea, grid, padding_mode="zeros", align_corners=True)
    return warped.reshape(B, C, T * D * tile_hw)


# ----------------------------------------------------------------------------
# Parameter construction (BN folded into scale/bias, eval-mode semantics)
# ----------------------------------------------------------------------------
def _fold_bn_layer(key, cout, cin):
    kw, kg, kb, km, kv = jax.random.split(key, 5)
    w = jax.random.normal(kw, (cout, cin), jnp.float32) * 0.2
    gamma = 1.0 + 0.1 * jax.random.normal(kg, (cout,), jnp.float32)
    beta = 0.1 * jax.random.normal(kb, (cout,), jnp.float32)
    mean = 0.1 * jax.random.normal(km, (cout,), jnp.float32)
    var = 1.0 + 0.1 * jax.random.uniform(kv, (cout,), jnp.float32)
    scale = gamma / jnp.sqrt(var + 1e-5)
    bias = beta - mean * scale
    return w, scale.reshape(cout, 1), bias.reshape(cout, 1)


def make_mlp_params(key, G):
    k0, k1, k2, k3 = jax.random.split(key, 4)
    w0, s0, b0 = _fold_bn_layer(k0, 16, G)
    w1, s1, b1 = _fold_bn_layer(k1, 8, 16)
    w2 = jax.random.normal(k2, (1, 8), jnp.float32) * 0.2
    b2 = 0.1 * jax.random.normal(k3, (1, 1), jnp.float32)
    return (w0, s0, b0, w1, s1, b1, w2, b2)


# ----------------------------------------------------------------------------
# Evaluation.forward (stage=3, view_weights is None, eval mode)
# ----------------------------------------------------------------------------
@functools.partial(jax.jit, static_argnames=("G", "tile_hw"))
def evaluation_forward(ref_feature, src_features, ref_proj, src_projs,
                       depth_sample, depth_min, depth_max, it,
                       grid, weight, pixel_params, sim_params, G=8, tile_hw=None):
    B, C, H, W = ref_feature.shape
    D = depth_sample.shape[1]
    V = len(src_features)
    Cg = C // G
    HW = H * W
    assert len(src_projs) == V
    assert HW % 128 == 0
    if tile_hw is None:
        tile_hw = _pick_tile_hw(HW, C, D, G)
    assert HW % tile_hw == 0 and tile_hw % 128 == 0

    # channel permutation g-major -> cg-major (done on the small, un-warped
    # features so the warped tensor is produced directly in the kernel layout)
    perm = jnp.asarray(tuple(g * Cg + cg for cg in range(Cg) for g in range(G)),
                       jnp.int32)
    ref_flat = ref_feature[:, perm].reshape(B, C, HW)
    src_stack = jnp.stack(src_features, axis=0)[:, :, perm]          # [V,B,C,H,W]
    proj_stack = jnp.stack(src_projs, axis=0)                        # [V,B,4,4]

    # TODO(synk): homography warp is a data-dependent bilinear gather; plain JAX.
    # Warp grid emitted in (hw tile, depth, pixel) order; output stored as bf16
    # to halve the HBM round-trip of the largest tensor in the pipeline.
    warp = functools.partial(differentiable_warping_tiled, tile_hw=tile_hw)
    warped = jax.vmap(lambda f, p: warp(f, p, ref_proj, depth_sample))(
        src_stack, proj_stack)                                       # [V,B,C,T*D*tile]
    warped = warped.astype(jnp.bfloat16)

    pixP = pack_mlp_params(pixel_params, G, in_scale=1.0 / Cg)
    simP = pack_mlp_params(sim_params, G, in_scale=1.0 / Cg)

    view_weights, s_raw = fused_corr_pixelwise_simnet(               # Pallas (fused)
        warped, ref_flat, pixP, simP, G=G, D=D, HW=HW, tile_hw=tile_hw)

    # SimilarityNet neighbor sampling (plain-JAX bilinear gather).
    # TODO(synk): for fixed integer 3x3 offsets this could be in-kernel pltpu.roll.
    K = grid.shape[1] // H
    sampled = grid_sample_2d(s_raw.reshape(B, D, H, W), grid,
                             padding_mode="border", align_corners=False)
    sampled = sampled.reshape(B, D, K, HW).transpose(0, 2, 1, 3)     # [B,K,D,HW]
    weight_r = weight.reshape(B, D, K, HW).transpose(0, 2, 1, 3)     # [B,K,D,HW]
    dep_flat = depth_sample.reshape(B, D, HW)

    score, depth = fused_score_softmax_regress(                      # Pallas (fused)
        sampled.astype(jnp.bfloat16), weight_r.astype(jnp.bfloat16),
        dep_flat, tile_hw=tile_hw)
    return (depth.reshape(B, H, W), score.reshape(B, D, H, W),
            view_weights.reshape(B, V, H, W))


# ----------------------------------------------------------------------------
# Pure-JAX reference (mirrors the PyTorch module, full f32) for validation
# ----------------------------------------------------------------------------
@functools.partial(jax.jit, static_argnames=("G",))
def reference_forward(ref_feature, src_features, ref_proj, src_projs, depth_sample,
                      grid, weight, pixel_params, sim_params, G=8):
    B, C, H, W = ref_feature.shape
    D = depth_sample.shape[1]
    Cg = C // G

    def mlp3(x, params):
        w0, s0, b0, w1, s1, b1, w2, b2 = params
        h = jnp.einsum('oc,bcdhw->bodhw', w0, x)
        h = jnp.maximum(h * s0.reshape(1, -1, 1, 1, 1) + b0.reshape(1, -1, 1, 1, 1), 0.0)
        h = jnp.einsum('oc,bcdhw->bodhw', w1, h)
        h = jnp.maximum(h * s1.reshape(1, -1, 1, 1, 1) + b1.reshape(1, -1, 1, 1, 1), 0.0)
        return jnp.einsum('oc,bcdhw->bodhw', w2, h) + b2.reshape(1, -1, 1, 1, 1)

    ref_g = ref_feature.reshape(B, G, Cg, H, W)
    similarity_sum = 0.0
    wsum = 0.0
    vws = []
    for src_feature, src_proj in zip(src_features, src_projs):
        warped = differentiable_warping(src_feature, src_proj, ref_proj, depth_sample)
        warped = warped.reshape(B, G, Cg, D, H, W)
        similarity = (warped * ref_g[:, :, :, None]).mean(2)          # [B,G,D,H,W]
        vw_vol = jax.nn.sigmoid(mlp3(similarity, pixel_params))[:, 0]  # [B,D,H,W]
        vw = jnp.max(vw_vol, axis=1, keepdims=True)                    # [B,1,H,W]
        vws.append(vw)
        similarity_sum = similarity_sum + similarity * vw[:, :, None]
        wsum = wsum + vw[:, :, None]
    view_weights = jnp.concatenate(vws, axis=1)
    sim_avg = similarity_sum / wsum
    s = mlp3(sim_avg, sim_params)[:, 0]                                # [B,D,H,W]
    K = grid.shape[1] // H
    sampled = grid_sample_2d(s, grid, padding_mode="border", align_corners=False)
    sampled = sampled.reshape(B, D, K, H, W)
    score_raw = jnp.sum(sampled * weight, axis=2)
    score = jax.nn.softmax(score_raw, axis=1)
    depth = jnp.sum(depth_sample * score, axis=1)
    return depth, score, view_weights


# ----------------------------------------------------------------------------
if __name__ == "__main__":
    B, C, H, W = 1, 16, 16, 16
    G, D, K, num_src = 8, 8, 9, 2

    key = jax.random.PRNGKey(0)
    keys = jax.random.split(key, 8)
    ref_feature = jax.random.normal(keys[0], (B, C, H, W), jnp.float32)
    src_features = [jax.random.normal(keys[1 + i], (B, C, H, W), jnp.float32)
                    for i in range(num_src)]

    # Projection matrices: intrinsics @ extrinsics (ref = identity extrinsics).
    fx = fy = 20.0
    cx, cy = (W - 1) / 2.0, (H - 1) / 2.0
    K_mat = jnp.array([[fx, 0, cx, 0], [0, fy, cy, 0],
                       [0, 0, 1, 0], [0, 0, 0, 1]], jnp.float32)
    ref_proj = jnp.broadcast_to(K_mat, (B, 4, 4))
    src_projs = []
    for i in range(num_src):
        t = jnp.array([[1, 0, 0, 0.1 * (i + 1)],
                       [0, 1, 0, -0.05 * (i + 1)],
                       [0, 0, 1, 0.0],
                       [0, 0, 0, 1]], jnp.float32)
        src_projs.append(jnp.broadcast_to(K_mat @ t, (B, 4, 4)))

    depth_min, depth_max = 0.5, 2.0
    dvals = jnp.linspace(depth_min, depth_max, D).astype(jnp.float32)
    depth_sample = jnp.broadcast_to(dvals.reshape(1, D, 1, 1), (B, D, H, W))

    # Neighbor sampling grid (identity + 8-connected offsets), shape [B, K*H, W, 2].
    ys, xs = jnp.meshgrid(jnp.arange(H, dtype=jnp.float32),
                          jnp.arange(W, dtype=jnp.float32), indexing="ij")
    xn = xs / (W - 1) * 2 - 1
    yn = ys / (H - 1) * 2 - 1
    offsets = [(-1, -1), (-1, 0), (-1, 1), (0, -1), (0, 0),
               (0, 1), (1, -1), (1, 0), (1, 1)]
    grids = []
    for dy, dx in offsets:
        grids.append(jnp.stack([xn + dx * 2.0 / (W - 1),
                                yn + dy * 2.0 / (H - 1)], axis=-1))
    grid = jnp.concatenate(grids, axis=0)                              # [K*H, W, 2]
    grid = jnp.broadcast_to(grid[None], (B, K * H, W, 2)).astype(jnp.float32)

    weight = jax.nn.softmax(
        jax.random.normal(keys[5], (B, D, K, H, W), jnp.float32), axis=2)

    pixel_params = make_mlp_params(jax.random.PRNGKey(1), G)   # PixelwiseNet weights
    sim_params = make_mlp_params(jax.random.PRNGKey(2), G)     # SimilarityNet weights

    # tile_hw=128 (HW=256 -> 2 tiles) exercises the HW-tiled grid path.
    depth, score, view_weights = evaluation_forward(
        ref_feature, src_features, ref_proj, src_projs, depth_sample,
        depth_min, depth_max, 1, grid, weight, pixel_params, sim_params,
        G=G, tile_hw=128)
    jax.block_until_ready((depth, score, view_weights))

    depth_r, score_r, vw_r = reference_forward(
        ref_feature, src_features, ref_proj, src_projs, depth_sample,
        grid, weight, pixel_params, sim_params, G=G)
    jax.block_until_ready((depth_r, score_r, vw_r))

    assert depth.shape == (B, H, W)
    assert score.shape == (B, D, H, W)
    assert view_weights.shape == (B, num_src, H, W)
    assert bool(jnp.all(jnp.isfinite(depth)))
    assert bool(jnp.all(jnp.isfinite(score)))
    # approx reciprocal in the softmax -> slight deviation from exactly 1.
    assert bool(jnp.allclose(jnp.sum(score, axis=1), 1.0, atol=5e-3))
    # Tolerances account for bf16 warped features / bf16 MLP operands
    # (f32 accumulation throughout); real layout/index bugs give O(0.1-1) errors.
    assert bool(jnp.allclose(view_weights, vw_r, rtol=2e-2, atol=3e-2))
    assert bool(jnp.allclose(score, score_r, rtol=2e-2, atol=4e-2))
    assert bool(jnp.allclose(depth, depth_r, rtol=2e-2, atol=6e-2))
    print("KERNEL_OK")
</pallas_src>

<mosaic_0001>
module attributes {stable_mosaic.version = 11 : i64} {
  func.func @kernel(%arg0: i32, %arg1: i32, %arg2: i32, %arg3: memref<1x1x16x1024xbf16, #tpu.memory_space<vmem>>, %arg4: memref<1x16x128xf32, #tpu.memory_space<vmem>>, %arg5: memref<32x32xf32, #tpu.memory_space<vmem>>, %arg6: memref<32x32xf32, #tpu.memory_space<vmem>>, %arg7: memref<1x1x1x128xf32, #tpu.memory_space<vmem>>, %arg8: memref<1x8x128xf32, #tpu.memory_space<vmem>>, %arg9: memref<8x1024xf32, #tpu.memory_space<vmem>>, %arg10: memref<1x128xf32, #tpu.memory_space<vmem>>) attributes {dimension_semantics = [#tpu.dimension_semantics<parallel>, #tpu.dimension_semantics<parallel>, #tpu.dimension_semantics<arbitrary>], iteration_bounds = array<i64: 2, 1, 2>, scalar_prefetch = 0 : i64, scratch_operands = 2 : i64, tpu.core_type = #tpu.core_type<tc>, window_params = [{transform_indices = @transform_0, window_bounds = array<i64: 1, 1, 16, 1024>}, {transform_indices = @transform_1, window_bounds = array<i64: 1, 16, 128>}, {pipeline_mode = #tpu.pipeline_mode<synchronous>, transform_indices = @transform_2, window_bounds = array<i64: 32, 32>}, {pipeline_mode = #tpu.pipeline_mode<synchronous>, transform_indices = @transform_3, window_bounds = array<i64: 32, 32>}, {transform_indices = @transform_4, window_bounds = array<i64: 1, 1, 1, 128>}, {transform_indices = @transform_5, window_bounds = array<i64: 1, 8, 128>}]} {
    %c0 = arith.constant 0 : index
    %c0_0 = arith.constant 0 : index
    %c0_1 = arith.constant 0 : index
    %0 = vector.load %arg4[%c0, %c0_0, %c0_1] : memref<1x16x128xf32, #tpu.memory_space<vmem>>, vector<1x16x128xf32>
    %1 = vector.shape_cast %0 : vector<1x16x128xf32> to vector<16x128xf32>
    %c0_2 = arith.constant 0 : index
    %c0_3 = arith.constant 0 : index
    %2 = vector.load %arg5[%c0_2, %c0_3] : memref<32x32xf32, #tpu.memory_space<vmem>>, vector<32x32xf32>
    %3 = vector.extract_strided_slice %2 {offsets = [0, 0], sizes = [16, 8], strides = [1, 1]} : vector<32x32xf32> to vector<16x8xf32>
    %4 = arith.truncf %3 : vector<16x8xf32> to vector<16x8xbf16>
    %5 = vector.extract_strided_slice %2 {offsets = [0, 8], sizes = [16, 1], strides = [1, 1]} : vector<32x32xf32> to vector<16x1xf32>
    %6 = vector.extract_strided_slice %2 {offsets = [16, 0], sizes = [8, 16], strides = [1, 1]} : vector<32x32xf32> to vector<8x16xf32>
    %7 = arith.truncf %6 : vector<8x16xf32> to vector<8x16xbf16>
    %8 = vector.extract_strided_slice %2 {offsets = [16, 16], sizes = [8, 1], strides = [1, 1]} : vector<32x32xf32> to vector<8x1xf32>
    %9 = vector.extract_strided_slice %2 {offsets = [24, 0], sizes = [1, 8], strides = [1, 1]} : vector<32x32xf32> to vector<1x8xf32>
    %10 = arith.truncf %9 : vector<1x8xf32> to vector<1x8xbf16>
    %11 = vector.extract_strided_slice %2 {offsets = [24, 8], sizes = [1, 1], strides = [1, 1]} : vector<32x32xf32> to vector<1x1xf32>
    %c0_4 = arith.constant 0 : index
    %c0_5 = arith.constant 0 : index
    %c0_6 = arith.constant 0 : index
    %c0_7 = arith.constant 0 : index
    %12 = vector.load %arg3[%c0_4, %c0_5, %c0_6, %c0_7] : memref<1x1x16x1024xbf16, #tpu.memory_space<vmem>>, vector<1x1x16x128xbf16>
    %13 = vector.shape_cast %12 : vector<1x1x16x128xbf16> to vector<16x128xbf16>
    %14 = arith.extf %13 : vector<16x128xbf16> to vector<16x128xf32>
    %15 = vector.extract_strided_slice %14 {offsets = [0, 0], sizes = [8, 128], strides = [1, 1]} : vector<16x128xf32> to vector<8x128xf32>
    %16 = vector.extract_strided_slice %1 {offsets = [0, 0], sizes = [8, 128], strides = [1, 1]} : vector<16x128xf32> to vector<8x128xf32>
    %17 = arith.mulf %15, %16 : vector<8x128xf32>
    %18 = vector.extract_strided_slice %14 {offsets = [8, 0], sizes = [8, 128], strides = [1, 1]} : vector<16x128xf32> to vector<8x128xf32>
    %19 = vector.extract_strided_slice %1 {offsets = [8, 0], sizes = [8, 128], strides = [1, 1]} : vector<16x128xf32> to vector<8x128xf32>
    %20 = arith.mulf %18, %19 : vector<8x128xf32>
    %21 = arith.addf %17, %20 : vector<8x128xf32>
    %22 = arith.truncf %21 : vector<8x128xf32> to vector<8x128xbf16>
    %cst = arith.constant dense<0.000000e+00> : vector<16x128xf32>
    %23 = tpu.matmul %4, %22, %cst {dimension_numbers = #tpu.dot_dimension_numbers<[1], [0], [0], [1], [0, 0, 1, 1], [], []>} : vector<16x8xbf16>, vector<8x128xbf16>, vector<16x128xf32> -> vector<16x128xf32>
    %24 = vector.broadcast %5 : vector<16x1xf32> to vector<16x128xf32>
    %25 = arith.addf %23, %24 : vector<16x128xf32>
    %cst_8 = arith.constant 0.000000e+00 : f32
    %26 = vector.broadcast %cst_8 : f32 to vector<16x128xf32>
    %27 = arith.maximumf %25, %26 : vector<16x128xf32>
    %28 = arith.truncf %27 : vector<16x128xf32> to vector<16x128xbf16>
    %cst_9 = arith.constant dense<0.000000e+00> : vector<8x128xf32>
    %29 = tpu.matmul %7, %28, %cst_9 {dimension_numbers = #tpu.dot_dimension_numbers<[1], [0], [0], [1], [0, 0, 1, 1], [], []>} : vector<8x16xbf16>, vector<16x128xbf16>, vector<8x128xf32> -> vector<8x128xf32>
    %30 = vector.broadcast %8 : vector<8x1xf32> to vector<8x128xf32>
    %31 = arith.addf %29, %30 : vector<8x128xf32>
    %cst_10 = arith.constant 0.000000e+00 : f32
    %32 = vector.broadcast %cst_10 : f32 to vector<8x128xf32>
    %33 = arith.maximumf %31, %32 : vector<8x128xf32>
    %34 = arith.truncf %33 : vector<8x128xf32> to vector<8x128xbf16>
    %cst_11 = arith.constant dense<0.000000e+00> : vector<1x128xf32>
    %35 = tpu.matmul %10, %34, %cst_11 {dimension_numbers = #tpu.dot_dimension_numbers<[1], [0], [0], [1], [0, 0, 1, 1], [], []>} : vector<1x8xbf16>, vector<8x128xbf16>, vector<1x128xf32> -> vector<1x128xf32>
    %36 = vector.broadcast %11 : vector<1x1xf32> to vector<1x128xf32>
    %37 = arith.addf %35, %36 : vector<1x128xf32>
    %38 = arith.negf %37 : vector<1x128xf32>
    %39 = math.exp %38 : vector<1x128xf32>
    %cst_12 = arith.constant 1.000000e+00 : f32
    %40 = vector.broadcast %cst_12 : f32 to vector<1x128xf32>
    %41 = arith.addf %40, %39 : vector<1x128xf32>
    %42 = arith.divf %40, %41 : vector<1x128xf32>
    %c0_13 = arith.constant 0 : index
    %c0_14 = arith.constant 0 : index
    %c0_15 = arith.constant 0 : index
    %c128 = arith.constant 128 : index
    %43 = vector.load %arg3[%c0_13, %c0_14, %c0_15, %c128] : memref<1x1x16x1024xbf16, #tpu.memory_space<vmem>>, vector<1x1x16x128xbf16>
    %44 = vector.shape_cast %43 : vector<1x1x16x128xbf16> to vector<16x128xbf16>
    %45 = arith.extf %44 : vector<16x128xbf16> to vector<16x128xf32>
    %46 = vector.extract_strided_slice %45 {offsets = [0, 0], sizes = [8, 128], strides = [1, 1]} : vector<16x128xf32> to vector<8x128xf32>
    %47 = vector.extract_strided_slice %1 {offsets = [0, 0], sizes = [8, 128], strides = [1, 1]} : vector<16x128xf32> to vector<8x128xf32>
    %48 = arith.mulf %46, %47 : vector<8x128xf32>
    %49 = vector.extract_strided_slice %45 {offsets = [8, 0], sizes = [8, 128], strides = [1, 1]} : vector<16x128xf32> to vector<8x128xf32>
    %50 = vector.extract_strided_slice %1 {offsets = [8, 0], sizes = [8, 128], strides = [1, 1]} : vector<16x128xf32> to vector<8x128xf32>
    %51 = arith.mulf %49, %50 : vector<8x128xf32>
    %52 = arith.addf %48, %51 : vector<8x128xf32>
    %53 = arith.truncf %52 : vector<8x128xf32> to vector<8x128xbf16>
    %cst_16 = arith.constant dense<0.000000e+00> : vector<16x128xf32>
    %54 = tpu.matmul %4, %53, %cst_16 {dimension_numbers = #tpu.dot_dimension_numbers<[1], [0], [0], [1], [0, 0, 1, 1], [], []>} : vector<16x8xbf16>, vector<8x128xbf16>, vector<16x128xf32> -> vector<16x128xf32>
    %55 = vector.broadcast %5 : vector<16x1xf32> to vector<16x128xf32>
    %56 = arith.addf %54, %55 : vector<16x128xf32>
    %cst_17 = arith.constant 0.000000e+00 : f32
    %57 = vector.broadcast %cst_17 : f32 to vector<16x128xf32>
    %58 = arith.maximumf %56, %57 : vector<16x128xf32>
    %59 = arith.truncf %58 : vector<16x128xf32> to vector<16x128xbf16>
    %cst_18 = arith.constant dense<0.000000e+00> : vector<8x128xf32>
    %60 = tpu.matmul %7, %59, %cst_18 {dimension_numbers = #tpu.dot_dimension_numbers<[1], [0], [0], [1], [0, 0, 1, 1], [], []>} : vector<8x16xbf16>, vector<16x128xbf16>, vector<8x128xf32> -> vector<8x128xf32>
    %61 = vector.broadcast %8 : vector<8x1xf32> to vector<8x128xf32>
    %62 = arith.addf %60, %61 : vector<8x128xf32>
    %cst_19 = arith.constant 0.000000e+00 : f32
    %63 = vector.broadcast %cst_19 : f32 to vector<8x128xf32>
    %64 = arith.maximumf %62, %63 : vector<8x128xf32>
    %65 = arith.truncf %64 : vector<8x128xf32> to vector<8x128xbf16>
    %cst_20 = arith.constant dense<0.000000e+00> : vector<1x128xf32>
    %66 = tpu.matmul %10, %65, %cst_20 {dimension_numbers = #tpu.dot_dimension_numbers<[1], [0], [0], [1], [0, 0, 1, 1], [], []>} : vector<1x8xbf16>, vector<8x128xbf16>, vector<1x128xf32> -> vector<1x128xf32>
    %67 = vector.broadcast %11 : vector<1x1xf32> to vector<1x128xf32>
    %68 = arith.addf %66, %67 : vector<1x128xf32>
    %69 = arith.negf %68 : vector<1x128xf32>
    %70 = math.exp %69 : vector<1x128xf32>
    %cst_21 = arith.constant 1.000000e+00 : f32
    %71 = vector.broadcast %cst_21 : f32 to vector<1x128xf32>
    %72 = arith.addf %71, %70 : vector<1x128xf32>
    %73 = arith.divf %71, %72 : vector<1x128xf32>
    %74 = arith.maximumf %42, %73 : vector<1x128xf32>
    %c0_22 = arith.constant 0 : index
    %c0_23 = arith.constant 0 : index
    %c0_24 = arith.constant 0 : index
    %c256 = arith.constant 256 : index
    %75 = vector.load %arg3[%c0_22, %c0_23, %c0_24, %c256] : memref<1x1x16x1024xbf16, #tpu.memory_space<vmem>>, vector<1x1x16x128xbf16>
    %76 = vector.shape_cast %75 : vector<1x1x16x128xbf16> to vector<16x128xbf16>
    %77 = arith.extf %76 : vector<16x128xbf16> to vector<16x128xf32>
    %78 = vector.extract_strided_slice %77 {offsets = [0, 0], sizes = [8, 128], strides = [1, 1]} : vector<16x128xf32> to vector<8x128xf32>
    %79 = vector.extract_strided_slice %1 {offsets = [0, 0], sizes = [8, 128], strides = [1, 1]} : vector<16x128xf32> to vector<8x128xf32>
    %80 = arith.mulf %78, %79 : vector<8x128xf32>
    %81 = vector.extract_strided_slice %77 {offsets = [8, 0], sizes = [8, 128], strides = [1, 1]} : vector<16x128xf32> to vector<8x128xf32>
    %82 = vector.extract_strided_slice %1 {offsets = [8, 0], sizes = [8, 128], strides = [1, 1]} : vector<16x128xf32> to vector<8x128xf32>
    %83 = arith.mulf %81, %82 : vector<8x128xf32>
    %84 = arith.addf %80, %83 : vector<8x128xf32>
    %85 = arith.truncf %84 : vector<8x128xf32> to vector<8x128xbf16>
    %cst_25 = arith.constant dense<0.000000e+00> : vector<16x128xf32>
    %86 = tpu.matmul %4, %85, %cst_25 {dimension_numbers = #tpu.dot_dimension_numbers<[1], [0], [0], [1], [0, 0, 1, 1], [], []>} : vector<16x8xbf16>, vector<8x128xbf16>, vector<16x128xf32> -> vector<16x128xf32>
    %87 = vector.broadcast %5 : vector<16x1xf32> to vector<16x128xf32>
    %88 = arith.addf %86, %87 : vector<16x128xf32>
    %cst_26 = arith.constant 0.000000e+00 : f32
    %89 = vector.broadcast %cst_26 : f32 to vector<16x128xf32>
    %90 = arith.maximumf %88, %89 : vector<16x128xf32>
    %91 = arith.truncf %90 : vector<16x128xf32> to vector<16x128xbf16>
    %cst_27 = arith.constant dense<0.000000e+00> : vector<8x128xf32>
    %92 = tpu.matmul %7, %91, %cst_27 {dimension_numbers = #tpu.dot_dimension_numbers<[1], [0], [0], [1], [0, 0, 1, 1], [], []>} : vector<8x16xbf16>, vector<16x128xbf16>, vector<8x128xf32> -> vector<8x128xf32>
    %93 = vector.broadcast %8 : vector<8x1xf32> to vector<8x128xf32>
    %94 = arith.addf %92, %93 : vector<8x128xf32>
    %cst_28 = arith.constant 0.000000e+00 : f32
    %95 = vector.broadcast %cst_28 : f32 to vector<8x128xf32>
    %96 = arith.maximumf %94, %95 : vector<8x128xf32>
    %97 = arith.truncf %96 : vector<8x128xf32> to vector<8x128xbf16>
    %cst_29 = arith.constant dense<0.000000e+00> : vector<1x128xf32>
    %98 = tpu.matmul %10, %97, %cst_29 {dimension_numbers = #tpu.dot_dimension_numbers<[1], [0], [0], [1], [0, 0, 1, 1], [], []>} : vector<1x8xbf16>, vector<8x128xbf16>, vector<1x128xf32> -> vector<1x128xf32>
    %99 = vector.broadcast %11 : vector<1x1xf32> to vector<1x128xf32>
    %100 = arith.addf %98, %99 : vector<1x128xf32>
    %101 = arith.negf %100 : vector<1x128xf32>
    %102 = math.exp %101 : vector<1x128xf32>
    %cst_30 = arith.constant 1.000000e+00 : f32
    %103 = vector.broadcast %cst_30 : f32 to vector<1x128xf32>
    %104 = arith.addf %103, %102 : vector<1x128xf32>
    %105 = arith.divf %103, %104 : vector<1x128xf32>
    %106 = arith.maximumf %74, %105 : vector<1x128xf32>
    %c0_31 = arith.constant 0 : index
    %c0_32 = arith.constant 0 : index
    %c0_33 = arith.constant 0 : index
    %c384 = arith.constant 384 : index
    %107 = vector.load %arg3[%c0_31, %c0_32, %c0_33, %c384] : memref<1x1x16x1024xbf16, #tpu.memory_space<vmem>>, vector<1x1x16x128xbf16>
    %108 = vector.shape_cast %107 : vector<1x1x16x128xbf16> to vector<16x128xbf16>
    %109 = arith.extf %108 : vector<16x128xbf16> to vector<16x128xf32>
    %110 = vector.extract_strided_slice %109 {offsets = [0, 0], sizes = [8, 128], strides = [1, 1]} : vector<16x128xf32> to vector<8x128xf32>
    %111 = vector.extract_strided_slice %1 {offsets = [0, 0], sizes = [8, 128], strides = [1, 1]} : vector<16x128xf32> to vector<8x128xf32>
    %112 = arith.mulf %110, %111 : vector<8x128xf32>
    %113 = vector.extract_strided_slice %109 {offsets = [8, 0], sizes = [8, 128], strides = [1, 1]} : vector<16x128xf32> to vector<8x128xf32>
    %114 = vector.extract_strided_slice %1 {offsets = [8, 0], sizes = [8, 128], strides = [1, 1]} : vector<16x128xf32> to vector<8x128xf32>
    %115 = arith.mulf %113, %114 : vector<8x128xf32>
    %116 = arith.addf %112, %115 : vector<8x128xf32>
    %117 = arith.truncf %116 : vector<8x128xf32> to vector<8x128xbf16>
    %cst_34 = arith.constant dense<0.000000e+00> : vector<16x128xf32>
    %118 = tpu.matmul %4, %117, %cst_34 {dimension_numbers = #tpu.dot_dimension_numbers<[1], [0], [0], [1], [0, 0, 1, 1], [], []>} : vector<16x8xbf16>, vector<8x128xbf16>, vector<16x128xf32> -> vector<16x128xf32>
    %119 = vector.broadcast %5 : vector<16x1xf32> to vector<16x128xf32>
    %120 = arith.addf %118, %119 : vector<16x128xf32>
    %cst_35 = arith.constant 0.000000e+00 : f32
    %121 = vector.broadcast %cst_35 : f32 to vector<16x128xf32>
    %122 = arith.maximumf %120, %121 : vector<16x128xf32>
    %123 = arith.truncf %122 : vector<16x128xf32> to vector<16x128xbf16>
    %cst_36 = arith.constant dense<0.000000e+00> : vector<8x128xf32>
    %124 = tpu.matmul %7, %123, %cst_36 {dimension_numbers = #tpu.dot_dimension_numbers<[1], [0], [0], [1], [0, 0, 1, 1], [], []>} : vector<8x16xbf16>, vector<16x128xbf16>, vector<8x128xf32> -> vector<8x128xf32>
    %125 = vector.broadcast %8 : vector<8x1xf32> to vector<8x128xf32>
    %126 = arith.addf %124, %125 : vector<8x128xf32>
    %cst_37 = arith.constant 0.000000e+00 : f32
    %127 = vector.broadcast %cst_37 : f32 to vector<8x128xf32>
    %128 = arith.maximumf %126, %127 : vector<8x128xf32>
    %129 = arith.truncf %128 : vector<8x128xf32> to vector<8x128xbf16>
    %cst_38 = arith.constant dense<0.000000e+00> : vector<1x128xf32>
    %130 = tpu.matmul %10, %129, %cst_38 {dimension_numbers = #tpu.dot_dimension_numbers<[1], [0], [0], [1], [0, 0, 1, 1], [], []>} : vector<1x8xbf16>, vector<8x128xbf16>, vector<1x128xf32> -> vector<1x128xf32>
    %131 = vector.broadcast %11 : vector<1x1xf32> to vector<1x128xf32>
    %132 = arith.addf %130, %131 : vector<1x128xf32>
    %133 = arith.negf %132 : vector<1x128xf32>
    %134 = math.exp %133 : vector<1x128xf32>
    %cst_39 = arith.constant 1.000000e+00 : f32
    %135 = vector.broadcast %cst_39 : f32 to vector<1x128xf32>
    %136 = arith.addf %135, %134 : vector<1x128xf32>
    %137 = arith.divf %135, %136 : vector<1x128xf32>
    %138 = arith.maximumf %106, %137 : vector<1x128xf32>
    %c0_40 = arith.constant 0 : index
    %c0_41 = arith.constant 0 : index
    %c0_42 = arith.constant 0 : index
    %c512 = arith.constant 512 : index
    %139 = vector.load %arg3[%c0_40, %c0_41, %c0_42, %c512] : memref<1x1x16x1024xbf16, #tpu.memory_space<vmem>>, vector<1x1x16x128xbf16>
    %140 = vector.shape_cast %139 : vector<1x1x16x128xbf16> to vector<16x128xbf16>
    %141 = arith.extf %140 : vector<16x128xbf16> to vector<16x128xf32>
    %142 = vector.extract_strided_slice %141 {offsets = [0, 0], sizes = [8, 128], strides = [1, 1]} : vector<16x128xf32> to vector<8x128xf32>
    %143 = vector.extract_strided_slice %1 {offsets = [0, 0], sizes = [8, 128], strides = [1, 1]} : vector<16x128xf32> to vector<8x128xf32>
    %144 = arith.mulf %142, %143 : vector<8x128xf32>
    %145 = vector.extract_strided_slice %141 {offsets = [8, 0], sizes = [8, 128], strides = [1, 1]} : vector<16x128xf32> to vector<8x128xf32>
    %146 = vector.extract_strided_slice %1 {offsets = [8, 0], sizes = [8, 128], strides = [1, 1]} : vector<16x128xf32> to vector<8x128xf32>
    %147 = arith.mulf %145, %146 : vector<8x128xf32>
    %148 = arith.addf %144, %147 : vector<8x128xf32>
    %149 = arith.truncf %148 : vector<8x128xf32> to vector<8x128xbf16>
    %cst_43 = arith.constant dense<0.000000e+00> : vector<16x128xf32>
    %150 = tpu.matmul %4, %149, %cst_43 {dimension_numbers = #tpu.dot_dimension_numbers<[1], [0], [0], [1], [0, 0, 1, 1], [], []>} : vector<16x8xbf16>, vector<8x128xbf16>, vector<16x128xf32> -> vector<16x128xf32>
    %151 = vector.broadcast %5 : vector<16x1xf32> to vector<16x128xf32>
    %152 = arith.addf %150, %151 : vector<16x128xf32>
    %cst_44 = arith.constant 0.000000e+00 : f32
    %153 = vector.broadcast %cst_44 : f32 to vector<16x128xf32>
    %154 = arith.maximumf %152, %153 : vector<16x128xf32>
    %155 = arith.truncf %154 : vector<16x128xf32> to vector<16x128xbf16>
    %cst_45 = arith.constant dense<0.000000e+00> : vector<8x128xf32>
    %156 = tpu.matmul %7, %155, %cst_45 {dimension_numbers = #tpu.dot_dimension_numbers<[1], [0], [0], [1], [0, 0, 1, 1], [], []>} : vector<8x16xbf16>, vector<16x128xbf16>, vector<8x128xf32> -> vector<8x128xf32>
    %157 = vector.broadcast %8 : vector<8x1xf32> to vector<8x128xf32>
    %158 = arith.addf %156, %157 : vector<8x128xf32>
    %cst_46 = arith.constant 0.000000e+00 : f32
    %159 = vector.broadcast %cst_46 : f32 to vector<8x128xf32>
    %160 = arith.maximumf %158, %159 : vector<8x128xf32>
    %161 = arith.truncf %160 : vector<8x128xf32> to vector<8x128xbf16>
    %cst_47 = arith.constant dense<0.000000e+00> : vector<1x128xf32>
    %162 = tpu.matmul %10, %161, %cst_47 {dimension_numbers = #tpu.dot_dimension_numbers<[1], [0], [0], [1], [0, 0, 1, 1], [], []>} : vector<1x8xbf16>, vector<8x128xbf16>, vector<1x128xf32> -> vector<1x128xf32>
    %163 = vector.broadcast %11 : vector<1x1xf32> to vector<1x128xf32>
    %164 = arith.addf %162, %163 : vector<1x128xf32>
    %165 = arith.negf %164 : vector<1x128xf32>
    %166 = math.exp %165 : vector<1x128xf32>
    %cst_48 = arith.constant 1.000000e+00 : f32
    %167 = vector.broadcast %cst_48 : f32 to vector<1x128xf32>
    %168 = arith.addf %167, %166 : vector<1x128xf32>
    %169 = arith.divf %167, %168 : vector<1x128xf32>
    %170 = arith.maximumf %138, %169 : vector<1x128xf32>
    %c0_49 = arith.constant 0 : index
    %c0_50 = arith.constant 0 : index
    %c0_51 = arith.constant 0 : index
    %c640 = arith.constant 640 : index
    %171 = vector.load %arg3[%c0_49, %c0_50, %c0_51, %c640] : memref<1x1x16x1024xbf16, #tpu.memory_space<vmem>>, vector<1x1x16x128xbf16>
    %172 = vector.shape_cast %171 : vector<1x1x16x128xbf16> to vector<16x128xbf16>
    %173 = arith.extf %172 : vector<16x128xbf16> to vector<16x128xf32>
    %174 = vector.extract_strided_slice %173 {offsets = [0, 0], sizes = [8, 128], strides = [1, 1]} : vector<16x128xf32> to vector<8x128xf32>
    %175 = vector.extract_strided_slice %1 {offsets = [0, 0], sizes = [8, 128], strides = [1, 1]} : vector<16x128xf32> to vector<8x128xf32>
    %176 = arith.mulf %174, %175 : vector<8x128xf32>
    %177 = vector.extract_strided_slice %173 {offsets = [8, 0], sizes = [8, 128], strides = [1, 1]} : vector<16x128xf32> to vector<8x128xf32>
    %178 = vector.extract_strided_slice %1 {offsets = [8, 0], sizes = [8, 128], strides = [1, 1]} : vector<16x128xf32> to vector<8x128xf32>
    %179 = arith.mulf %177, %178 : vector<8x128xf32>
    %180 = arith.addf %176, %179 : vector<8x128xf32>
    %181 = arith.truncf %180 : vector<8x128xf32> to vector<8x128xbf16>
    %cst_52 = arith.constant dense<0.000000e+00> : vector<16x128xf32>
    %182 = tpu.matmul %4, %181, %cst_52 {dimension_numbers = #tpu.dot_dimension_numbers<[1], [0], [0], [1], [0, 0, 1, 1], [], []>} : vector<16x8xbf16>, vector<8x128xbf16>, vector<16x128xf32> -> vector<16x128xf32>
    %183 = vector.broadcast %5 : vector<16x1xf32> to vector<16x128xf32>
    %184 = arith.addf %182, %183 : vector<16x128xf32>
    %cst_53 = arith.constant 0.000000e+00 : f32
    %185 = vector.broadcast %cst_53 : f32 to vector<16x128xf32>
    %186 = arith.maximumf %184, %185 : vector<16x128xf32>
    %187 = arith.truncf %186 : vector<16x128xf32> to vector<16x128xbf16>
    %cst_54 = arith.constant dense<0.000000e+00> : vector<8x128xf32>
    %188 = tpu.matmul %7, %187, %cst_54 {dimension_numbers = #tpu.dot_dimension_numbers<[1], [0], [0], [1], [0, 0, 1, 1], [], []>} : vector<8x16xbf16>, vector<16x128xbf16>, vector<8x128xf32> -> vector<8x128xf32>
    %189 = vector.broadcast %8 : vector<8x1xf32> to vector<8x128xf32>
    %190 = arith.addf %188, %189 : vector<8x128xf32>
    %cst_55 = arith.constant 0.000000e+00 : f32
    %191 = vector.broadcast %cst_55 : f32 to vector<8x128xf32>
    %192 = arith.maximumf %190, %191 : vector<8x128xf32>
    %193 = arith.truncf %192 : vector<8x128xf32> to vector<8x128xbf16>
    %cst_56 = arith.constant dense<0.000000e+00> : vector<1x128xf32>
    %194 = tpu.matmul %10, %193, %cst_56 {dimension_numbers = #tpu.dot_dimension_numbers<[1], [0], [0], [1], [0, 0, 1, 1], [], []>} : vector<1x8xbf16>, vector<8x128xbf16>, vector<1x128xf32> -> vector<1x128xf32>
    %195 = vector.broadcast %11 : vector<1x1xf32> to vector<1x128xf32>
    %196 = arith.addf %194, %195 : vector<1x128xf32>
    %197 = arith.negf %196 : vector<1x128xf32>
    %198 = math.exp %197 : vector<1x128xf32>
    %cst_57 = arith.constant 1.000000e+00 : f32
    %199 = vector.broadcast %cst_57 : f32 to vector<1x128xf32>
    %200 = arith.addf %199, %198 : vector<1x128xf32>
    %201 = arith.divf %199, %200 : vector<1x128xf32>
    %202 = arith.maximumf %170, %201 : vector<1x128xf32>
    %c0_58 = arith.constant 0 : index
    %c0_59 = arith.constant 0 : index
    %c0_60 = arith.constant 0 : index
    %c768 = arith.constant 768 : index
    %203 = vector.load %arg3[%c0_58, %c0_59, %c0_60, %c768] : memref<1x1x16x1024xbf16, #tpu.memory_space<vmem>>, vector<1x1x16x128xbf16>
    %204 = vector.shape_cast %203 : vector<1x1x16x128xbf16> to vector<16x128xbf16>
    %205 = arith.extf %204 : vector<16x128xbf16> to vector<16x128xf32>
    %206 = vector.extract_strided_slice %205 {offsets = [0, 0], sizes = [8, 128], strides = [1, 1]} : vector<16x128xf32> to vector<8x128xf32>
    %207 = vector.extract_strided_slice %1 {offsets = [0, 0], sizes = [8, 128], strides = [1, 1]} : vector<16x128xf32> to vector<8x128xf32>
    %208 = arith.mulf %206, %207 : vector<8x128xf32>
    %209 = vector.extract_strided_slice %205 {offsets = [8, 0], sizes = [8, 128], strides = [1, 1]} : vector<16x128xf32> to vector<8x128xf32>
    %210 = vector.extract_strided_slice %1 {offsets = [8, 0], sizes = [8, 128], strides = [1, 1]} : vector<16x128xf32> to vector<8x128xf32>
    %211 = arith.mulf %209, %210 : vector<8x128xf32>
    %212 = arith.addf %208, %211 : vector<8x128xf32>
    %213 = arith.truncf %212 : vector<8x128xf32> to vector<8x128xbf16>
    %cst_61 = arith.constant dense<0.000000e+00> : vector<16x128xf32>
    %214 = tpu.matmul %4, %213, %cst_61 {dimension_numbers = #tpu.dot_dimension_numbers<[1], [0], [0], [1], [0, 0, 1, 1], [], []>} : vector<16x8xbf16>, vector<8x128xbf16>, vector<16x128xf32> -> vector<16x128xf32>
    %215 = vector.broadcast %5 : vector<16x1xf32> to vector<16x128xf32>
    %216 = arith.addf %214, %215 : vector<16x128xf32>
    %cst_62 = arith.constant 0.000000e+00 : f32
    %217 = vector.broadcast %cst_62 : f32 to vector<16x128xf32>
    %218 = arith.maximumf %216, %217 : vector<16x128xf32>
    %219 = arith.truncf %218 : vector<16x128xf32> to vector<16x128xbf16>
    %cst_63 = arith.constant dense<0.000000e+00> : vector<8x128xf32>
    %220 = tpu.matmul %7, %219, %cst_63 {dimension_numbers = #tpu.dot_dimension_numbers<[1], [0], [0], [1], [0, 0, 1, 1], [], []>} : vector<8x16xbf16>, vector<16x128xbf16>, vector<8x128xf32> -> vector<8x128xf32>
    %221 = vector.broadcast %8 : vector<8x1xf32> to vector<8x128xf32>
    %222 = arith.addf %220, %221 : vector<8x128xf32>
    %cst_64 = arith.constant 0.000000e+00 : f32
    %223 = vector.broadcast %cst_64 : f32 to vector<8x128xf32>
    %224 = arith.maximumf %222, %223 : vector<8x128xf32>
    %225 = arith.truncf %224 : vector<8x128xf32> to vector<8x128xbf16>
    %cst_65 = arith.constant dense<0.000000e+00> : vector<1x128xf32>
    %226 = tpu.matmul %10, %225, %cst_65 {dimension_numbers = #tpu.dot_dimension_numbers<[1], [0], [0], [1], [0, 0, 1, 1], [], []>} : vector<1x8xbf16>, vector<8x128xbf16>, vector<1x128xf32> -> vector<1x128xf32>
    %227 = vector.broadcast %11 : vector<1x1xf32> to vector<1x128xf32>
    %228 = arith.addf %226, %227 : vector<1x128xf32>
    %229 = arith.negf %228 : vector<1x128xf32>
    %230 = math.exp %229 : vector<1x128xf32>
    %cst_66 = arith.constant 1.000000e+00 : f32
    %231 = vector.broadcast %cst_66 : f32 to vector<1x128xf32>
    %232 = arith.addf %231, %230 : vector<1x128xf32>
    %233 = arith.divf %231, %232 : vector<1x128xf32>
    %234 = arith.maximumf %202, %233 : vector<1x128xf32>
    %c0_67 = arith.constant 0 : index
    %c0_68 = arith.constant 0 : index
    %c0_69 = arith.constant 0 : index
    %c896 = arith.constant 896 : index
    %235 = vector.load %arg3[%c0_67, %c0_68, %c0_69, %c896] : memref<1x1x16x1024xbf16, #tpu.memory_space<vmem>>, vector<1x1x16x128xbf16>
    %236 = vector.shape_cast %235 : vector<1x1x16x128xbf16> to vector<16x128xbf16>
    %237 = arith.extf %236 : vector<16x128xbf16> to vector<16x128xf32>
    %238 = vector.extract_strided_slice %237 {offsets = [0, 0], sizes = [8, 128], strides = [1, 1]} : vector<16x128xf32> to vector<8x128xf32>
    %239 = vector.extract_strided_slice %1 {offsets = [0, 0], sizes = [8, 128], strides = [1, 1]} : vector<16x128xf32> to vector<8x128xf32>
    %240 = arith.mulf %238, %239 : vector<8x128xf32>
    %241 = vector.extract_strided_slice %237 {offsets = [8, 0], sizes = [8, 128], strides = [1, 1]} : vector<16x128xf32> to vector<8x128xf32>
    %242 = vector.extract_strided_slice %1 {offsets = [8, 0], sizes = [8, 128], strides = [1, 1]} : vector<16x128xf32> to vector<8x128xf32>
    %243 = arith.mulf %241, %242 : vector<8x128xf32>
    %244 = arith.addf %240, %243 : vector<8x128xf32>
    %245 = arith.truncf %244 : vector<8x128xf32> to vector<8x128xbf16>
    %cst_70 = arith.constant dense<0.000000e+00> : vector<16x128xf32>
    %246 = tpu.matmul %4, %245, %cst_70 {dimension_numbers = #tpu.dot_dimension_numbers<[1], [0], [0], [1], [0, 0, 1, 1], [], []>} : vector<16x8xbf16>, vector<8x128xbf16>, vector<16x128xf32> -> vector<16x128xf32>
    %247 = vector.broadcast %5 : vector<16x1xf32> to vector<16x128xf32>
    %248 = arith.addf %246, %247 : vector<16x128xf32>
    %cst_71 = arith.constant 0.000000e+00 : f32
    %249 = vector.broadcast %cst_71 : f32 to vector<16x128xf32>
    %250 = arith.maximumf %248, %249 : vector<16x128xf32>
    %251 = arith.truncf %250 : vector<16x128xf32> to vector<16x128xbf16>
    %cst_72 = arith.constant dense<0.000000e+00> : vector<8x128xf32>
    %252 = tpu.matmul %7, %251, %cst_72 {dimension_numbers = #tpu.dot_dimension_numbers<[1], [0], [0], [1], [0, 0, 1, 1], [], []>} : vector<8x16xbf16>, vector<16x128xbf16>, vector<8x128xf32> -> vector<8x128xf32>
    %253 = vector.broadcast %8 : vector<8x1xf32> to vector<8x128xf32>
    %254 = arith.addf %252, %253 : vector<8x128xf32>
    %cst_73 = arith.constant 0.000000e+00 : f32
    %255 = vector.broadcast %cst_73 : f32 to vector<8x128xf32>
    %256 = arith.maximumf %254, %255 : vector<8x128xf32>
    %257 = arith.truncf %256 : vector<8x128xf32> to vector<8x128xbf16>
    %cst_74 = arith.constant dense<0.000000e+00> : vector<1x128xf32>
    %258 = tpu.matmul %10, %257, %cst_74 {dimension_numbers = #tpu.dot_dimension_numbers<[1], [0], [0], [1], [0, 0, 1, 1], [], []>} : vector<1x8xbf16>, vector<8x128xbf16>, vector<1x128xf32> -> vector<1x128xf32>
    %259 = vector.broadcast %11 : vector<1x1xf32> to vector<1x128xf32>
    %260 = arith.addf %258, %259 : vector<1x128xf32>
    %261 = arith.negf %260 : vector<1x128xf32>
    %262 = math.exp %261 : vector<1x128xf32>
    %cst_75 = arith.constant 1.000000e+00 : f32
    %263 = vector.broadcast %cst_75 : f32 to vector<1x128xf32>
    %264 = arith.addf %263, %262 : vector<1x128xf32>
    %265 = arith.divf %263, %264 : vector<1x128xf32>
    %266 = arith.maximumf %234, %265 : vector<1x128xf32>
    %c0_76 = arith.constant 0 : index
    %c0_77 = arith.constant 0 : index
    %c0_78 = arith.constant 0 : index
    %c0_79 = arith.constant 0 : index
    %267 = vector.load %arg7[%c0_76, %c0_77, %c0_78, %c0_79] : memref<1x1x1x128xf32, #tpu.memory_space<vmem>>, vector<1x1x1x128xf32>
    %268 = vector.shape_cast %267 : vector<1x1x1x128xf32> to vector<1x128xf32>
    %269 = vector.shape_cast %266 : vector<1x128xf32> to vector<1x1x1x128xf32>
    tpu.vector_store %arg7[%c0_76, %c0_77, %c0_78, %c0_79], %269 {strides = array<i32>} : memref<1x1x1x128xf32, #tpu.memory_space<vmem>>, vector<1x1x1x128xf32>,
    %c0_i32 = arith.constant 0 : i32
    %270 = arith.cmpi eq, %arg2, %c0_i32 : i32
    %271 = arith.extui %270 : i1 to i32
    %c0_i32_80 = arith.constant 0 : i32
    %272 = arith.cmpi ne, %271, %c0_i32_80 : i32
    scf.if %272 {
      %cst_118 = arith.constant 0.000000e+00 : f32
      %319 = vector.broadcast %cst_118 : f32 to vector<8x1024xf32>
      %c0_119 = arith.constant 0 : index
      %c0_120 = arith.constant 0 : index
      %320 = vector.load %arg9[%c0_119, %c0_120] : memref<8x1024xf32, #tpu.memory_space<vmem>>, vector<8x1024xf32>
      tpu.vector_store %arg9[%c0_119, %c0_120], %319 {strides = array<i32>} : memref<8x1024xf32, #tpu.memory_space<vmem>>, vector<8x1024xf32>,
      %cst_121 = arith.constant 0.000000e+00 : f32
      %321 = vector.broadcast %cst_121 : f32 to vector<1x128xf32>
      %c0_122 = arith.constant 0 : index
      %c0_123 = arith.constant 0 : index
      %322 = vector.load %arg10[%c0_122, %c0_123] : memref<1x128xf32, #tpu.memory_space<vmem>>, vector<1x128xf32>
      tpu.vector_store %arg10[%c0_122, %c0_123], %321 {strides = array<i32>} : memref<1x128xf32, #tpu.memory_space<vmem>>, vector<1x128xf32>,
    } else {
    }
    %c0_81 = arith.constant 0 : index
    %c0_82 = arith.constant 0 : index
    %273 = vector.load %arg10[%c0_81, %c0_82] : memref<1x128xf32, #tpu.memory_space<vmem>>, vector<1x128xf32>
    %274 = arith.addf %273, %266 : vector<1x128xf32>
    %c0_83 = arith.constant 0 : index
    %c0_84 = arith.constant 0 : index
    %275 = vector.load %arg10[%c0_83, %c0_84] : memref<1x128xf32, #tpu.memory_space<vmem>>, vector<1x128xf32>
    tpu.vector_store %arg10[%c0_83, %c0_84], %274 {strides = array<i32>} : memref<1x128xf32, #tpu.memory_space<vmem>>, vector<1x128xf32>,
    %c0_85 = arith.constant 0 : index
    %c0_86 = arith.constant 0 : index
    %276 = vector.load %arg9[%c0_85, %c0_86] : memref<8x1024xf32, #tpu.memory_space<vmem>>, vector<8x128xf32>
    %277 = vector.broadcast %266 : vector<1x128xf32> to vector<8x128xf32>
    %278 = arith.mulf %21, %277 : vector<8x128xf32>
    %279 = arith.addf %276, %278 : vector<8x128xf32>
    %c0_87 = arith.constant 0 : index
    %c0_88 = arith.constant 0 : index
    %280 = vector.load %arg9[%c0_87, %c0_88] : memref<8x1024xf32, #tpu.memory_space<vmem>>, vector<8x128xf32>
    tpu.vector_store %arg9[%c0_87, %c0_88], %279 {strides = array<i32>} : memref<8x1024xf32, #tpu.memory_space<vmem>>, vector<8x128xf32>,
    %c0_89 = arith.constant 0 : index
    %c128_90 = arith.constant 128 : index
    %281 = vector.load %arg9[%c0_89, %c128_90] : memref<8x1024xf32, #tpu.memory_space<vmem>>, vector<8x128xf32>
    %282 = vector.broadcast %266 : vector<1x128xf32> to vector<8x128xf32>
    %283 = arith.mulf %52, %282 : vector<8x128xf32>
    %284 = arith.addf %281, %283 : vector<8x128xf32>
    %c0_91 = arith.constant 0 : index
    %c128_92 = arith.constant 128 : index
    %285 = vector.load %arg9[%c0_91, %c128_92] : memref<8x1024xf32, #tpu.memory_space<vmem>>, vector<8x128xf32>
    tpu.vector_store %arg9[%c0_91, %c128_92], %284 {strides = array<i32>} : memref<8x1024xf32, #tpu.memory_space<vmem>>, vector<8x128xf32>,
    %c0_93 = arith.constant 0 : index
    %c256_94 = arith.constant 256 : index
    %286 = vector.load %arg9[%c0_93, %c256_94] : memref<8x1024xf32, #tpu.memory_space<vmem>>, vector<8x128xf32>
    %287 = vector.broadcast %266 : vector<1x128xf32> to vector<8x128xf32>
    %288 = arith.mulf %84, %287 : vector<8x128xf32>
    %289 = arith.addf %286, %288 : vector<8x128xf32>
    %c0_95 = arith.constant 0 : index
    %c256_96 = arith.constant 256 : index
    %290 = vector.load %arg9[%c0_95, %c256_96] : memref<8x1024xf32, #tpu.memory_space<vmem>>, vector<8x128xf32>
    tpu.vector_store %arg9[%c0_95, %c256_96], %289 {strides = array<i32>} : memref<8x1024xf32, #tpu.memory_space<vmem>>, vector<8x128xf32>,
    %c0_97 = arith.constant 0 : index
    %c384_98 = arith.constant 384 : index
    %291 = vector.load %arg9[%c0_97, %c384_98] : memref<8x1024xf32, #tpu.memory_space<vmem>>, vector<8x128xf32>
    %292 = vector.broadcast %266 : vector<1x128xf32> to vector<8x128xf32>
    %293 = arith.mulf %116, %292 : vector<8x128xf32>
    %294 = arith.addf %291, %293 : vector<8x128xf32>
    %c0_99 = arith.constant 0 : index
    %c384_100 = arith.constant 384 : index
    %295 = vector.load %arg9[%c0_99, %c384_100] : memref<8x1024xf32, #tpu.memory_space<vmem>>, vector<8x128xf32>
    tpu.vector_store %arg9[%c0_99, %c384_100], %294 {strides = array<i32>} : memref<8x1024xf32, #tpu.memory_space<vmem>>, vector<8x128xf32>,
    %c0_101 = arith.constant 0 : index
    %c512_102 = arith.constant 512 : index
    %296 = vector.load %arg9[%c0_101, %c512_102] : memref<8x1024xf32, #tpu.memory_space<vmem>>, vector<8x128xf32>
    %297 = vector.broadcast %266 : vector<1x128xf32> to vector<8x128xf32>
    %298 = arith.mulf %148, %297 : vector<8x128xf32>
    %299 = arith.addf %296, %298 : vector<8x128xf32>
    %c0_103 = arith.constant 0 : index
    %c512_104 = arith.constant 512 : index
    %300 = vector.load %arg9[%c0_103, %c512_104] : memref<8x1024xf32, #tpu.memory_space<vmem>>, vector<8x128xf32>
    tpu.vector_store %arg9[%c0_103, %c512_104], %299 {strides = array<i32>} : memref<8x1024xf32, #tpu.memory_space<vmem>>, vector<8x128xf32>,
    %c0_105 = arith.constant 0 : index
    %c640_106 = arith.constant 640 : index
    %301 = vector.load %arg9[%c0_105, %c640_106] : memref<8x1024xf32, #tpu.memory_space<vmem>>, vector<8x128xf32>
    %302 = vector.broadcast %266 : vector<1x128xf32> to vector<8x128xf32>
    %303 = arith.mulf %180, %302 : vector<8x128xf32>
    %304 = arith.addf %301, %303 : vector<8x128xf32>
    %c0_107 = arith.constant 0 : index
    %c640_108 = arith.constant 640 : index
    %305 = vector.load %arg9[%c0_107, %c640_108] : memref<8x1024xf32, #tpu.memory_space<vmem>>, vector<8x128xf32>
    tpu.vector_store %arg9[%c0_107, %c640_108], %304 {strides = array<i32>} : memref<8x1024xf32, #tpu.memory_space<vmem>>, vector<8x128xf32>,
    %c0_109 = arith.constant 0 : index
    %c768_110 = arith.constant 768 : index
    %306 = vector.load %arg9[%c0_109, %c768_110] : memref<8x1024xf32, #tpu.memory_space<vmem>>, vector<8x128xf32>
    %307 = vector.broadcast %266 : vector<1x128xf32> to vector<8x128xf32>
    %308 = arith.mulf %212, %307 : vector<8x128xf32>
    %309 = arith.addf %306, %308 : vector<8x128xf32>
    %c0_111 = arith.constant 0 : index
    %c768_112 = arith.constant 768 : index
    %310 = vector.load %arg9[%c0_111, %c768_112] : memref<8x1024xf32, #tpu.memory_space<vmem>>, vector<8x128xf32>
    tpu.vector_store %arg9[%c0_111, %c768_112], %309 {strides = array<i32>} : memref<8x1024xf32, #tpu.memory_space<vmem>>, vector<8x128xf32>,
    %c0_113 = arith.constant 0 : index
    %c896_114 = arith.constant 896 : index
    %311 = vector.load %arg9[%c0_113, %c896_114] : memref<8x1024xf32, #tpu.memory_space<vmem>>, vector<8x128xf32>
    %312 = vector.broadcast %266 : vector<1x128xf32> to vector<8x128xf32>
    %313 = arith.mulf %244, %312 : vector<8x128xf32>
    %314 = arith.addf %311, %313 : vector<8x128xf32>
    %c0_115 = arith.constant 0 : index
    %c896_116 = arith.constant 896 : index
    %315 = vector.load %arg9[%c0_115, %c896_116] : memref<8x1024xf32, #tpu.memory_space<vmem>>, vector<8x128xf32>
    tpu.vector_store %arg9[%c0_115, %c896_116], %314 {strides = array<i32>} : memref<8x1024xf32, #tpu.memory_space<vmem>>, vector<8x128xf32>,
    %c1_i32 = arith.constant 1 : i32
    %316 = arith.cmpi eq, %arg2, %c1_i32 : i32
    %317 = arith.extui %316 : i1 to i32
    %c0_i32_117 = arith.constant 0 : i32
    %318 = arith.cmpi ne, %317, %c0_i32_117 : i32
    scf.if %318 {
      %c0_118 = arith.constant 0 : index
      %c0_119 = arith.constant 0 : index
      %319 = vector.load %arg6[%c0_118, %c0_119] : memref<32x32xf32, #tpu.memory_space<vmem>>, vector<32x32xf32>
      %320 = vector.extract_strided_slice %319 {offsets = [0, 0], sizes = [16, 8], strides = [1, 1]} : vector<32x32xf32> to vector<16x8xf32>
      %321 = arith.truncf %320 : vector<16x8xf32> to vector<16x8xbf16>
      %322 = vector.extract_strided_slice %319 {offsets = [0, 8], sizes = [16, 1], strides = [1, 1]} : vector<32x32xf32> to vector<16x1xf32>
      %323 = vector.extract_strided_slice %319 {offsets = [16, 0], sizes = [8, 16], strides = [1, 1]} : vector<32x32xf32> to vector<8x16xf32>
      %324 = arith.truncf %323 : vector<8x16xf32> to vector<8x16xbf16>
      %325 = vector.extract_strided_slice %319 {offsets = [16, 16], sizes = [8, 1], strides = [1, 1]} : vector<32x32xf32> to vector<8x1xf32>
      %326 = vector.extract_strided_slice %319 {offsets = [24, 0], sizes = [1, 8], strides = [1, 1]} : vector<32x32xf32> to vector<1x8xf32>
      %327 = arith.truncf %326 : vector<1x8xf32> to vector<1x8xbf16>
      %328 = vector.extract_strided_slice %319 {offsets = [24, 8], sizes = [1, 1], strides = [1, 1]} : vector<32x32xf32> to vector<1x1xf32>
      %c0_120 = arith.constant 0 : index
      %c0_121 = arith.constant 0 : index
      %329 = vector.load %arg10[%c0_120, %c0_121] : memref<1x128xf32, #tpu.memory_space<vmem>>, vector<1x128xf32>
      %330 = tpu.reciprocal %329 {approx = true} : vector<1x128xf32> -> vector<1x128xf32>
      %c0_122 = arith.constant 0 : index
      %c0_123 = arith.constant 0 : index
      %331 = vector.load %arg9[%c0_122, %c0_123] : memref<8x1024xf32, #tpu.memory_space<vmem>>, vector<8x128xf32>
      %332 = vector.broadcast %330 : vector<1x128xf32> to vector<8x128xf32>
      %333 = arith.mulf %331, %332 : vector<8x128xf32>
      %334 = arith.truncf %333 : vector<8x128xf32> to vector<8x128xbf16>
      %cst_124 = arith.constant dense<0.000000e+00> : vector<16x128xf32>
      %335 = tpu.matmul %321, %334, %cst_124 {dimension_numbers = #tpu.dot_dimension_numbers<[1], [0], [0], [1], [0, 0, 1, 1], [], []>} : vector<16x8xbf16>, vector<8x128xbf16>, vector<16x128xf32> -> vector<16x128xf32>
      %336 = vector.broadcast %322 : vector<16x1xf32> to vector<16x128xf32>
      %337 = arith.addf %335, %336 : vector<16x128xf32>
      %cst_125 = arith.constant 0.000000e+00 : f32
      %338 = vector.broadcast %cst_125 : f32 to vector<16x128xf32>
      %339 = arith.maximumf %337, %338 : vector<16x128xf32>
      %340 = arith.truncf %339 : vector<16x128xf32> to vector<16x128xbf16>
      %cst_126 = arith.constant dense<0.000000e+00> : vector<8x128xf32>
      %341 = tpu.matmul %324, %340, %cst_126 {dimension_numbers = #tpu.dot_dimension_numbers<[1], [0], [0], [1], [0, 0, 1, 1], [], []>} : vector<8x16xbf16>, vector<16x128xbf16>, vector<8x128xf32> -> vector<8x128xf32>
      %342 = vector.broadcast %325 : vector<8x1xf32> to vector<8x128xf32>
      %343 = arith.addf %341, %342 : vector<8x128xf32>
      %cst_127 = arith.constant 0.000000e+00 : f32
      %344 = vector.broadcast %cst_127 : f32 to vector<8x128xf32>
      %345 = arith.maximumf %343, %344 : vector<8x128xf32>
      %346 = arith.truncf %345 : vector<8x128xf32> to vector<8x128xbf16>
      %cst_128 = arith.constant dense<0.000000e+00> : vector<1x128xf32>
      %347 = tpu.matmul %327, %346, %cst_128 {dimension_numbers = #tpu.dot_dimension_numbers<[1], [0], [0], [1], [0, 0, 1, 1], [], []>} : vector<1x8xbf16>, vector<8x128xbf16>, vector<1x128xf32> -> vector<1x128xf32>
      %348 = vector.broadcast %328 : vector<1x1xf32> to vector<1x128xf32>
      %349 = arith.addf %347, %348 : vector<1x128xf32>
      %c0_129 = arith.constant 0 : index
      %c0_130 = arith.constant 0 : index
      %c0_131 = arith.constant 0 : index
      %350 = vector.load %arg8[%c0_129, %c0_130, %c0_131] : memref<1x8x128xf32, #tpu.memory_space<vmem>>, vector<1x1x128xf32>
      %351 = vector.shape_cast %350 : vector<1x1x128xf32> to vector<1x128xf32>
      %352 = vector.shape_cast %349 : vector<1x128xf32> to vector<1x1x128xf32>
      tpu.vector_store %arg8[%c0_129, %c0_130, %c0_131], %352 {strides = array<i32>} : memref<1x8x128xf32, #tpu.memory_space<vmem>>, vector<1x1x128xf32>,
      %c0_132 = arith.constant 0 : index
      %c128_133 = arith.constant 128 : index
      %353 = vector.load %arg9[%c0_132, %c128_133] : memref<8x1024xf32, #tpu.memory_space<vmem>>, vector<8x128xf32>
      %354 = vector.broadcast %330 : vector<1x128xf32> to vector<8x128xf32>
      %355 = arith.mulf %353, %354 : vector<8x128xf32>
      %356 = arith.truncf %355 : vector<8x128xf32> to vector<8x128xbf16>
      %cst_134 = arith.constant dense<0.000000e+00> : vector<16x128xf32>
      %357 = tpu.matmul %321, %356, %cst_134 {dimension_numbers = #tpu.dot_dimension_numbers<[1], [0], [0], [1], [0, 0, 1, 1], [], []>} : vector<16x8xbf16>, vector<8x128xbf16>, vector<16x128xf32> -> vector<16x128xf32>
      %358 = vector.broadcast %322 : vector<16x1xf32> to vector<16x128xf32>
      %359 = arith.addf %357, %358 : vector<16x128xf32>
      %cst_135 = arith.constant 0.000000e+00 : f32
      %360 = vector.broadcast %cst_135 : f32 to vector<16x128xf32>
      %361 = arith.maximumf %359, %360 : vector<16x128xf32>
      %362 = arith.truncf %361 : vector<16x128xf32> to vector<16x128xbf16>
      %cst_136 = arith.constant dense<0.000000e+00> : vector<8x128xf32>
      %363 = tpu.matmul %324, %362, %cst_136 {dimension_numbers = #tpu.dot_dimension_numbers<[1], [0], [0], [1], [0, 0, 1, 1], [], []>} : vector<8x16xbf16>, vector<16x128xbf16>, vector<8x128xf32> -> vector<8x128xf32>
      %364 = vector.broadcast %325 : vector<8x1xf32> to vector<8x128xf32>
      %365 = arith.addf %363, %364 : vector<8x128xf32>
      %cst_137 = arith.constant 0.000000e+00 : f32
      %366 = vector.broadcast %cst_137 : f32 to vector<8x128xf32>
      %367 = arith.maximumf %365, %366 : vector<8x128xf32>
      %368 = arith.truncf %367 : vector<8x128xf32> to vector<8x128xbf16>
      %cst_138 = arith.constant dense<0.000000e+00> : vector<1x128xf32>
      %369 = tpu.matmul %327, %368, %cst_138 {dimension_numbers = #tpu.dot_dimension_numbers<[1], [0], [0], [1], [0, 0, 1, 1], [], []>} : vector<1x8xbf16>, vector<8x128xbf16>, vector<1x128xf32> -> vector<1x128xf32>
      %370 = vector.broadcast %328 : vector<1x1xf32> to vector<1x128xf32>
      %371 = arith.addf %369, %370 : vector<1x128xf32>
      %c0_139 = arith.constant 0 : index
      %c1 = arith.constant 1 : index
      %c0_140 = arith.constant 0 : index
      %372 = vector.load %arg8[%c0_139, %c1, %c0_140] : memref<1x8x128xf32, #tpu.memory_space<vmem>>, vector<1x1x128xf32>
      %373 = vector.shape_cast %372 : vector<1x1x128xf32> to vector<1x128xf32>
      %374 = vector.shape_cast %371 : vector<1x128xf32> to vector<1x1x128xf32>
      tpu.vector_store %arg8[%c0_139, %c1, %c0_140], %374 {strides = array<i32>} : memref<1x8x128xf32, #tpu.memory_space<vmem>>, vector<1x1x128xf32>,
      %c0_141 = arith.constant 0 : index
      %c256_142 = arith.constant 256 : index
      %375 = vector.load %arg9[%c0_141, %c256_142] : memref<8x1024xf32, #tpu.memory_space<vmem>>, vector<8x128xf32>
      %376 = vector.broadcast %330 : vector<1x128xf32> to vector<8x128xf32>
      %377 = arith.mulf %375, %376 : vector<8x128xf32>
      %378 = arith.truncf %377 : vector<8x128xf32> to vector<8x128xbf16>
      %cst_143 = arith.constant dense<0.000000e+00> : vector<16x128xf32>
      %379 = tpu.matmul %321, %378, %cst_143 {dimension_numbers = #tpu.dot_dimension_numbers<[1], [0], [0], [1], [0, 0, 1, 1], [], []>} : vector<16x8xbf16>, vector<8x128xbf16>, vector<16x128xf32> -> vector<16x128xf32>
      %380 = vector.broadcast %322 : vector<16x1xf32> to vector<16x128xf32>
      %381 = arith.addf %379, %380 : vector<16x128xf32>
      %cst_144 = arith.constant 0.000000e+00 : f32
      %382 = vector.broadcast %cst_144 : f32 to vector<16x128xf32>
      %383 = arith.maximumf %381, %382 : vector<16x128xf32>
      %384 = arith.truncf %383 : vector<16x128xf32> to vector<16x128xbf16>
      %cst_145 = arith.constant dense<0.000000e+00> : vector<8x128xf32>
      %385 = tpu.matmul %324, %384, %cst_145 {dimension_numbers = #tpu.dot_dimension_numbers<[1], [0], [0], [1], [0, 0, 1, 1], [], []>} : vector<8x16xbf16>, vector<16x128xbf16>, vector<8x128xf32> -> vector<8x128xf32>
      %386 = vector.broadcast %325 : vector<8x1xf32> to vector<8x128xf32>
      %387 = arith.addf %385, %386 : vector<8x128xf32>
      %cst_146 = arith.constant 0.000000e+00 : f32
      %388 = vector.broadcast %cst_146 : f32 to vector<8x128xf32>
      %389 = arith.maximumf %387, %388 : vector<8x128xf32>
      %390 = arith.truncf %389 : vector<8x128xf32> to vector<8x128xbf16>
      %cst_147 = arith.constant dense<0.000000e+00> : vector<1x128xf32>
      %391 = tpu.matmul %327, %390, %cst_147 {dimension_numbers = #tpu.dot_dimension_numbers<[1], [0], [0], [1], [0, 0, 1, 1], [], []>} : vector<1x8xbf16>, vector<8x128xbf16>, vector<1x128xf32> -> vector<1x128xf32>
      %392 = vector.broadcast %328 : vector<1x1xf32> to vector<1x128xf32>
      %393 = arith.addf %391, %392 : vector<1x128xf32>
      %c0_148 = arith.constant 0 : index
      %c2 = arith.constant 2 : index
      %c0_149 = arith.constant 0 : index
      %394 = vector.load %arg8[%c0_148, %c2, %c0_149] : memref<1x8x128xf32, #tpu.memory_space<vmem>>, vector<1x1x128xf32>
      %395 = vector.shape_cast %394 : vector<1x1x128xf32> to vector<1x128xf32>
      %396 = vector.shape_cast %393 : vector<1x128xf32> to vector<1x1x128xf32>
      tpu.vector_store %arg8[%c0_148, %c2, %c0_149], %396 {strides = array<i32>} : memref<1x8x128xf32, #tpu.memory_space<vmem>>, vector<1x1x128xf32>,
      %c0_150 = arith.constant 0 : index
      %c384_151 = arith.constant 384 : index
      %397 = vector.load %arg9[%c0_150, %c384_151] : memref<8x1024xf32, #tpu.memory_space<vmem>>, vector<8x128xf32>
      %398 = vector.broadcast %330 : vector<1x128xf32> to vector<8x128xf32>
      %399 = arith.mulf %397, %398 : vector<8x128xf32>
      %400 = arith.truncf %399 : vector<8x128xf32> to vector<8x128xbf16>
      %cst_152 = arith.constant dense<0.000000e+00> : vector<16x128xf32>
      %401 = tpu.matmul %321, %400, %cst_152 {dimension_numbers = #tpu.dot_dimension_numbers<[1], [0], [0], [1], [0, 0, 1, 1], [], []>} : vector<16x8xbf16>, vector<8x128xbf16>, vector<16x128xf32> -> vector<16x128xf32>
      %402 = vector.broadcast %322 : vector<16x1xf32> to vector<16x128xf32>
      %403 = arith.addf %401, %402 : vector<16x128xf32>
      %cst_153 = arith.constant 0.000000e+00 : f32
      %404 = vector.broadcast %cst_153 : f32 to vector<16x128xf32>
      %405 = arith.maximumf %403, %404 : vector<16x128xf32>
      %406 = arith.truncf %405 : vector<16x128xf32> to vector<16x128xbf16>
      %cst_154 = arith.constant dense<0.000000e+00> : vector<8x128xf32>
      %407 = tpu.matmul %324, %406, %cst_154 {dimension_numbers = #tpu.dot_dimension_numbers<[1], [0], [0], [1], [0, 0, 1, 1], [], []>} : vector<8x16xbf16>, vector<16x128xbf16>, vector<8x128xf32> -> vector<8x128xf32>
      %408 = vector.broadcast %325 : vector<8x1xf32> to vector<8x128xf32>
      %409 = arith.addf %407, %408 : vector<8x128xf32>
      %cst_155 = arith.constant 0.000000e+00 : f32
      %410 = vector.broadcast %cst_155 : f32 to vector<8x128xf32>
      %411 = arith.maximumf %409, %410 : vector<8x128xf32>
      %412 = arith.truncf %411 : vector<8x128xf32> to vector<8x128xbf16>
      %cst_156 = arith.constant dense<0.000000e+00> : vector<1x128xf32>
      %413 = tpu.matmul %327, %412, %cst_156 {dimension_numbers = #tpu.dot_dimension_numbers<[1], [0], [0], [1], [0, 0, 1, 1], [], []>} : vector<1x8xbf16>, vector<8x128xbf16>, vector<1x128xf32> -> vector<1x128xf32>
      %414 = vector.broadcast %328 : vector<1x1xf32> to vector<1x128xf32>
      %415 = arith.addf %413, %414 : vector<1x128xf32>
      %c0_157 = arith.constant 0 : index
      %c3 = arith.constant 3 : index
      %c0_158 = arith.constant 0 : index
      %416 = vector.load %arg8[%c0_157, %c3, %c0_158] : memref<1x8x128xf32, #tpu.memory_space<vmem>>, vector<1x1x128xf32>
      %417 = vector.shape_cast %416 : vector<1x1x128xf32> to vector<1x128xf32>
      %418 = vector.shape_cast %415 : vector<1x128xf32> to vector<1x1x128xf32>
      tpu.vector_store %arg8[%c0_157, %c3, %c0_158], %418 {strides = array<i32>} : memref<1x8x128xf32, #tpu.memory_space<vmem>>, vector<1x1x128xf32>,
      %c0_159 = arith.constant 0 : index
      %c512_160 = arith.constant 512 : index
      %419 = vector.load %arg9[%c0_159, %c512_160] : memref<8x1024xf32, #tpu.memory_space<vmem>>, vector<8x128xf32>
      %420 = vector.broadcast %330 : vector<1x128xf32> to vector<8x128xf32>
      %421 = arith.mulf %419, %420 : vector<8x128xf32>
      %422 = arith.truncf %421 : vector<8x128xf32> to vector<8x128xbf16>
      %cst_161 = arith.constant dense<0.000000e+00> : vector<16x128xf32>
      %423 = tpu.matmul %321, %422, %cst_161 {dimension_numbers = #tpu.dot_dimension_numbers<[1], [0], [0], [1], [0, 0, 1, 1], [], []>} : vector<16x8xbf16>, vector<8x128xbf16>, vector<16x128xf32> -> vector<16x128xf32>
      %424 = vector.broadcast %322 : vector<16x1xf32> to vector<16x128xf32>
      %425 = arith.addf %423, %424 : vector<16x128xf32>
      %cst_162 = arith.constant 0.000000e+00 : f32
      %426 = vector.broadcast %cst_162 : f32 to vector<16x128xf32>
      %427 = arith.maximumf %425, %426 : vector<16x128xf32>
      %428 = arith.truncf %427 : vector<16x128xf32> to vector<16x128xbf16>
      %cst_163 = arith.constant dense<0.000000e+00> : vector<8x128xf32>
      %429 = tpu.matmul %324, %428, %cst_163 {dimension_numbers = #tpu.dot_dimension_numbers<[1], [0], [0], [1], [0, 0, 1, 1], [], []>} : vector<8x16xbf16>, vector<16x128xbf16>, vector<8x128xf32> -> vector<8x128xf32>
      %430 = vector.broadcast %325 : vector<8x1xf32> to vector<8x128xf32>
      %431 = arith.addf %429, %430 : vector<8x128xf32>
      %cst_164 = arith.constant 0.000000e+00 : f32
      %432 = vector.broadcast %cst_164 : f32 to vector<8x128xf32>
      %433 = arith.maximumf %431, %432 : vector<8x128xf32>
      %434 = arith.truncf %433 : vector<8x128xf32> to vector<8x128xbf16>
      %cst_165 = arith.constant dense<0.000000e+00> : vector<1x128xf32>
      %435 = tpu.matmul %327, %434, %cst_165 {dimension_numbers = #tpu.dot_dimension_numbers<[1], [0], [0], [1], [0, 0, 1, 1], [], []>} : vector<1x8xbf16>, vector<8x128xbf16>, vector<1x128xf32> -> vector<1x128xf32>
      %436 = vector.broadcast %328 : vector<1x1xf32> to vector<1x128xf32>
      %437 = arith.addf %435, %436 : vector<1x128xf32>
      %c0_166 = arith.constant 0 : index
      %c4 = arith.constant 4 : index
      %c0_167 = arith.constant 0 : index
      %438 = vector.load %arg8[%c0_166, %c4, %c0_167] : memref<1x8x128xf32, #tpu.memory_space<vmem>>, vector<1x1x128xf32>
      %439 = vector.shape_cast %438 : vector<1x1x128xf32> to vector<1x128xf32>
      %440 = vector.shape_cast %437 : vector<1x128xf32> to vector<1x1x128xf32>
      tpu.vector_store %arg8[%c0_166, %c4, %c0_167], %440 {strides = array<i32>} : memref<1x8x128xf32, #tpu.memory_space<vmem>>, vector<1x1x128xf32>,
      %c0_168 = arith.constant 0 : index
      %c640_169 = arith.constant 640 : index
      %441 = vector.load %arg9[%c0_168, %c640_169] : memref<8x1024xf32, #tpu.memory_space<vmem>>, vector<8x128xf32>
      %442 = vector.broadcast %330 : vector<1x128xf32> to vector<8x128xf32>
      %443 = arith.mulf %441, %442 : vector<8x128xf32>
      %444 = arith.truncf %443 : vector<8x128xf32> to vector<8x128xbf16>
      %cst_170 = arith.constant dense<0.000000e+00> : vector<16x128xf32>
      %445 = tpu.matmul %321, %444, %cst_170 {dimension_numbers = #tpu.dot_dimension_numbers<[1], [0], [0], [1], [0, 0, 1, 1], [], []>} : vector<16x8xbf16>, vector<8x128xbf16>, vector<16x128xf32> -> vector<16x128xf32>
      %446 = vector.broadcast %322 : vector<16x1xf32> to vector<16x128xf32>
      %447 = arith.addf %445, %446 : vector<16x128xf32>
      %cst_171 = arith.constant 0.000000e+00 : f32
      %448 = vector.broadcast %cst_171 : f32 to vector<16x128xf32>
      %449 = arith.maximumf %447, %448 : vector<16x128xf32>
      %450 = arith.truncf %449 : vector<16x128xf32> to vector<16x128xbf16>
      %cst_172 = arith.constant dense<0.000000e+00> : vector<8x128xf32>
      %451 = tpu.matmul %324, %450, %cst_172 {dimension_numbers = #tpu.dot_dimension_numbers<[1], [0], [0], [1], [0, 0, 1, 1], [], []>} : vector<8x16xbf16>, vector<16x128xbf16>, vector<8x128xf32> -> vector<8x128xf32>
      %452 = vector.broadcast %325 : vector<8x1xf32> to vector<8x128xf32>
      %453 = arith.addf %451, %452 : vector<8x128xf32>
      %cst_173 = arith.constant 0.000000e+00 : f32
      %454 = vector.broadcast %cst_173 : f32 to vector<8x128xf32>
      %455 = arith.maximumf %453, %454 : vector<8x128xf32>
      %456 = arith.truncf %455 : vector<8x128xf32> to vector<8x128xbf16>
      %cst_174 = arith.constant dense<0.000000e+00> : vector<1x128xf32>
      %457 = tpu.matmul %327, %456, %cst_174 {dimension_numbers = #tpu.dot_dimension_numbers<[1], [0], [0], [1], [0, 0, 1, 1], [], []>} : vector<1x8xbf16>, vector<8x128xbf16>, vector<1x128xf32> -> vector<1x128xf32>
      %458 = vector.broadcast %328 : vector<1x1xf32> to vector<1x128xf32>
      %459 = arith.addf %457, %458 : vector<1x128xf32>
      %c0_175 = arith.constant 0 : index
      %c5 = arith.constant 5 : index
      %c0_176 = arith.constant 0 : index
      %460 = vector.load %arg8[%c0_175, %c5, %c0_176] : memref<1x8x128xf32, #tpu.memory_space<vmem>>, vector<1x1x128xf32>
      %461 = vector.shape_cast %460 : vector<1x1x128xf32> to vector<1x128xf32>
      %462 = vector.shape_cast %459 : vector<1x128xf32> to vector<1x1x128xf32>
      tpu.vector_store %arg8[%c0_175, %c5, %c0_176], %462 {strides = array<i32>} : memref<1x8x128xf32, #tpu.memory_space<vmem>>, vector<1x1x128xf32>,
      %c0_177 = arith.constant 0 : index
      %c768_178 = arith.constant 768 : index
      %463 = vector.load %arg9[%c0_177, %c768_178] : memref<8x1024xf32, #tpu.memory_space<vmem>>, vector<8x128xf32>
      %464 = vector.broadcast %330 : vector<1x128xf32> to vector<8x128xf32>
      %465 = arith.mulf %463, %464 : vector<8x128xf32>
      %466 = arith.truncf %465 : vector<8x128xf32> to vector<8x128xbf16>
      %cst_179 = arith.constant dense<0.000000e+00> : vector<16x128xf32>
      %467 = tpu.matmul %321, %466, %cst_179 {dimension_numbers = #tpu.dot_dimension_numbers<[1], [0], [0], [1], [0, 0, 1, 1], [], []>} : vector<16x8xbf16>, vector<8x128xbf16>, vector<16x128xf32> -> vector<16x128xf32>
      %468 = vector.broadcast %322 : vector<16x1xf32> to vector<16x128xf32>
      %469 = arith.addf %467, %468 : vector<16x128xf32>
      %cst_180 = arith.constant 0.000000e+00 : f32
      %470 = vector.broadcast %cst_180 : f32 to vector<16x128xf32>
      %471 = arith.maximumf %469, %470 : vector<16x128xf32>
      %472 = arith.truncf %471 : vector<16x128xf32> to vector<16x128xbf16>
      %cst_181 = arith.constant dense<0.000000e+00> : vector<8x128xf32>
      %473 = tpu.matmul %324, %472, %cst_181 {dimension_numbers = #tpu.dot_dimension_numbers<[1], [0], [0], [1], [0, 0, 1, 1], [], []>} : vector<8x16xbf16>, vector<16x128xbf16>, vector<8x128xf32> -> vector<8x128xf32>
      %474 = vector.broadcast %325 : vector<8x1xf32> to vector<8x128xf32>
      %475 = arith.addf %473, %474 : vector<8x128xf32>
      %cst_182 = arith.constant 0.000000e+00 : f32
      %476 = vector.broadcast %cst_182 : f32 to vector<8x128xf32>
      %477 = arith.maximumf %475, %476 : vector<8x128xf32>
      %478 = arith.truncf %477 : vector<8x128xf32> to vector<8x128xbf16>
      %cst_183 = arith.constant dense<0.000000e+00> : vector<1x128xf32>
      %479 = tpu.matmul %327, %478, %cst_183 {dimension_numbers = #tpu.dot_dimension_numbers<[1], [0], [0], [1], [0, 0, 1, 1], [], []>} : vector<1x8xbf16>, vector<8x128xbf16>, vector<1x128xf32> -> vector<1x128xf32>
      %480 = vector.broadcast %328 : vector<1x1xf32> to vector<1x128xf32>
      %481 = arith.addf %479, %480 : vector<1x128xf32>
      %c0_184 = arith.constant 0 : index
      %c6 = arith.constant 6 : index
      %c0_185 = arith.constant 0 : index
      %482 = vector.load %arg8[%c0_184, %c6, %c0_185] : memref<1x8x128xf32, #tpu.memory_space<vmem>>, vector<1x1x128xf32>
      %483 = vector.shape_cast %482 : vector<1x1x128xf32> to vector<1x128xf32>
      %484 = vector.shape_cast %481 : vector<1x128xf32> to vector<1x1x128xf32>
      tpu.vector_store %arg8[%c0_184, %c6, %c0_185], %484 {strides = array<i32>} : memref<1x8x128xf32, #tpu.memory_space<vmem>>, vector<1x1x128xf32>,
      %c0_186 = arith.constant 0 : index
      %c896_187 = arith.constant 896 : index
      %485 = vector.load %arg9[%c0_186, %c896_187] : memref<8x1024xf32, #tpu.memory_space<vmem>>, vector<8x128xf32>
      %486 = vector.broadcast %330 : vector<1x128xf32> to vector<8x128xf32>
      %487 = arith.mulf %485, %486 : vector<8x128xf32>
      %488 = arith.truncf %487 : vector<8x128xf32> to vector<8x128xbf16>
      %cst_188 = arith.constant dense<0.000000e+00> : vector<16x128xf32>
      %489 = tpu.matmul %321, %488, %cst_188 {dimension_numbers = #tpu.dot_dimension_numbers<[1], [0], [0], [1], [0, 0, 1, 1], [], []>} : vector<16x8xbf16>, vector<8x128xbf16>, vector<16x128xf32> -> vector<16x128xf32>
      %490 = vector.broadcast %322 : vector<16x1xf32> to vector<16x128xf32>
      %491 = arith.addf %489, %490 : vector<16x128xf32>
      %cst_189 = arith.constant 0.000000e+00 : f32
      %492 = vector.broadcast %cst_189 : f32 to vector<16x128xf32>
      %493 = arith.maximumf %491, %492 : vector<16x128xf32>
      %494 = arith.truncf %493 : vector<16x128xf32> to vector<16x128xbf16>
      %cst_190 = arith.constant dense<0.000000e+00> : vector<8x128xf32>
      %495 = tpu.matmul %324, %494, %cst_190 {dimension_numbers = #tpu.dot_dimension_numbers<[1], [0], [0], [1], [0, 0, 1, 1], [], []>} : vector<8x16xbf16>, vector<16x128xbf16>, vector<8x128xf32> -> vector<8x128xf32>
      %496 = vector.broadcast %325 : vector<8x1xf32> to vector<8x128xf32>
      %497 = arith.addf %495, %496 : vector<8x128xf32>
      %cst_191 = arith.constant 0.000000e+00 : f32
      %498 = vector.broadcast %cst_191 : f32 to vector<8x128xf32>
      %499 = arith.maximumf %497, %498 : vector<8x128xf32>
      %500 = arith.truncf %499 : vector<8x128xf32> to vector<8x128xbf16>
      %cst_192 = arith.constant dense<0.000000e+00> : vector<1x128xf32>
      %501 = tpu.matmul %327, %500, %cst_192 {dimension_numbers = #tpu.dot_dimension_numbers<[1], [0], [0], [1], [0, 0, 1, 1], [], []>} : vector<1x8xbf16>, vector<8x128xbf16>, vector<1x128xf32> -> vector<1x128xf32>
      %502 = vector.broadcast %328 : vector<1x1xf32> to vector<1x128xf32>
      %503 = arith.addf %501, %502 : vector<1x128xf32>
      %c0_193 = arith.constant 0 : index
      %c7 = arith.constant 7 : index
      %c0_194 = arith.constant 0 : index
      %504 = vector.load %arg8[%c0_193, %c7, %c0_194] : memref<1x8x128xf32, #tpu.memory_space<vmem>>, vector<1x1x128xf32>
      %505 = vector.shape_cast %504 : vector<1x1x128xf32> to vector<1x128xf32>
      %506 = vector.shape_cast %503 : vector<1x128xf32> to vector<1x1x128xf32>
      tpu.vector_store %arg8[%c0_193, %c7, %c0_194], %506 {strides = array<i32>} : memref<1x8x128xf32, #tpu.memory_space<vmem>>, vector<1x1x128xf32>,
    } else {
    }
    return
  }
  func.func @transform_0(%arg0: i32, %arg1: i32, %arg2: i32) -> (i32, i32, i32, i32) {
    %c0_i32 = arith.constant 0 : i32
    %c0_i32_0 = arith.constant 0 : i32
    return %arg2, %arg1, %c0_i32, %arg0 : i32, i32, i32, i32
  }
  func.func @transform_1(%arg0: i32, %arg1: i32, %arg2: i32) -> (i32, i32, i32) {
    %c0_i32 = arith.constant 0 : i32
    %c0_i32_0 = arith.constant 0 : i32
    return %arg1, %c0_i32, %arg0 : i32, i32, i32
  }
  func.func @transform_2(%arg0: i32, %arg1: i32, %arg2: i32) -> (i32, i32) {
    %c0_i32 = arith.constant 0 : i32
    %c0_i32_0 = arith.constant 0 : i32
    %c0_i32_1 = arith.constant 0 : i32
    return %c0_i32, %c0_i32_0 : i32, i32
  }
  func.func @transform_3(%arg0: i32, %arg1: i32, %arg2: i32) -> (i32, i32) {
    %c0_i32 = arith.constant 0 : i32
    %c0_i32_0 = arith.constant 0 : i32
    %c0_i32_1 = arith.constant 0 : i32
    return %c0_i32, %c0_i32_0 : i32, i32
  }
  func.func @transform_4(%arg0: i32, %arg1: i32, %arg2: i32) -> (i32, i32, i32, i32) {
    %c0_i32 = arith.constant 0 : i32
    %c0_i32_0 = arith.constant 0 : i32
    return %arg1, %arg2, %c0_i32, %arg0 : i32, i32, i32, i32
  }
  func.func @transform_5(%arg0: i32, %arg1: i32, %arg2: i32) -> (i32, i32, i32) {
    %c0_i32 = arith.constant 0 : i32
    %c0_i32_0 = arith.constant 0 : i32
    return %arg1, %c0_i32, %arg0 : i32, i32, i32
  }
}

module attributes {stable_mosaic.version = 11 : i64} {
  func.func @kernel(%arg0: i32, %arg1: i32, %arg2: memref<1x9x8x128xbf16, #tpu.memory_space<vmem>>, %arg3: memref<1x9x8x128xbf16, #tpu.memory_space<vmem>>, %arg4: memref<1x8x128xf32, #tpu.memory_space<vmem>>, %arg5: memref<1x8x128xf32, #tpu.memory_space<vmem>>, %arg6: memref<1x1x128xf32, #tpu.memory_space<vmem>>) attributes {dimension_semantics = [#tpu.dimension_semantics<parallel>, #tpu.dimension_semantics<parallel>], iteration_bounds = array<i64: 1, 2>, scalar_prefetch = 0 : i64, scratch_operands = 0 : i64, tpu.core_type = #tpu.core_type<tc>, window_params = [{transform_indices = @transform_0, window_bounds = array<i64: 1, 9, 8, 128>}, {transform_indices = @transform_1, window_bounds = array<i64: 1, 9, 8, 128>}, {transform_indices = @transform_2, window_bounds = array<i64: 1, 8, 128>}, {transform_indices = @transform_3, window_bounds = array<i64: 1, 8, 128>}, {transform_indices = @transform_4, window_bounds = array<i64: 1, 1, 128>}]} {
    %c0 = arith.constant 0 : index
    %c0_0 = arith.constant 0 : index
    %c0_1 = arith.constant 0 : index
    %c0_2 = arith.constant 0 : index
    %0 = vector.load %arg2[%c0, %c0_0, %c0_1, %c0_2] : memref<1x9x8x128xbf16, #tpu.memory_space<vmem>>, vector<1x1x8x128xbf16>
    %1 = vector.shape_cast %0 : vector<1x1x8x128xbf16> to vector<8x128xbf16>
    %2 = arith.extf %1 : vector<8x128xbf16> to vector<8x128xf32>
    %c0_3 = arith.constant 0 : index
    %c0_4 = arith.constant 0 : index
    %c0_5 = arith.constant 0 : index
    %c0_6 = arith.constant 0 : index
    %3 = vector.load %arg3[%c0_3, %c0_4, %c0_5, %c0_6] : memref<1x9x8x128xbf16, #tpu.memory_space<vmem>>, vector<1x1x8x128xbf16>
    %4 = vector.shape_cast %3 : vector<1x1x8x128xbf16> to vector<8x128xbf16>
    %5 = arith.extf %4 : vector<8x128xbf16> to vector<8x128xf32>
    %6 = arith.mulf %2, %5 : vector<8x128xf32>
    %c0_7 = arith.constant 0 : index
    %c1 = arith.constant 1 : index
    %c0_8 = arith.constant 0 : index
    %c0_9 = arith.constant 0 : index
    %7 = vector.load %arg2[%c0_7, %c1, %c0_8, %c0_9] : memref<1x9x8x128xbf16, #tpu.memory_space<vmem>>, vector<1x1x8x128xbf16>
    %8 = vector.shape_cast %7 : vector<1x1x8x128xbf16> to vector<8x128xbf16>
    %9 = arith.extf %8 : vector<8x128xbf16> to vector<8x128xf32>
    %c0_10 = arith.constant 0 : index
    %c1_11 = arith.constant 1 : index
    %c0_12 = arith.constant 0 : index
    %c0_13 = arith.constant 0 : index
    %10 = vector.load %arg3[%c0_10, %c1_11, %c0_12, %c0_13] : memref<1x9x8x128xbf16, #tpu.memory_space<vmem>>, vector<1x1x8x128xbf16>
    %11 = vector.shape_cast %10 : vector<1x1x8x128xbf16> to vector<8x128xbf16>
    %12 = arith.extf %11 : vector<8x128xbf16> to vector<8x128xf32>
    %13 = arith.mulf %9, %12 : vector<8x128xf32>
    %14 = arith.addf %6, %13 : vector<8x128xf32>
    %c0_14 = arith.constant 0 : index
    %c2 = arith.constant 2 : index
    %c0_15 = arith.constant 0 : index
    %c0_16 = arith.constant 0 : index
    %15 = vector.load %arg2[%c0_14, %c2, %c0_15, %c0_16] : memref<1x9x8x128xbf16, #tpu.memory_space<vmem>>, vector<1x1x8x128xbf16>
    %16 = vector.shape_cast %15 : vector<1x1x8x128xbf16> to vector<8x128xbf16>
    %17 = arith.extf %16 : vector<8x128xbf16> to vector<8x128xf32>
    %c0_17 = arith.constant 0 : index
    %c2_18 = arith.constant 2 : index
    %c0_19 = arith.constant 0 : index
    %c0_20 = arith.constant 0 : index
    %18 = vector.load %arg3[%c0_17, %c2_18, %c0_19, %c0_20] : memref<1x9x8x128xbf16, #tpu.memory_space<vmem>>, vector<1x1x8x128xbf16>
    %19 = vector.shape_cast %18 : vector<1x1x8x128xbf16> to vector<8x128xbf16>
    %20 = arith.extf %19 : vector<8x128xbf16> to vector<8x128xf32>
    %21 = arith.mulf %17, %20 : vector<8x128xf32>
    %22 = arith.addf %14, %21 : vector<8x128xf32>
    %c0_21 = arith.constant 0 : index
    %c3 = arith.constant 3 : index
    %c0_22 = arith.constant 0 : index
    %c0_23 = arith.constant 0 : index
    %23 = vector.load %arg2[%c0_21, %c3, %c0_22, %c0_23] : memref<1x9x8x128xbf16, #tpu.memory_space<vmem>>, vector<1x1x8x128xbf16>
    %24 = vector.shape_cast %23 : vector<1x1x8x128xbf16> to vector<8x128xbf16>
    %25 = arith.extf %24 : vector<8x128xbf16> to vector<8x128xf32>
    %c0_24 = arith.constant 0 : index
    %c3_25 = arith.constant 3 : index
    %c0_26 = arith.constant 0 : index
    %c0_27 = arith.constant 0 : index
    %26 = vector.load %arg3[%c0_24, %c3_25, %c0_26, %c0_27] : memref<1x9x8x128xbf16, #tpu.memory_space<vmem>>, vector<1x1x8x128xbf16>
    %27 = vector.shape_cast %26 : vector<1x1x8x128xbf16> to vector<8x128xbf16>
    %28 = arith.extf %27 : vector<8x128xbf16> to vector<8x128xf32>
    %29 = arith.mulf %25, %28 : vector<8x128xf32>
    %30 = arith.addf %22, %29 : vector<8x128xf32>
    %c0_28 = arith.constant 0 : index
    %c4 = arith.constant 4 : index
    %c0_29 = arith.constant 0 : index
    %c0_30 = arith.constant 0 : index
    %31 = vector.load %arg2[%c0_28, %c4, %c0_29, %c0_30] : memref<1x9x8x128xbf16, #tpu.memory_space<vmem>>, vector<1x1x8x128xbf16>
    %32 = vector.shape_cast %31 : vector<1x1x8x128xbf16> to vector<8x128xbf16>
    %33 = arith.extf %32 : vector<8x128xbf16> to vector<8x128xf32>
    %c0_31 = arith.constant 0 : index
    %c4_32 = arith.constant 4 : index
    %c0_33 = arith.constant 0 : index
    %c0_34 = arith.constant 0 : index
    %34 = vector.load %arg3[%c0_31, %c4_32, %c0_33, %c0_34] : memref<1x9x8x128xbf16, #tpu.memory_space<vmem>>, vector<1x1x8x128xbf16>
    %35 = vector.shape_cast %34 : vector<1x1x8x128xbf16> to vector<8x128xbf16>
    %36 = arith.extf %35 : vector<8x128xbf16> to vector<8x128xf32>
    %37 = arith.mulf %33, %36 : vector<8x128xf32>
    %38 = arith.addf %30, %37 : vector<8x128xf32>
    %c0_35 = arith.constant 0 : index
    %c5 = arith.constant 5 : index
    %c0_36 = arith.constant 0 : index
    %c0_37 = arith.constant 0 : index
    %39 = vector.load %arg2[%c0_35, %c5, %c0_36, %c0_37] : memref<1x9x8x128xbf16, #tpu.memory_space<vmem>>, vector<1x1x8x128xbf16>
    %40 = vector.shape_cast %39 : vector<1x1x8x128xbf16> to vector<8x128xbf16>
    %41 = arith.extf %40 : vector<8x128xbf16> to vector<8x128xf32>
    %c0_38 = arith.constant 0 : index
    %c5_39 = arith.constant 5 : index
    %c0_40 = arith.constant 0 : index
    %c0_41 = arith.constant 0 : index
    %42 = vector.load %arg3[%c0_38, %c5_39, %c0_40, %c0_41] : memref<1x9x8x128xbf16, #tpu.memory_space<vmem>>, vector<1x1x8x128xbf16>
    %43 = vector.shape_cast %42 : vector<1x1x8x128xbf16> to vector<8x128xbf16>
    %44 = arith.extf %43 : vector<8x128xbf16> to vector<8x128xf32>
    %45 = arith.mulf %41, %44 : vector<8x128xf32>
    %46 = arith.addf %38, %45 : vector<8x128xf32>
    %c0_42 = arith.constant 0 : index
    %c6 = arith.constant 6 : index
    %c0_43 = arith.constant 0 : index
    %c0_44 = arith.constant 0 : index
    %47 = vector.load %arg2[%c0_42, %c6, %c0_43, %c0_44] : memref<1x9x8x128xbf16, #tpu.memory_space<vmem>>, vector<1x1x8x128xbf16>
    %48 = vector.shape_cast %47 : vector<1x1x8x128xbf16> to vector<8x128xbf16>
    %49 = arith.extf %48 : vector<8x128xbf16> to vector<8x128xf32>
    %c0_45 = arith.constant 0 : index
    %c6_46 = arith.constant 6 : index
    %c0_47 = arith.constant 0 : index
    %c0_48 = arith.constant 0 : index
    %50 = vector.load %arg3[%c0_45, %c6_46, %c0_47, %c0_48] : memref<1x9x8x128xbf16, #tpu.memory_space<vmem>>, vector<1x1x8x128xbf16>
    %51 = vector.shape_cast %50 : vector<1x1x8x128xbf16> to vector<8x128xbf16>
    %52 = arith.extf %51 : vector<8x128xbf16> to vector<8x128xf32>
    %53 = arith.mulf %49, %52 : vector<8x128xf32>
    %54 = arith.addf %46, %53 : vector<8x128xf32>
    %c0_49 = arith.constant 0 : index
    %c7 = arith.constant 7 : index
    %c0_50 = arith.constant 0 : index
    %c0_51 = arith.constant 0 : index
    %55 = vector.load %arg2[%c0_49, %c7, %c0_50, %c0_51] : memref<1x9x8x128xbf16, #tpu.memory_space<vmem>>, vector<1x1x8x128xbf16>
    %56 = vector.shape_cast %55 : vector<1x1x8x128xbf16> to vector<8x128xbf16>
    %57 = arith.extf %56 : vector<8x128xbf16> to vector<8x128xf32>
    %c0_52 = arith.constant 0 : index
    %c7_53 = arith.constant 7 : index
    %c0_54 = arith.constant 0 : index
    %c0_55 = arith.constant 0 : index
    %58 = vector.load %arg3[%c0_52, %c7_53, %c0_54, %c0_55] : memref<1x9x8x128xbf16, #tpu.memory_space<vmem>>, vector<1x1x8x128xbf16>
    %59 = vector.shape_cast %58 : vector<1x1x8x128xbf16> to vector<8x128xbf16>
    %60 = arith.extf %59 : vector<8x128xbf16> to vector<8x128xf32>
    %61 = arith.mulf %57, %60 : vector<8x128xf32>
    %62 = arith.addf %54, %61 : vector<8x128xf32>
    %c0_56 = arith.constant 0 : index
    %c8 = arith.constant 8 : index
    %c0_57 = arith.constant 0 : index
    %c0_58 = arith.constant 0 : index
    %63 = vector.load %arg2[%c0_56, %c8, %c0_57, %c0_58] : memref<1x9x8x128xbf16, #tpu.memory_space<vmem>>, vector<1x1x8x128xbf16>
    %64 = vector.shape_cast %63 : vector<1x1x8x128xbf16> to vector<8x128xbf16>
    %65 = arith.extf %64 : vector<8x128xbf16> to vector<8x128xf32>
    %c0_59 = arith.constant 0 : index
    %c8_60 = arith.constant 8 : index
    %c0_61 = arith.constant 0 : index
    %c0_62 = arith.constant 0 : index
    %66 = vector.load %arg3[%c0_59, %c8_60, %c0_61, %c0_62] : memref<1x9x8x128xbf16, #tpu.memory_space<vmem>>, vector<1x1x8x128xbf16>
    %67 = vector.shape_cast %66 : vector<1x1x8x128xbf16> to vector<8x128xbf16>
    %68 = arith.extf %67 : vector<8x128xbf16> to vector<8x128xf32>
    %69 = arith.mulf %65, %68 : vector<8x128xf32>
    %70 = arith.addf %62, %69 : vector<8x128xf32>
    %cst = arith.constant dense<0xFF800000> : vector<128xf32>
    %71 = vector.multi_reduction <maximumf>, %70, %cst [0] : vector<8x128xf32> to vector<128xf32>
    %72 = vector.shape_cast %71 : vector<128xf32> to vector<1x128xf32>
    %73 = vector.broadcast %72 : vector<1x128xf32> to vector<8x128xf32>
    %74 = arith.subf %70, %73 : vector<8x128xf32>
    %75 = math.exp %74 : vector<8x128xf32>
    %cst_63 = arith.constant dense<0.000000e+00> : vector<128xf32>
    %76 = vector.multi_reduction <add>, %75, %cst_63 [0] : vector<8x128xf32> to vector<128xf32>
    %77 = vector.shape_cast %76 : vector<128xf32> to vector<1x128xf32>
    %78 = tpu.reciprocal %77 {approx = true} : vector<1x128xf32> -> vector<1x128xf32>
    %79 = vector.broadcast %78 : vector<1x128xf32> to vector<8x128xf32>
    %80 = arith.mulf %75, %79 : vector<8x128xf32>
    %c0_64 = arith.constant 0 : index
    %c0_65 = arith.constant 0 : index
    %c0_66 = arith.constant 0 : index
    %81 = vector.load %arg5[%c0_64, %c0_65, %c0_66] : memref<1x8x128xf32, #tpu.memory_space<vmem>>, vector<1x8x128xf32>
    %82 = vector.shape_cast %81 : vector<1x8x128xf32> to vector<8x128xf32>
    %83 = vector.shape_cast %80 : vector<8x128xf32> to vector<1x8x128xf32>
    tpu.vector_store %arg5[%c0_64, %c0_65, %c0_66], %83 {strides = array<i32>} : memref<1x8x128xf32, #tpu.memory_space<vmem>>, vector<1x8x128xf32>,
    %c0_67 = arith.constant 0 : index
    %c0_68 = arith.constant 0 : index
    %c0_69 = arith.constant 0 : index
    %84 = vector.load %arg4[%c0_67, %c0_68, %c0_69] : memref<1x8x128xf32, #tpu.memory_space<vmem>>, vector<1x8x128xf32>
    %85 = vector.shape_cast %84 : vector<1x8x128xf32> to vector<8x128xf32>
    %86 = arith.mulf %85, %80 : vector<8x128xf32>
    %cst_70 = arith.constant dense<0.000000e+00> : vector<128xf32>
    %87 = vector.multi_reduction <add>, %86, %cst_70 [0] : vector<8x128xf32> to vector<128xf32>
    %88 = vector.shape_cast %87 : vector<128xf32> to vector<1x128xf32>
    %c0_71 = arith.constant 0 : index
    %c0_72 = arith.constant 0 : index
    %c0_73 = arith.constant 0 : index
    %89 = vector.load %arg6[%c0_71, %c0_72, %c0_73] : memref<1x1x128xf32, #tpu.memory_space<vmem>>, vector<1x1x128xf32>
    %90 = vector.shape_cast %89 : vector<1x1x128xf32> to vector<1x128xf32>
    %91 = vector.shape_cast %88 : vector<1x128xf32> to vector<1x1x128xf32>
    tpu.vector_store %arg6[%c0_71, %c0_72, %c0_73], %91 {strides = array<i32>} : memref<1x1x128xf32, #tpu.memory_space<vmem>>, vector<1x1x128xf32>,
    return
  }
  func.func @transform_0(%arg0: i32, %arg1: i32) -> (i32, i32, i32, i32) {
    %c0_i32 = arith.constant 0 : i32
    %c0_i32_0 = arith.constant 0 : i32
    %c0_i32_1 = arith.constant 0 : i32
    return %arg0, %c0_i32, %c0_i32_0, %arg1 : i32, i32, i32, i32
  }
  func.func @transform_1(%arg0: i32, %arg1: i32) -> (i32, i32, i32, i32) {
    %c0_i32 = arith.constant 0 : i32
    %c0_i32_0 = arith.constant 0 : i32
    %c0_i32_1 = arith.constant 0 : i32
    return %arg0, %c0_i32, %c0_i32_0, %arg1 : i32, i32, i32, i32
  }
  func.func @transform_2(%arg0: i32, %arg1: i32) -> (i32, i32, i32) {
    %c0_i32 = arith.constant 0 : i32
    %c0_i32_0 = arith.constant 0 : i32
    return %arg0, %c0_i32, %arg1 : i32, i32, i32
  }
  func.func @transform_3(%arg0: i32, %arg1: i32) -> (i32, i32, i32) {
    %c0_i32 = arith.constant 0 : i32
    %c0_i32_0 = arith.constant 0 : i32
    return %arg0, %c0_i32, %arg1 : i32, i32, i32
  }
  func.func @transform_4(%arg0: i32, %arg1: i32) -> (i32, i32, i32) {
    %c0_i32 = arith.constant 0 : i32
    %c0_i32_0 = arith.constant 0 : i32
    return %arg0, %c0_i32, %arg1 : i32, i32, i32
  }
}

</mosaic_0001>

<llo_original>
// kernel: custom-call.13
$region0: #{custom-call.13}
  %s0 = inlined_call_operand.vmem [shape: f32[1,4,4], index: 0, kind: input, shape index: {}]
  %s1 = inlined_call_operand.vmem [shape: f32[1,4,4], index: 1, kind: output, shape index: {}]
  $region1: #{custom-call.13} parent=0
    #allocation0 [shape = 'u8[4096]{0}', space=vmem, size = 0x1000, scoped, tag = 'operand span for operand 0']
    #allocation1 [shape = 'u8[2048]{0}', space=vmem, size = 0x800, scoped, tag = 'packed  for operand 0']
    #allocation2 [shape = 'u8[4096]{0}', space=vmem, size = 0x1000, scoped, tag = 'operand span for operand 1']
    #allocation3 [shape = 'u8[2048]{0}', space=vmem, size = 0x800, scoped, tag = 'packed  for operand 1']
    #allocation4 [shape = 'f32[4,4]{1,0}', space=vmem, size = 0x1000, scoped, tag = 'rescaled input a']
    // Predicated region
    $region2: #{custom-call.13} parent=1 // pred_check
      _
    $region3: #{custom-call.13} parent=1 // pred_check_branch
      %3 = sbr.rel (0) target = $region5
    $region4: #{custom-call.13} parent=1 // pred_region
      // Predicated region
      $region6: #{custom-call.13} parent=4 // pred_check
        _
      $region7: #{custom-call.13} parent=4 // pred_check_branch
        %5 = sbr.rel target = $region9
      $region8: #{custom-call.13} parent=4 // pred_region
        // Predicated region
        $region21: #{custom-call.13} parent=8 // pred_check
          _
        $region22: #{custom-call.13} parent=8 // pred_check_branch
          %20 = sbr.rel (0) target = $region24
        $region23: #{custom-call.13} parent=8 // pred_region
          loop: start=0, step=1, limit=1
          $region25: #{custom-call.13} parent=23 // loop_pre_header
            _
          $region26: #{custom-call.13} parent=23 // loop_header
            %s23 = sphi 0, %s27
            %p24 = scmp.ge.s32.totalorder %s23, 1
            %s28 = sphi %s0, %s0
            %s29 = sphi [#allocation1], [#allocation1]
          $region27: #{custom-call.13} parent=23 // loop_header_branch
            %26 = sbr.rel (%p24) target = $region31
          $region28: #{custom-call.13} parent=23 // loop_body
            %v30 = vld [vmem:[%s28] sm:$0xf]
            %31 = vst [vmem:[%s29] sm:$0xf] %v30
          $region29: #{custom-call.13} parent=23 // loop_footer
            %s27 = sadd.s32 1, %s23
          $region30: #{custom-call.13} parent=23 // loop_footer_branch
            %22 = sbr.rel target = $region26
          $region31: #{custom-call.13} parent=23 // loop_exit
            _
        $region24: #{custom-call.13} parent=8 // pred_fallthru
          _
      $region9: #{custom-call.13} parent=4 // pred_fallthru
        _
      // Predicated region
      $region10: #{custom-call.13} parent=4 // pred_check
        _
      $region11: #{custom-call.13} parent=4 // pred_check_branch
        %7 = sbr.rel (0) target = $region13
      $region12: #{custom-call.13} parent=4 // pred_region
        loop: start=0, step=1, limit=1
        $region14: #{custom-call.13} parent=12 // loop_pre_header
          _
        $region15: #{custom-call.13} parent=12 // loop_header
          %s10 = sphi 0, %s14
          %p11 = scmp.ge.s32.totalorder %s10, 1
          %s15 = sphi %s0, %s0
          %s16 = sphi [#allocation1], [#allocation1]
        $region16: #{custom-call.13} parent=12 // loop_header_branch
          %13 = sbr.rel (%p11) target = $region20
        $region17: #{custom-call.13} parent=12 // loop_body
          %v17 = vld [vmem:[%s15] sm:$0xf]
          %18 = vst [vmem:[%s16] sm:$0xf] %v17
        $region18: #{custom-call.13} parent=12 // loop_footer
          %s14 = sadd.s32 1, %s10
        $region19: #{custom-call.13} parent=12 // loop_footer_branch
          %9 = sbr.rel target = $region15
        $region20: #{custom-call.13} parent=12 // loop_exit
          _
      $region13: #{custom-call.13} parent=4 // pred_fallthru
        _
    $region5: #{custom-call.13} parent=1 // pred_fallthru
      _
    %32 = vnop
    %s34 = sshllo.u32 0, 4
    %v35 = vld [vmem:[#allocation1] sm:%s34]
    %36 = vst [vmem:[#allocation0] sm:%s34] %v35
    %v37 = vlaneseq
    %v38 = vand.u32 %v37, 127
    %vm39 = vcmp.lt.s32.totalorder %v38, 4
    %v40 = vlaneseq
    %v41 = vshrl.u32 %v40, 7
    %vm43 = vcmp.eq.s32.totalorder %v41, %v38
    %v44 = vld [vmem:[#allocation0] sm:$0xff]
    %v45 = vsel %vm43, %v44, 0.0
    %46 = vadd.xlane.f32.xlu0 %v45
    %v47 = vpop.xlane.xlu0 %46
    %vm48 = vcmp.ge.s32.totalorder %v41, %v38
    %vm49 = vmand %vm48, %vm39
    %v50 = vsel %vm49, %v44, 0.0
    %v51 = vrcp.pop %v47
    %v52 = vmul.f32 %v50, %v51
    %53 = vst [vmem:[#allocation4] sm:$0xff] %v52
    %v54 = vlaneseq
    %v55 = vand.u32 %v54, 127
    %v56 = vlaneseq
    %v57 = vshrl.u32 %v56, 7
    %vm59 = vcmp.eq.s32.totalorder %v55, %v57
    %v60 = vlaneseq
    %v61 = vand.u32 %v60, 127
    %vm62 = vcmp.eq.s32.totalorder %v61, 0
    %v63 = vsel %vm62, 1.0, -1.0
    %v64 = vsel %vm59, %v63, 0.0
    %s65 = scalar_lea.vmem [#allocation4], 1
    %v66 = vld [vmem:[%s65] ss:$0 sm:$0xff]
    %v67 = vxor.u32 %v66, 2147483648
    %v68 = vlaneseq
    %v69 = vand.u32 %v68, 127
    %vm70 = vcmp.eq.s32.totalorder %v69, 1
    %v71 = vmul.f32 %v67, %v64
    %72 = vadd.xlane.f32.xlu0 %v71
    %v73 = vpop.xlane.xlu0 %72
    %v74 = vsel %vm70, %v73, %v64
    %s75 = scalar_lea.vmem [#allocation4], 2
    %v76 = vld [vmem:[%s75] ss:$0 sm:$0xff]
    %v77 = vxor.u32 %v76, 2147483648
    %v78 = vlaneseq
    %v79 = vand.u32 %v78, 127
    %vm80 = vcmp.eq.s32.totalorder %v79, 2
    %v81 = vmul.f32 %v77, %v74
    %82 = vadd.xlane.f32.xlu0 %v81
    %v83 = vpop.xlane.xlu0 %82
    %v84 = vsel %vm80, %v83, %v74
    %s85 = scalar_lea.vmem [#allocation4], 3
    %v86 = vld [vmem:[%s85] ss:$0 sm:$0xff]
    %v87 = vxor.u32 %v86, 2147483648
    %v88 = vlaneseq
    %v89 = vand.u32 %v88, 127
    %vm90 = vcmp.eq.s32.totalorder %v89, 3
    %v91 = vmul.f32 %v87, %v84
    %92 = vadd.xlane.f32.xlu0 %v91
    %v93 = vpop.xlane.xlu0 %92
    %v94 = vsel %vm90, %v93, %v84
    %v95 = vrcp.pop %v47
    %v96 = vmul.f32 %v94, %v95
    %vm97 = vweird.f32 %v47
    %v98 = vsel %vm97, %v94, %v96
    %99 = vst [vmem:[#allocation2] sm:$0xff] %v98
    %s101 = sshllo.u32 0, 4
    %v103 = vld [vmem:[#allocation2] sm:%s101]
    %s104 = sshllo.u32 0, 4
    %105 = vst [vmem:[#allocation3] sm:%s104] %v103
    // Predicated region
    $region32: #{custom-call.13} parent=1 // pred_check
      _
    $region33: #{custom-call.13} parent=1 // pred_check_branch
      %107 = sbr.rel (0) target = $region35
    $region34: #{custom-call.13} parent=1 // pred_region
      // Predicated region
      $region36: #{custom-call.13} parent=34 // pred_check
        _
      $region37: #{custom-call.13} parent=34 // pred_check_branch
        %109 = sbr.rel target = $region39
      $region38: #{custom-call.13} parent=34 // pred_region
        // Predicated region
        $region51: #{custom-call.13} parent=38 // pred_check
          _
        $region52: #{custom-call.13} parent=38 // pred_check_branch
          %124 = sbr.rel (0) target = $region54
        $region53: #{custom-call.13} parent=38 // pred_region
          loop: start=0, step=1, limit=1
          $region55: #{custom-call.13} parent=53 // loop_pre_header
            _
          $region56: #{custom-call.13} parent=53 // loop_header
            %s127 = sphi 0, %s131
            %p128 = scmp.ge.s32.totalorder %s127, 1
            %s132 = sphi [#allocation3], [#allocation3]
            %s133 = sphi %s1, %s1
          $region57: #{custom-call.13} parent=53 // loop_header_branch
            %130 = sbr.rel (%p128) target = $region61
          $region58: #{custom-call.13} parent=53 // loop_body
            %v134 = vld [vmem:[%s132] sm:$0xf]
            %135 = vst [vmem:[%s133] sm:$0xf] %v134
          $region59: #{custom-call.13} parent=53 // loop_footer
            %s131 = sadd.s32 1, %s127
          $region60: #{custom-call.13} parent=53 // loop_footer_branch
            %126 = sbr.rel target = $region56
          $region61: #{custom-call.13} parent=53 // loop_exit
            _
        $region54: #{custom-call.13} parent=38 // pred_fallthru
          _
      $region39: #{custom-call.13} parent=34 // pred_fallthru
        _
      // Predicated region
      $region40: #{custom-call.13} parent=34 // pred_check
        _
      $region41: #{custom-call.13} parent=34 // pred_check_branch
        %111 = sbr.rel (0) target = $region43
      $region42: #{custom-call.13} parent=34 // pred_region
        loop: start=0, step=1, limit=1
        $region44: #{custom-call.13} parent=42 // loop_pre_header
          _
        $region45: #{custom-call.13} parent=42 // loop_header
          %s114 = sphi 0, %s118
          %p115 = scmp.ge.s32.totalorder %s114, 1
          %s119 = sphi [#allocation3], [#allocation3]
          %s120 = sphi %s1, %s1
        $region46: #{custom-call.13} parent=42 // loop_header_branch
          %117 = sbr.rel (%p115) target = $region50
        $region47: #{custom-call.13} parent=42 // loop_body
          %v121 = vld [vmem:[%s119] sm:$0xf]
          %122 = vst [vmem:[%s120] sm:$0xf] %v121
        $region48: #{custom-call.13} parent=42 // loop_footer
          %s118 = sadd.s32 1, %s114
        $region49: #{custom-call.13} parent=42 // loop_footer_branch
          %113 = sbr.rel target = $region45
        $region50: #{custom-call.13} parent=42 // loop_exit
          _
      $region43: #{custom-call.13} parent=34 // pred_fallthru
        _
    $region35: #{custom-call.13} parent=1 // pred_fallthru
      _
    %136 = vnop

// kernel: custom-call.11
$region0: #{custom-call.11}
  %s0 = inlined_call_operand.hbm [shape: f32[4,4], index: 0, kind: input, shape index: {}]
  %s1 = inlined_call_operand.vmem [shape: f32[4,4], index: 1, kind: output, shape index: {0}]
  %s2 = inlined_call_operand.hbm [shape: s32[4], index: 2, kind: output, shape index: {1}]
  %s3 = inlined_call_operand.vmem [shape: s32[4], index: 3, kind: output, shape index: {2}]
  %4 = xla_tuple %s1, %s2, %s3
  $region1: #{custom-call.11} parent=0
    #allocation0 [shape = 'u8[4096]{0}', space=vmem, size = 0x1000, scoped, tag = 'operand span for operand 0']
    #allocation1 [shape = 'u8[2048]{0}', space=vmem, size = 0x800, scoped, tag = 'packed  for operand 0']
    #allocation2 [shape = 's32[1]{0}', space=sflag, size = 0x4, scoped, tag = 'scoped memory for custom-call.11']
    #allocation3 [shape = 's32[1]{0}', space=sflag, size = 0x4, scoped, tag = 'scoped memory for custom-call.11']
    #allocation4 [shape = 'u8[4096]{0}', space=vmem, size = 0x1000, scoped, tag = 'operand span for operand 1']
    #allocation5 [shape = 'u8[2048]{0}', space=vmem, size = 0x800, scoped, tag = 'packed  for operand 1']
    #allocation6 [shape = 'u8[4096]{0}', space=vmem, size = 0x1000, scoped, tag = 'operand span for operand 2']
    #allocation7 [shape = 'u8[512]{0}', space=vmem, size = 0x400, scoped, tag = 'packed  for operand 2']
    #allocation8 [shape = 'u8[4096]{0}', space=vmem, size = 0x1000, scoped, tag = 'operand span for operand 3']
    #allocation9 [shape = 'u8[512]{0}', space=vmem, size = 0x400, scoped, tag = 'packed  for operand 3']
    #allocation10 [shape = 's32[4,128]{1,0}', space=vmem, size = 0x1000, scoped, tag = 'scratch for permutations']
    %5 = vsyncpa [#allocation2], 0
    %6 = vsyncpa [#allocation3], 0
    %s8 = ssub.s32 64, 64
    %9 = vsyncadd [#allocation2], %s8
    %s10 = sshll.u32 [#allocation1], 4
    %s11 = int_to_ptr.vmem [resolvable:$true] %s10
    %13 = dma.hbm_to_vmem [thread:$0]  %s0, 64, %s11, [#allocation2]
    %14 = dma.done [#allocation2], 64
    %s16 = sshllo.u32 0, 4
    %v17 = vld [vmem:[#allocation1] sm:%s16]
    %18 = vst [vmem:[#allocation0] sm:%s16] %v17
    %v19 = vld [vmem:[#allocation0] sm:$0xff]
    %20 = vst [vmem:[#allocation4] sm:$0xff] %v19
    %21 = vst [vmem:[#allocation6] sm:$0x1] 0
    %v22 = vlaneseq
    %v23 = vshrl.u32 %v22, 7
    %v24 = vmov %v23
    %26 = vst [vmem:[#allocation10] sm:$0xff] %v24
    loop: start=0, step=1, limit=4
    $region3: #{custom-call.11} parent=1 // loop_pre_header
      _
    $region4: #{custom-call.11} parent=1 // loop_header
      %s28 = sphi 0, %s32
      %p29 = scmp.ge.s32.totalorder %s28, 4
    $region5: #{custom-call.11} parent=1 // loop_header_branch
      %31 = sbr.rel (%p29) target = $region9
    $region6: #{custom-call.11} parent=1 // loop_body
      %v33 = vstv %s28
      %v34 = vlaneseq
      %v35 = vshrl.u32 %v34, 7
      %v36 = vmov %v35
      %v37 = vld [vmem:[#allocation4] sm:$0xff]
      %v38 = vand.u32 2147483647, %v37
      %v40 = vstv %s28
      %vm41 = vcmp.ge.s32.totalorder %v36, %v40
      %vm42 = vcmp.lt.s32.totalorder %v36, 4
      %vm43 = vmand %vm41, %vm42
      %vm44 = vcmp.lt.f32.partialorder -inf, %v38
      %vm45 = vmand %vm43, %vm44
      %v46 = vsel %vm45, %v36, %v33
      %v47 = vsel %vm45, %v38, -inf
      %v48 = vrot.slane %v47, 1
      %v49 = vrot.slane %v46, 1
      %vm50 = vcmp.ge.f32.partialorder %v48, %v47
      %v51 = vsel %vm50, %v48, %v47
      %v52 = vsel %vm50, %v49, %v46
      %v53 = vrot.slane %v48, 1
      %v54 = vrot.slane %v49, 1
      %vm55 = vcmp.ge.f32.partialorder %v53, %v51
      %v56 = vsel %vm55, %v53, %v51
      %v57 = vsel %vm55, %v54, %v52
      %v58 = vrot.slane %v53, 1
      %v59 = vrot.slane %v54, 1
      %vm60 = vcmp.ge.f32.partialorder %v58, %v56
      %v61 = vsel %vm60, %v58, %v56
      %v62 = vsel %vm60, %v59, %v57
      %v63 = vrot.slane %v58, 1
      %v64 = vrot.slane %v59, 1
      %vm65 = vcmp.ge.f32.partialorder %v63, %v61
      %v66 = vsel %vm65, %v63, %v61
      %v67 = vsel %vm65, %v64, %v62
      %v68 = vrot.slane %v63, 1
      %v69 = vrot.slane %v64, 1
      %vm70 = vcmp.ge.f32.partialorder %v68, %v66
      %v71 = vsel %vm70, %v68, %v66
      %v72 = vsel %vm70, %v69, %v67
      %v73 = vrot.slane %v68, 1
      %v74 = vrot.slane %v69, 1
      %vm75 = vcmp.ge.f32.partialorder %v73, %v71
      %v76 = vsel %vm75, %v73, %v71
      %v77 = vsel %vm75, %v74, %v72
      %v78 = vrot.slane %v73, 1
      %v79 = vrot.slane %v74, 1
      %vm80 = vcmp.ge.f32.partialorder %v78, %v76
      %v81 = vsel %vm80, %v78, %v76
      %v82 = vsel %vm80, %v79, %v77
      %s83 = ssub.s32 128, %s28
      %84 = vrot.lane.b32.xlu0 %v82, %s83
      %v85 = vpop.permute.xlu0 %84
      %s86 = vtos %v85
      %v87 = vstv %s28
      %v88 = vlaneseq
      %v89 = vand.u32 %v88, 127
      %vm90 = vcmp.eq.s32.totalorder %v89, %v87
      %v91 = vstv %s86
      %v92 = vld [vmem:[#allocation6] ss:$0 sm:$0xff]
      %v93 = vsel %vm90, %v91, %v92
      %94 = vst [vmem:[#allocation6] sm:$0x1] %v93
      %s95 = scalar_lea.vmem [#allocation4], %s28
      %s96 = scalar_lea.vmem [#allocation4], %s86
      %v97 = vld [vmem:[%s95] ss:$0 sm:$0xff]
      %v98 = vld [vmem:[%s96] ss:$0 sm:$0xff]
      %99 = vst [vmem:[%s96] sm:$0x1] %v97
      %100 = vst [vmem:[%s95] sm:$0x1] %v98
      %s101 = scalar_lea.vmem [#allocation10], %s28
      %s102 = scalar_lea.vmem [#allocation10], %s86
      %v103 = vld [vmem:[%s101] ss:$0 sm:$0xff]
      %v104 = vld [vmem:[%s102] ss:$0 sm:$0xff]
      %105 = vst [vmem:[%s102] sm:$0x1] %v103
      %106 = vst [vmem:[%s101] sm:$0x1] %v104
      %vm107 = vcmp.ne.f32.partialorder %v98, 0.0
      %vm108 = vmand %vm90, %vm107
      %v109 = vsel %vm108, %v98, 1.0
      %v110 = vlaneseq
      %v111 = vand.u32 %v110, 127
      %v112 = vstv %s28
      %vm113 = vcmp.gt.s32.totalorder %v111, %v112
      %v114 = vsel %vm113, %v98, 0.0
      %v115 = vlaneseq
      %v116 = vshrl.u32 %v115, 7
      %v117 = vmov %v116
      %v118 = vld [vmem:[#allocation4] sm:$0xff]
      %v120 = vstv %s28
      %vm121 = vcmp.gt.s32.totalorder %v117, %v120
      %v122 = vsel %vm121, %v109, 1.0
      %v123 = vrcp.pop %v122
      %v124 = vmul.f32 %v118, %v123
      %vm125 = vmand %vm121, %vm90
      %v126 = vsel %vm125, %v124, 0.0
      %127 = vadd.xlane.f32.xlu0 %v126
      %v128 = vpop.xlane.xlu0 %127
      %v129 = vmul.f32 %v128, %v114
      %v130 = vsub.f32 %v124, %v129
      %131 = vst [vmem:[#allocation4] sm:$0xff] %v130
    $region7: #{custom-call.11} parent=1 // loop_footer
      %s32 = sadd.s32 1, %s28
    $region8: #{custom-call.11} parent=1 // loop_footer_branch
      %27 = sbr.rel target = $region4
    $region9: #{custom-call.11} parent=1 // loop_exit
      _
    %v132 = vld [vmem:[#allocation10] sm:$0xff]
    %s133 = scalar_lea.vmem [#allocation10], 8
    %s134 = scalar_lea.vmem [#allocation10], 16
    %s135 = scalar_lea.vmem [#allocation10], 24
    %s136 = scalar_lea.vmem [#allocation10], 32
    %s137 = scalar_lea.vmem [#allocation10], 40
    %s138 = scalar_lea.vmem [#allocation10], 48
    %s139 = scalar_lea.vmem [#allocation10], 56
    %s140 = scalar_lea.vmem [#allocation10], 64
    %s141 = scalar_lea.vmem [#allocation10], 72
    %s142 = scalar_lea.vmem [#allocation10], 80
    %s143 = scalar_lea.vmem [#allocation10], 88
    %s144 = scalar_lea.vmem [#allocation10], 96
    %s145 = scalar_lea.vmem [#allocation10], 104
    %s146 = scalar_lea.vmem [#allocation10], 112
    %s147 = scalar_lea.vmem [#allocation10], 120
    %148 = vxpose.xlu0.b32.start [1/16] %v132, 128
    %149 = vxpose.xlu0.b32.cont [2/16] 0, 128
    %150 = vxpose.xlu0.b32.cont [3/16] 0, 128
    %151 = vxpose.xlu0.b32.cont [4/16] 0, 128
    %152 = vxpose.xlu0.b32.cont [5/16] 0, 128
    %153 = vxpose.xlu0.b32.cont [6/16] 0, 128
    %154 = vxpose.xlu0.b32.cont [7/16] 0, 128
    %155 = vxpose.xlu0.b32.cont [8/16] 0, 128
    %156 = vxpose.xlu0.b32.cont [9/16] 0, 128
    %157 = vxpose.xlu0.b32.cont [10/16] 0, 128
    %158 = vxpose.xlu0.b32.cont [11/16] 0, 128
    %159 = vxpose.xlu0.b32.cont [12/16] 0, 128
    %160 = vxpose.xlu0.b32.cont [13/16] 0, 128
    %161 = vxpose.xlu0.b32.cont [14/16] 0, 128
    %162 = vxpose.xlu0.b32.cont [15/16] 0, 128
    %163 = vxpose.xlu0.b32.end [16/16] 0, 128
    %v164 = vpop.trf.xlu0
    %v165 = vpop.trf.xlu0
    %v166 = vpop.trf.xlu0
    %v167 = vpop.trf.xlu0
    %v168 = vpop.trf.xlu0
    %v169 = vpop.trf.xlu0
    %v170 = vpop.trf.xlu0
    %v171 = vpop.trf.xlu0
    %v172 = vpop.trf.xlu0
    %v173 = vpop.trf.xlu0
    %v174 = vpop.trf.xlu0
    %v175 = vpop.trf.xlu0
    %v176 = vpop.trf.xlu0
    %v177 = vpop.trf.xlu0
    %v178 = vpop.trf.xlu0
    %v179 = vpop.trf.xlu0
    %180 = vst [vmem:[#allocation8] sm:$0x1] %v164
    %s182 = sshllo.u32 0, 4
    %v184 = vld [vmem:[#allocation4] sm:%s182]
    %s185 = sshllo.u32 0, 4
    %186 = vst [vmem:[#allocation5] sm:%s185] %v184
    %s188 = sshllo.u32 0, 1
    %v190 = vld [vmem:[#allocation6] sm:%s188]
    %s191 = sshllo.u32 0, 1
    %192 = vst [vmem:[#allocation7] sm:%s191] %v190
    %s194 = sshllo.u32 0, 1
    %v196 = vld [vmem:[#allocation8] sm:%s194]
    %s197 = sshllo.u32 0, 1
    %198 = vst [vmem:[#allocation9] sm:%s197] %v196
    %p200 = scmp.gt.s32.totalorder 4, 0
    // Predicated region
    $region10: #{custom-call.11} parent=1 // pred_check
      %p201 = pneg %p200
    $region11: #{custom-call.11} parent=1 // pred_check_branch
      %203 = sbr.rel (%p201) target = $region13
    $region12: #{custom-call.11} parent=1 // pred_region
      %s204 = sshra.s32 4, 3
      %p205 = scmp.gt.s32.totalorder %s204, 0
      // Predicated region
      $region14: #{custom-call.11} parent=12 // pred_check
        %p206 = pneg %p205
      $region15: #{custom-call.11} parent=12 // pred_check_branch
        %208 = sbr.rel (%p206) target = $region17
      $region16: #{custom-call.11} parent=12 // pred_region
        %s209 = ssub.s32 %s204, 1
        %s210 = smul.u32 %s209, 128
        %s211 = sshra.s32 %s210, 4
        %s212 = scalar_lea.vmem [#allocation5], %s211
        %v213 = vld [vmem:[#allocation5] sm:$0xff]
        // While loop
        $region18: #{custom-call.11} parent=16 // loop_pre_header
          _
        $region19: #{custom-call.11} parent=16 // loop_header
          %s214 = sphi [#allocation5], %s236
          %s215 = sphi %s1, %s237
          %v216 = vphi %v213, %v238
          %s217 = ssub.s32 %s212, 64
          %p218 = scmp.gt.s32.totalorder %s214, %s217
        $region20: #{custom-call.11} parent=16 // loop_header_branch
          %220 = sbr.rel (%p218) target = $region24
        $region21: #{custom-call.11} parent=16 // loop_body
          %221 = vst [vmem:[%s215] sm:$0xff] %v216
          %v222 = vld [vmem:[%s214 + $0x8] sm:$0xff]
          %223 = vst [vmem:[%s215 + $0x8] sm:$0xff] %v222
          %v224 = vld [vmem:[%s214 + $0x10] sm:$0xff]
          %225 = vst [vmem:[%s215 + $0x10] sm:$0xff] %v224
          %v226 = vld [vmem:[%s214 + $0x18] sm:$0xff]
          %227 = vst [vmem:[%s215 + $0x18] sm:$0xff] %v226
          %v228 = vld [vmem:[%s214 + $0x20] sm:$0xff]
          %229 = vst [vmem:[%s215 + $0x20] sm:$0xff] %v228
          %v230 = vld [vmem:[%s214 + $0x28] sm:$0xff]
          %231 = vst [vmem:[%s215 + $0x28] sm:$0xff] %v230
          %v232 = vld [vmem:[%s214 + $0x30] sm:$0xff]
          %233 = vst [vmem:[%s215 + $0x30] sm:$0xff] %v232
          %v234 = vld [vmem:[%s214 + $0x38] sm:$0xff]
          %235 = vst [vmem:[%s215 + $0x38] sm:$0xff] %v234
        $region22: #{custom-call.11} parent=16 // loop_footer
          %s236 = scalar_lea.vmem %s214, 64
          %s237 = scalar_lea.vmem %s215, 64
          %v238 = vld [vmem:[%s214 + $0x40] sm:$0xff]
        $region23: #{custom-call.11} parent=16 // loop_footer_branch
          %239 = sbr.rel target = $region19
        $region24: #{custom-call.11} parent=16 // loop_exit
          _
        // While loop
        $region25: #{custom-call.11} parent=16 // loop_pre_header
          _
        $region26: #{custom-call.11} parent=16 // loop_header
          %s240 = sphi %s214, %s248
          %s241 = sphi %s215, %s249
          %v242 = vphi %v216, %v242
          %p243 = scmp.gt.s32.totalorder %s240, %s212
        $region27: #{custom-call.11} parent=16 // loop_header_branch
          %245 = sbr.rel (%p243) target = $region31
        $region28: #{custom-call.11} parent=16 // loop_body
          %v246 = vld [vmem:[%s240] sm:$0xff]
          %247 = vst [vmem:[%s241] sm:$0xff] %v246
        $region29: #{custom-call.11} parent=16 // loop_footer
          %s248 = scalar_lea.vmem %s240, 8
          %s249 = scalar_lea.vmem %s241, 8
        $region30: #{custom-call.11} parent=16 // loop_footer_branch
          %250 = sbr.rel target = $region26
        $region31: #{custom-call.11} parent=16 // loop_exit
          _
      $region17: #{custom-call.11} parent=12 // pred_fallthru
        _
      %s251 = sand.u32 4, 7
      %s252 = sshllo.u32 0, %s251
      %s253 = smul.u32 %s204, 128
      %s254 = sshra.s32 %s253, 4
      %s255 = scalar_lea.vmem %s1, %s254
      %s256 = smul.u32 %s204, 128
      %s257 = sshra.s32 %s256, 4
      %s258 = scalar_lea.vmem [#allocation5], %s257
      %v259 = vld [vmem:[%s258] sm:%s252]
      %260 = vst [vmem:[%s255] sm:%s252] %v259
    $region13: #{custom-call.11} parent=1 // pred_fallthru
      _
    // Predicated region
    $region32: #{custom-call.11} parent=1 // pred_check
      _
    $region33: #{custom-call.11} parent=1 // pred_check_branch
      %262 = sbr.rel (0) target = $region35
    $region34: #{custom-call.11} parent=1 // pred_region
      %s264 = ssub.s32 16, 16
      %265 = vsyncadd [#allocation3], %s264
      %s266 = sshll.u32 [#allocation7], 4
      %s267 = int_to_ptr.vmem [resolvable:$true] %s266
      %269 = dma.vmem_to_hbm [thread:$0]  %s267, 16, %s2, [#allocation3]
    $region35: #{custom-call.11} parent=1 // pred_fallthru
      _
    // Predicated region
    $region36: #{custom-call.11} parent=1 // pred_check
      _
    $region37: #{custom-call.11} parent=1 // pred_check_branch
      %271 = sbr.rel (0) target = $region39
    $region38: #{custom-call.11} parent=1 // pred_region
      %p273 = scmp.gt.s32.totalorder 1, 0
      // Predicated region
      $region40: #{custom-call.11} parent=38 // pred_check
        %p274 = pneg %p273
      $region41: #{custom-call.11} parent=38 // pred_check_branch
        %276 = sbr.rel (%p274) target = $region43
      $region42: #{custom-call.11} parent=38 // pred_region
        %s277 = sshra.s32 1, 3
        %p278 = scmp.gt.s32.totalorder %s277, 0
        // Predicated region
        $region44: #{custom-call.11} parent=42 // pred_check
          %p279 = pneg %p278
        $region45: #{custom-call.11} parent=42 // pred_check_branch
          %281 = sbr.rel (%p279) target = $region47
        $region46: #{custom-call.11} parent=42 // pred_region
          %s282 = ssub.s32 %s277, 1
          %s283 = smul.u32 %s282, 128
          %s284 = sshra.s32 %s283, 4
          %s285 = scalar_lea.vmem [#allocation9], %s284
          %v286 = vld [vmem:[#allocation9] sm:$0xff]
          // While loop
          $region48: #{custom-call.11} parent=46 // loop_pre_header
            _
          $region49: #{custom-call.11} parent=46 // loop_header
            %s287 = sphi [#allocation9], %s309
            %s288 = sphi %s3, %s310
            %v289 = vphi %v286, %v311
            %s290 = ssub.s32 %s285, 64
            %p291 = scmp.gt.s32.totalorder %s287, %s290
          $region50: #{custom-call.11} parent=46 // loop_header_branch
            %293 = sbr.rel (%p291) target = $region54
          $region51: #{custom-call.11} parent=46 // loop_body
            %294 = vst [vmem:[%s288] sm:$0xff] %v289
            %v295 = vld [vmem:[%s287 + $0x8] sm:$0xff]
            %296 = vst [vmem:[%s288 + $0x8] sm:$0xff] %v295
            %v297 = vld [vmem:[%s287 + $0x10] sm:$0xff]
            %298 = vst [vmem:[%s288 + $0x10] sm:$0xff] %v297
            %v299 = vld [vmem:[%s287 + $0x18] sm:$0xff]
            %300 = vst [vmem:[%s288 + $0x18] sm:$0xff] %v299
            %v301 = vld [vmem:[%s287 + $0x20] sm:$0xff]
            %302 = vst [vmem:[%s288 + $0x20] sm:$0xff] %v301
            %v303 = vld [vmem:[%s287 + $0x28] sm:$0xff]
            %304 = vst [vmem:[%s288 + $0x28] sm:$0xff] %v303
            %v305 = vld [vmem:[%s287 + $0x30] sm:$0xff]
            %306 = vst [vmem:[%s288 + $0x30] sm:$0xff] %v305
            %v307 = vld [vmem:[%s287 + $0x38] sm:$0xff]
            %308 = vst [vmem:[%s288 + $0x38] sm:$0xff] %v307
          $region52: #{custom-call.11} parent=46 // loop_footer
            %s309 = scalar_lea.vmem %s287, 64
            %s310 = scalar_lea.vmem %s288, 64
            %v311 = vld [vmem:[%s287 + $0x40] sm:$0xff]
          $region53: #{custom-call.11} parent=46 // loop_footer_branch
            %312 = sbr.rel target = $region49
          $region54: #{custom-call.11} parent=46 // loop_exit
            _
          // While loop
          $region55: #{custom-call.11} parent=46 // loop_pre_header
            _
          $region56: #{custom-call.11} parent=46 // loop_header
            %s313 = sphi %s287, %s321
            %s314 = sphi %s288, %s322
            %v315 = vphi %v289, %v315
            %p316 = scmp.gt.s32.totalorder %s313, %s285
          $region57: #{custom-call.11} parent=46 // loop_header_branch
            %318 = sbr.rel (%p316) target = $region61
          $region58: #{custom-call.11} parent=46 // loop_body
            %v319 = vld [vmem:[%s313] sm:$0xff]
            %320 = vst [vmem:[%s314] sm:$0xff] %v319
          $region59: #{custom-call.11} parent=46 // loop_footer
            %s321 = scalar_lea.vmem %s313, 8
            %s322 = scalar_lea.vmem %s314, 8
          $region60: #{custom-call.11} parent=46 // loop_footer_branch
            %323 = sbr.rel target = $region56
          $region61: #{custom-call.11} parent=46 // loop_exit
            _
        $region47: #{custom-call.11} parent=42 // pred_fallthru
          _
        %s324 = sand.u32 1, 7
        %s325 = sshllo.u32 0, %s324
        %s326 = smul.u32 %s277, 128
        %s327 = sshra.s32 %s326, 4
        %s328 = scalar_lea.vmem %s3, %s327
        %s329 = smul.u32 %s277, 128
        %s330 = sshra.s32 %s329, 4
        %s331 = scalar_lea.vmem [#allocation9], %s330
        %v332 = vld [vmem:[%s331] sm:%s325]
        %333 = vst [vmem:[%s328] sm:%s325] %v332
      $region43: #{custom-call.11} parent=38 // pred_fallthru
        _
    $region39: #{custom-call.11} parent=1 // pred_fallthru
      _
    // Predicated region
    $region62: #{custom-call.11} parent=1 // pred_check
      _
    $region63: #{custom-call.11} parent=1 // pred_check_branch
      %335 = sbr.rel (0) target = $region65
    $region64: #{custom-call.11} parent=1 // pred_region
      %336 = dma.done [#allocation3], 16
    $region65: #{custom-call.11} parent=1 // pred_fallthru
      _
    // Predicated region
    $region66: #{custom-call.11} parent=1 // pred_check
      _
    $region67: #{custom-call.11} parent=1 // pred_check_branch
      %338 = sbr.rel (0) target = $region69
    $region68: #{custom-call.11} parent=1 // pred_region
      _
    $region69: #{custom-call.11} parent=1 // pred_fallthru
      _
    %339 = vsyncpa [#allocation2], 1
    %340 = vsyncpa [#allocation3], 1

// kernel: custom-call.12
$region0: #{custom-call.12}
  %s0 = inlined_call_operand.vmem [shape: f32[1,4,4], index: 0, kind: input, shape index: {}]
  %s1 = inlined_call_operand.vmem [shape: f32[1,4,4], index: 1, kind: output, shape index: {}]
  $region1: #{custom-call.12} parent=0
    #allocation0 [shape = 'u8[4096]{0}', space=vmem, size = 0x1000, scoped, tag = 'operand span for operand 0']
    #allocation1 [shape = 'u8[2048]{0}', space=vmem, size = 0x800, scoped, tag = 'packed  for operand 0']
    #allocation2 [shape = 'u8[4096]{0}', space=vmem, size = 0x1000, scoped, tag = 'operand span for operand 1']
    #allocation3 [shape = 'u8[2048]{0}', space=vmem, size = 0x800, scoped, tag = 'packed  for operand 1']
    #allocation4 [shape = 'f32[4,4]{1,0}', space=vmem, size = 0x1000, scoped, tag = 'rescaled input a']
    // Predicated region
    $region2: #{custom-call.12} parent=1 // pred_check
      _
    $region3: #{custom-call.12} parent=1 // pred_check_branch
      %3 = sbr.rel (0) target = $region5
    $region4: #{custom-call.12} parent=1 // pred_region
      // Predicated region
      $region6: #{custom-call.12} parent=4 // pred_check
        _
      $region7: #{custom-call.12} parent=4 // pred_check_branch
        %5 = sbr.rel target = $region9
      $region8: #{custom-call.12} parent=4 // pred_region
        // Predicated region
        $region21: #{custom-call.12} parent=8 // pred_check
          _
        $region22: #{custom-call.12} parent=8 // pred_check_branch
          %20 = sbr.rel (0) target = $region24
        $region23: #{custom-call.12} parent=8 // pred_region
          loop: start=0, step=1, limit=1
          $region25: #{custom-call.12} parent=23 // loop_pre_header
            _
          $region26: #{custom-call.12} parent=23 // loop_header
            %s23 = sphi 0, %s27
            %p24 = scmp.ge.s32.totalorder %s23, 1
            %s28 = sphi %s0, %s0
            %s29 = sphi [#allocation1], [#allocation1]
          $region27: #{custom-call.12} parent=23 // loop_header_branch
            %26 = sbr.rel (%p24) target = $region31
          $region28: #{custom-call.12} parent=23 // loop_body
            %v30 = vld [vmem:[%s28] sm:$0xf]
            %31 = vst [vmem:[%s29] sm:$0xf] %v30
          $region29: #{custom-call.12} parent=23 // loop_footer
            %s27 = sadd.s32 1, %s23
          $region30: #{custom-call.12} parent=23 // loop_footer_branch
            %22 = sbr.rel target = $region26
          $region31: #{custom-call.12} parent=23 // loop_exit
            _
        $region24: #{custom-call.12} parent=8 // pred_fallthru
          _
      $region9: #{custom-call.12} parent=4 // pred_fallthru
        _
      // Predicated region
      $region10: #{custom-call.12} parent=4 // pred_check
        _
      $region11: #{custom-call.12} parent=4 // pred_check_branch
        %7 = sbr.rel (0) target = $region13
      $region12: #{custom-call.12} parent=4 // pred_region
        loop: start=0, step=1, limit=1
        $region14: #{custom-call.12} parent=12 // loop_pre_header
          _
        $region15: #{custom-call.12} parent=12 // loop_header
          %s10 = sphi 0, %s14
          %p11 = scmp.ge.s32.totalorder %s10, 1
          %s15 = sphi %s0, %s0
          %s16 = sphi [#allocation1], [#allocation1]
        $region16: #{custom-call.12} parent=12 // loop_header_branch
          %13 = sbr.rel (%p11) target = $region20
        $region17: #{custom-call.12} parent=12 // loop_body
          %v17 = vld [vmem:[%s15] sm:$0xf]
          %18 = vst [vmem:[%s16] sm:$0xf] %v17
        $region18: #{custom-call.12} parent=12 // loop_footer
          %s14 = sadd.s32 1, %s10
        $region19: #{custom-call.12} parent=12 // loop_footer_branch
          %9 = sbr.rel target = $region15
        $region20: #{custom-call.12} parent=12 // loop_exit
          _
      $region13: #{custom-call.12} parent=4 // pred_fallthru
        _
    $region5: #{custom-call.12} parent=1 // pred_fallthru
      _
    %32 = vnop
    %s34 = sshllo.u32 0, 4
    %v35 = vld [vmem:[#allocation1] sm:%s34]
    %36 = vst [vmem:[#allocation0] sm:%s34] %v35
    %v37 = vlaneseq
    %v38 = vand.u32 %v37, 127
    %vm39 = vcmp.lt.s32.totalorder %v38, 4
    %v40 = vlaneseq
    %v41 = vshrl.u32 %v40, 7
    %vm43 = vcmp.eq.s32.totalorder %v41, %v38
    %v44 = vld [vmem:[#allocation0] sm:$0xff]
    %v45 = vsel %vm43, %v44, 0.0
    %46 = vadd.xlane.f32.xlu0 %v45
    %v47 = vpop.xlane.xlu0 %46
    %vm48 = vcmp.le.s32.totalorder %v41, %v38
    %vm49 = vmand %vm48, %vm39
    %v50 = vsel %vm49, %v44, 0.0
    %v51 = vrcp.pop %v47
    %v52 = vmul.f32 %v50, %v51
    %53 = vst [vmem:[#allocation4] sm:$0xff] %v52
    %v54 = vlaneseq
    %v55 = vand.u32 %v54, 127
    %v56 = vlaneseq
    %v57 = vshrl.u32 %v56, 7
    %vm59 = vcmp.eq.s32.totalorder %v55, %v57
    %v60 = vlaneseq
    %v61 = vand.u32 %v60, 127
    %vm62 = vcmp.eq.s32.totalorder %v61, 3
    %v63 = vsel %vm62, 1.0, -1.0
    %v64 = vsel %vm59, %v63, 0.0
    %s65 = scalar_lea.vmem [#allocation4], 2
    %v66 = vld [vmem:[%s65] ss:$0 sm:$0xff]
    %v67 = vxor.u32 %v66, 2147483648
    %v68 = vlaneseq
    %v69 = vand.u32 %v68, 127
    %vm70 = vcmp.eq.s32.totalorder %v69, 2
    %v71 = vmul.f32 %v67, %v64
    %72 = vadd.xlane.f32.xlu0 %v71
    %v73 = vpop.xlane.xlu0 %72
    %v74 = vsel %vm70, %v73, %v64
    %s75 = scalar_lea.vmem [#allocation4], 1
    %v76 = vld [vmem:[%s75] ss:$0 sm:$0xff]
    %v77 = vxor.u32 %v76, 2147483648
    %v78 = vlaneseq
    %v79 = vand.u32 %v78, 127
    %vm80 = vcmp.eq.s32.totalorder %v79, 1
    %v81 = vmul.f32 %v77, %v74
    %82 = vadd.xlane.f32.xlu0 %v81
    %v83 = vpop.xlane.xlu0 %82
    %v84 = vsel %vm80, %v83, %v74
    %v85 = vld [vmem:[#allocation4] ss:$0 sm:$0xff]
    %v86 = vxor.u32 %v85, 2147483648
    %v87 = vlaneseq
    %v88 = vand.u32 %v87, 127
    %vm89 = vcmp.eq.s32.totalorder %v88, 0
    %v90 = vmul.f32 %v86, %v84
    %91 = vadd.xlane.f32.xlu0 %v90
    %v92 = vpop.xlane.xlu0 %91
    %v93 = vsel %vm89, %v92, %v84
    %v94 = vrcp.pop %v47
    %v95 = vmul.f32 %v93, %v94
    %vm96 = vweird.f32 %v47
    %v97 = vsel %vm96, %v93, %v95
    %98 = vst [vmem:[#allocation2] sm:$0xff] %v97
    %s100 = sshllo.u32 0, 4
    %v102 = vld [vmem:[#allocation2] sm:%s100]
    %s103 = sshllo.u32 0, 4
    %104 = vst [vmem:[#allocation3] sm:%s103] %v102
    // Predicated region
    $region32: #{custom-call.12} parent=1 // pred_check
      _
    $region33: #{custom-call.12} parent=1 // pred_check_branch
      %106 = sbr.rel (0) target = $region35
    $region34: #{custom-call.12} parent=1 // pred_region
      // Predicated region
      $region36: #{custom-call.12} parent=34 // pred_check
        _
      $region37: #{custom-call.12} parent=34 // pred_check_branch
        %108 = sbr.rel target = $region39
      $region38: #{custom-call.12} parent=34 // pred_region
        // Predicated region
        $region51: #{custom-call.12} parent=38 // pred_check
          _
        $region52: #{custom-call.12} parent=38 // pred_check_branch
          %123 = sbr.rel (0) target = $region54
        $region53: #{custom-call.12} parent=38 // pred_region
          loop: start=0, step=1, limit=1
          $region55: #{custom-call.12} parent=53 // loop_pre_header
            _
          $region56: #{custom-call.12} parent=53 // loop_header
            %s126 = sphi 0, %s130
            %p127 = scmp.ge.s32.totalorder %s126, 1
            %s131 = sphi [#allocation3], [#allocation3]
            %s132 = sphi %s1, %s1
          $region57: #{custom-call.12} parent=53 // loop_header_branch
            %129 = sbr.rel (%p127) target = $region61
          $region58: #{custom-call.12} parent=53 // loop_body
            %v133 = vld [vmem:[%s131] sm:$0xf]
            %134 = vst [vmem:[%s132] sm:$0xf] %v133
          $region59: #{custom-call.12} parent=53 // loop_footer
            %s130 = sadd.s32 1, %s126
          $region60: #{custom-call.12} parent=53 // loop_footer_branch
            %125 = sbr.rel target = $region56
          $region61: #{custom-call.12} parent=53 // loop_exit
            _
        $region54: #{custom-call.12} parent=38 // pred_fallthru
          _
      $region39: #{custom-call.12} parent=34 // pred_fallthru
        _
      // Predicated region
      $region40: #{custom-call.12} parent=34 // pred_check
        _
      $region41: #{custom-call.12} parent=34 // pred_check_branch
        %110 = sbr.rel (0) target = $region43
      $region42: #{custom-call.12} parent=34 // pred_region
        loop: start=0, step=1, limit=1
        $region44: #{custom-call.12} parent=42 // loop_pre_header
          _
        $region45: #{custom-call.12} parent=42 // loop_header
          %s113 = sphi 0, %s117
          %p114 = scmp.ge.s32.totalorder %s113, 1
          %s118 = sphi [#allocation3], [#allocation3]
          %s119 = sphi %s1, %s1
        $region46: #{custom-call.12} parent=42 // loop_header_branch
          %116 = sbr.rel (%p114) target = $region50
        $region47: #{custom-call.12} parent=42 // loop_body
          %v120 = vld [vmem:[%s118] sm:$0xf]
          %121 = vst [vmem:[%s119] sm:$0xf] %v120
        $region48: #{custom-call.12} parent=42 // loop_footer
          %s117 = sadd.s32 1, %s113
        $region49: #{custom-call.12} parent=42 // loop_footer_branch
          %112 = sbr.rel target = $region45
        $region50: #{custom-call.12} parent=42 // loop_exit
          _
      $region43: #{custom-call.12} parent=34 // pred_fallthru
        _
    $region35: #{custom-call.12} parent=1 // pred_fallthru
      _
    %135 = vnop

// kernel: evaluation_forward.2
$region0: #{evaluation_forward.2}
  #allocation0 [shape = 'u32[]', space=smem, size = 0x4, offset = 0x4, fixed_abs, tag = 'smem constant byte address 0x4 - core index']
  #allocation1 [shape = 'u32[144,128]{1,0:T(1,128)}', space=vmem, size = 0x12000, scoped, tag = 'internal scratch']
  #allocation2 [shape = 'f32[8,1024]{1,0:T(8,128)}', space=vmem, size = 0x8000, scoped, tag = 'scratch operand']
  #allocation3 [shape = 'f32[1,128]{1,0:T(1,128)}', space=vmem, size = 0x200, scoped, tag = 'scratch operand']
  %s0 = inlined_call_operand.hbm [shape: bf16[2,1,16,2048], index: 0, kind: input, shape index: {}]
  %s1 = inlined_call_operand.hbm [shape: f32[1,16,256], index: 1, kind: input, shape index: {}]
  %s2 = inlined_call_operand.hbm [shape: f32[32,32], index: 2, kind: input, shape index: {}]
  %s3 = inlined_call_operand.hbm [shape: f32[32,32], index: 3, kind: input, shape index: {}]
  %s4 = inlined_call_operand.hbm [shape: f32[1,2,1,256], index: 4, kind: output, shape index: {0}]
  %s5 = inlined_call_operand.hbm [shape: f32[1,8,256], index: 5, kind: output, shape index: {1}]
  %6 = xla_tuple %s4, %s5
  %s7 = sld [smem:[#allocation0]]
  $region81: #{evaluation_forward.2} parent=0
    _
  %s9 = ssub.s32 1, %s7
  %s10 = scalar_select 0, %s9, %s7
  $region1: #{evaluation_forward.2} parent=0
    #allocation4 [shape = 'u8[65536]{0}', space=vmem, size = 0x10000, scoped, tag = 'input window, operand 0']
    #allocation5 [shape = 's32[2]{0}', space=sflag, size = 0x8, scoped, tag = 'scoped memory for evaluation_forward.2']
    #allocation6 [shape = 's32[2]{0}', space=sflag, size = 0x8, scoped, tag = 'scoped memory for evaluation_forward.2']
    #allocation7 [shape = 'u8[16384]{0}', space=vmem, size = 0x4000, scoped, tag = 'input window, operand 1']
    #allocation8 [shape = 's32[2]{0}', space=sflag, size = 0x8, scoped, tag = 'scoped memory for evaluation_forward.2']
    #allocation9 [shape = 'u8[16384]{0}', space=vmem, size = 0x4000, scoped, tag = 'input window, operand 2, single buffered']
    #allocation10 [shape = 'u8[16384]{0}', space=vmem, size = 0x4000, scoped, tag = 'input window, operand 3, single buffered']
    #allocation11 [shape = 's32[1]{0}', space=sflag, size = 0x4, scoped, tag = 'scoped memory for evaluation_forward.2']
    #allocation12 [shape = 'u8[1024]{0}', space=vmem, size = 0x400, scoped, tag = 'output window, operand 0']
    #allocation13 [shape = 'u8[8192]{0}', space=vmem, size = 0x2000, scoped, tag = 'output window, operand 1']
    #allocation14 [shape = 's32[2]{0}', space=sflag, size = 0x8, scoped, tag = 'scoped memory for evaluation_forward.2']
    %11 = vsyncpa [#allocation5], 0
    %s12 = scalar_lea.sflag [#allocation5], 1
    %13 = vsyncpa %s12, 0
    %14 = vsyncpa [#allocation8], 0
    %s15 = scalar_lea.sflag [#allocation8], 1
    %16 = vsyncpa %s15, 0
    %17 = vsyncpa [#allocation11], 0
    %18 = vsyncpa [#allocation6], 0
    %s19 = scalar_lea.sflag [#allocation6], 1
    %20 = vsyncpa %s19, 0
    %21 = vsyncpa [#allocation14], 0
    %s22 = scalar_lea.sflag [#allocation14], 1
    %23 = vsyncpa %s22, 0
    loop: start=0, step=1, limit=6
    $region2: #{evaluation_forward.2} parent=1 // loop_pre_header
      _
    $region3: #{evaluation_forward.2} parent=1 // loop_header
      %s25 = sphi 0, %s29
      %p26 = scmp.ge.s32.totalorder %s25, 6
      %s32 = sphi 0, %s51
      %s33 = sphi 0, %s47
      %s34 = sphi 0, %s43
      %s35 = sphi 0, %s32
      %s36 = sphi 0, %s33
      %s37 = sphi 0, %s34
      %s38 = sphi 0, %s35
      %s39 = sphi 0, %s36
      %s40 = sphi 0, %s37
      %s58 = sphi 0, %s60
      %s61 = sphi 0, %s58
      %s62 = sphi 0, %s61
      %s78 = sphi 0, %s62
      %s86 = sphi 0, %s88
      %s89 = sphi 0, %s86
      %s90 = sphi 0, %s89
      %s106 = sphi 0, %s90
      %s110 = sphi 0, %s110
      %s112 = sphi 0, %s110
      %s113 = sphi 0, %s112
      %s127 = sphi 0, %s113
      %s131 = sphi 0, %s131
      %s133 = sphi 0, %s131
      %s134 = sphi 0, %s133
      %s148 = sphi 0, %s134
      %s158 = sphi 0, %s160
      %s161 = sphi 0, %s158
      %s162 = sphi 0, %s161
      %s178 = sphi 0, %s162
      %s186 = sphi 0, %s188
      %s189 = sphi 0, %s186
      %s190 = sphi 0, %s189
      %s206 = sphi 0, %s190
    $region4: #{evaluation_forward.2} parent=1 // loop_header_branch
      %28 = sbr.rel (%p26) target = $region8
    $region5: #{evaluation_forward.2} parent=1 // loop_body
      %s30 = ssub.s32 %s25, 1
      %s31 = ssub.s32 %s25, 2
      %s41 = sadd.s32 1, %s34
      %p42 = scmp.ge.s32.totalorder %s41, 2
      %s43 = scalar_select %p42, 0, %s41
      %s44 = sadd.s32 1, %s33
      %s45 = scalar_select %p42, %s44, %s33
      %p46 = scmp.ge.s32.totalorder %s45, 1
      %s47 = scalar_select %p46, 0, %s45
      %s48 = sadd.s32 1, %s32
      %s49 = scalar_select %p46, %s48, %s32
      %p50 = scmp.ge.s32.totalorder %s49, 2
      %s51 = scalar_select %p50, 0, %s49
      %s52 = ssub.s32 %s34, %s43
      %s53 = ssub.s32 %s33, %s47
      %s54 = sor.u32 %s52, %s53
      %s55 = ssub.s32 %s32, %s51
      %s56 = sor.u32 %s54, %s55
      %p57 = scmp.eq.s32.totalorder %s56, 0
      %s59 = sadd.s32 %s58, 1
      %s60 = scalar_select %p57, %s58, %s59
      %p63 = pneg %p57
      %p64 = scmp.eq.s32.totalorder %s25, 3
      %p65 = por %p63, %p64
      %p66 = scmp.ne.s32.totalorder %s58, %s61
      %p67 = scmp.eq.s32.totalorder %s25, 0
      %p68 = por %p66, %p67
      %p69 = scmp.ne.s32.totalorder %s58, %s61
      %p70 = scmp.eq.s32.totalorder %s30, 3
      %p71 = por %p69, %p70
      %p72 = scmp.ne.s32.totalorder %s61, %s62
      %p73 = scmp.eq.s32.totalorder %s30, 0
      %p74 = por %p72, %p73
      %p75 = scmp.ne.s32.totalorder %s61, %s62
      %p76 = scmp.eq.s32.totalorder %s31, 3
      %p77 = por %p75, %p76
      %p79 = scmp.ne.s32.totalorder %s62, %s78
      %p80 = scmp.eq.s32.totalorder %s31, 0
      %p81 = por %p79, %p80
      %s82 = ssub.s32 %s33, %s47
      %s83 = ssub.s32 %s32, %s51
      %s84 = sor.u32 %s82, %s83
      %p85 = scmp.eq.s32.totalorder %s84, 0
      %s87 = sadd.s32 %s86, 1
      %s88 = scalar_select %p85, %s86, %s87
      %p91 = pneg %p85
      %p92 = scmp.eq.s32.totalorder %s25, 3
      %p93 = por %p91, %p92
      %p94 = scmp.ne.s32.totalorder %s86, %s89
      %p95 = scmp.eq.s32.totalorder %s25, 0
      %p96 = por %p94, %p95
      %p97 = scmp.ne.s32.totalorder %s86, %s89
      %p98 = scmp.eq.s32.totalorder %s30, 3
      %p99 = por %p97, %p98
      %p100 = scmp.ne.s32.totalorder %s89, %s90
      %p101 = scmp.eq.s32.totalorder %s30, 0
      %p102 = por %p100, %p101
      %p103 = scmp.ne.s32.totalorder %s89, %s90
      %p104 = scmp.eq.s32.totalorder %s31, 3
      %p105 = por %p103, %p104
      %p107 = scmp.ne.s32.totalorder %s90, %s106
      %p108 = scmp.eq.s32.totalorder %s31, 0
      %p109 = por %p107, %p108
      %s111 = sadd.s32 %s110, 1
      %p114 = scmp.eq.s32.totalorder %s25, 3
      %p115 = scmp.ne.s32.totalorder %s110, %s112
      %p116 = scmp.eq.s32.totalorder %s25, 0
      %p117 = por %p115, %p116
      %p118 = scmp.ne.s32.totalorder %s110, %s112
      %p119 = scmp.eq.s32.totalorder %s30, 3
      %p120 = por %p118, %p119
      %p121 = scmp.ne.s32.totalorder %s112, %s113
      %p122 = scmp.eq.s32.totalorder %s30, 0
      %p123 = por %p121, %p122
      %p124 = scmp.ne.s32.totalorder %s112, %s113
      %p125 = scmp.eq.s32.totalorder %s31, 3
      %p126 = por %p124, %p125
      %p128 = scmp.ne.s32.totalorder %s113, %s127
      %p129 = scmp.eq.s32.totalorder %s31, 0
      %p130 = por %p128, %p129
      %s132 = sadd.s32 %s131, 1
      %p135 = scmp.eq.s32.totalorder %s25, 3
      %p136 = scmp.ne.s32.totalorder %s131, %s133
      %p137 = scmp.eq.s32.totalorder %s25, 0
      %p138 = por %p136, %p137
      %p139 = scmp.ne.s32.totalorder %s131, %s133
      %p140 = scmp.eq.s32.totalorder %s30, 3
      %p141 = por %p139, %p140
      %p142 = scmp.ne.s32.totalorder %s133, %s134
      %p143 = scmp.eq.s32.totalorder %s30, 0
      %p144 = por %p142, %p143
      %p145 = scmp.ne.s32.totalorder %s133, %s134
      %p146 = scmp.eq.s32.totalorder %s31, 3
      %p147 = por %p145, %p146
      %p149 = scmp.ne.s32.totalorder %s134, %s148
      %p150 = scmp.eq.s32.totalorder %s31, 0
      %p151 = por %p149, %p150
      %s152 = ssub.s32 %s33, %s47
      %s153 = ssub.s32 %s34, %s43
      %s154 = sor.u32 %s152, %s153
      %s155 = ssub.s32 %s32, %s51
      %s156 = sor.u32 %s154, %s155
      %p157 = scmp.eq.s32.totalorder %s156, 0
      %s159 = sadd.s32 %s158, 1
      %s160 = scalar_select %p157, %s158, %s159
      %p163 = pneg %p157
      %p164 = scmp.eq.s32.totalorder %s25, 3
      %p165 = por %p163, %p164
      %p166 = scmp.ne.s32.totalorder %s158, %s161
      %p167 = scmp.eq.s32.totalorder %s25, 0
      %p168 = por %p166, %p167
      %p169 = scmp.ne.s32.totalorder %s158, %s161
      %p170 = scmp.eq.s32.totalorder %s30, 3
      %p171 = por %p169, %p170
      %p172 = scmp.ne.s32.totalorder %s161, %s162
      %p173 = scmp.eq.s32.totalorder %s30, 0
      %p174 = por %p172, %p173
      %p175 = scmp.ne.s32.totalorder %s161, %s162
      %p176 = scmp.eq.s32.totalorder %s31, 3
      %p177 = por %p175, %p176
      %p179 = scmp.ne.s32.totalorder %s162, %s178
      %p180 = scmp.eq.s32.totalorder %s31, 0
      %p181 = por %p179, %p180
      %s182 = ssub.s32 %s33, %s47
      %s183 = ssub.s32 %s32, %s51
      %s184 = sor.u32 %s182, %s183
      %p185 = scmp.eq.s32.totalorder %s184, 0
      %s187 = sadd.s32 %s186, 1
      %s188 = scalar_select %p185, %s186, %s187
      %p191 = pneg %p185
      %p192 = scmp.eq.s32.totalorder %s25, 3
      %p193 = por %p191, %p192
      %p194 = scmp.ne.s32.totalorder %s186, %s189
      %p195 = scmp.eq.s32.totalorder %s25, 0
      %p196 = por %p194, %p195
      %p197 = scmp.ne.s32.totalorder %s186, %s189
      %p198 = scmp.eq.s32.totalorder %s30, 3
      %p199 = por %p197, %p198
      %p200 = scmp.ne.s32.totalorder %s189, %s190
      %p201 = scmp.eq.s32.totalorder %s30, 0
      %p202 = por %p200, %p201
      %p203 = scmp.ne.s32.totalorder %s189, %s190
      %p204 = scmp.eq.s32.totalorder %s31, 3
      %p205 = por %p203, %p204
      %p207 = scmp.ne.s32.totalorder %s190, %s206
      %p208 = scmp.eq.s32.totalorder %s31, 0
      %p209 = por %p207, %p208
      %p210 = scmp.le.s32.totalorder 1, %s25
      %p211 = scmp.lt.s32.totalorder %s25, 5
      %p212 = pnand %p210, %p211
      %p213 = pneg %p212
      // Predicated region
      $region9: #{evaluation_forward.2} parent=5 // pred_check
        _
      $region10: #{evaluation_forward.2} parent=5 // pred_check_branch
        %215 = sbr.rel (%p212) target = $region12
      $region11: #{evaluation_forward.2} parent=5 // pred_region
        %s216 = ssub.s32 %s25, 1
        // Predicated region
        $region13: #{evaluation_forward.2} parent=11 // pred_check
          %p217 = pneg %p123
        $region14: #{evaluation_forward.2} parent=11 // pred_check_branch
          %219 = sbr.rel (%p217) target = $region16
        $region15: #{evaluation_forward.2} parent=11 // pred_region
          %s221 = ssub.s32 512, 512
          %222 = vsyncadd [#allocation8], %s221
          %s223 = sshll.u32 [#allocation9], 4
          %s224 = int_to_ptr.vmem [resolvable:$true] %s223
          %229 = dma.hbm_to_vmem [thread:$0]  %s2, 512, %s224, [#allocation8], 128, 128, 8
        $region16: #{evaluation_forward.2} parent=11 // pred_fallthru
          _
        // Predicated region
        $region17: #{evaluation_forward.2} parent=11 // pred_check
          %p230 = pneg %p144
        $region18: #{evaluation_forward.2} parent=11 // pred_check_branch
          %232 = sbr.rel (%p230) target = $region20
        $region19: #{evaluation_forward.2} parent=11 // pred_region
          %s234 = ssub.s32 512, 512
          %235 = vsyncadd [#allocation11], %s234
          %s236 = sshll.u32 [#allocation10], 4
          %s237 = int_to_ptr.vmem [resolvable:$true] %s236
          %242 = dma.hbm_to_vmem [thread:$0]  %s3, 512, %s237, [#allocation11], 128, 128, 8
        $region20: #{evaluation_forward.2} parent=11 // pred_fallthru
          _
      $region12: #{evaluation_forward.2} parent=5 // pred_fallthru
        _
      %p243 = scmp.lt.s32.totalorder %s25, 4
      // Predicated region
      $region21: #{evaluation_forward.2} parent=5 // pred_check
        %p244 = pneg %p243
      $region22: #{evaluation_forward.2} parent=5 // pred_check_branch
        %246 = sbr.rel (%p244) target = $region24
      $region23: #{evaluation_forward.2} parent=5 // pred_region
        // Predicated region
        $region25: #{evaluation_forward.2} parent=23 // pred_check
          %p247 = pneg %p68
        $region26: #{evaluation_forward.2} parent=23 // pred_check_branch
          %249 = sbr.rel (%p247) target = $region28
        $region27: #{evaluation_forward.2} parent=23 // pred_region
          %s250 = sand.u32 %s58, 1
          %s251 = scalar_lea.sflag [#allocation5], %s250
          %s252 = sand.u32 %s58, 1
          %s253 = smul.addr %s252, 64
          %s254 = scalar_lea.vmem [#allocation4], %s253
          %s255 = smul.u32 8, %s32
          %s257 = ssub.s32 1024, 1024
          %258 = vsyncadd %s251, %s257
          %s259 = smul.addr %s33, 32
          %s260 = sadd.s32 %s255, %s259
          %s261 = smul.addr %s34, 32
          %s262 = sadd.s32 %s260, %s261
          %s263 = smul.addr %s262, 64
          %s264 = scalar_lea.hbm %s0, %s263
          %s265 = sshll.u32 %s254, 4
          %s266 = int_to_ptr.vmem [resolvable:$true] %s265
          %271 = dma.hbm_to_vmem [thread:$0]  %s264, 1024, %s266, %s251, 1024, 512, 32
        $region28: #{evaluation_forward.2} parent=23 // pred_fallthru
          _
        // Predicated region
        $region29: #{evaluation_forward.2} parent=23 // pred_check
          %p272 = pneg %p96
        $region30: #{evaluation_forward.2} parent=23 // pred_check_branch
          %274 = sbr.rel (%p272) target = $region32
        $region31: #{evaluation_forward.2} parent=23 // pred_region
          %s275 = sand.u32 %s25, 1
          %s276 = scalar_lea.sflag [#allocation8], %s275
          %s277 = sand.u32 %s86, 1
          %s278 = smul.addr %s277, 16
          %s279 = scalar_lea.vmem [#allocation7], %s278
          %s281 = ssub.s32 256, 256
          %282 = vsyncadd %s276, %s281
          %s283 = smul.addr %s33, 4
          %s284 = sadd.s32 %s32, %s283
          %s285 = smul.addr %s284, 128
          %s286 = scalar_lea.hbm %s1, %s285
          %s287 = sshll.u32 %s279, 4
          %s288 = int_to_ptr.vmem [resolvable:$true] %s287
          %293 = dma.hbm_to_vmem [thread:$0]  %s286, 256, %s288, %s276, 256, 128, 8
        $region32: #{evaluation_forward.2} parent=23 // pred_fallthru
          _
      $region24: #{evaluation_forward.2} parent=5 // pred_fallthru
        _
      %p294 = scmp.le.s32.totalorder 1, %s25
      %p295 = scmp.lt.s32.totalorder %s25, 5
      %p296 = pnand %p294, %p295
      %p297 = pneg %p296
      // Predicated region
      $region33: #{evaluation_forward.2} parent=5 // pred_check
        _
      $region34: #{evaluation_forward.2} parent=5 // pred_check_branch
        %299 = sbr.rel (%p296) target = $region36
      $region35: #{evaluation_forward.2} parent=5 // pred_region
        %s300 = ssub.s32 %s25, 1
        %s301 = sand.u32 %s61, 1
        %s302 = scalar_lea.sflag [#allocation5], %s301
        %s303 = sand.u32 %s61, 1
        %s304 = smul.addr %s303, 64
        %s305 = scalar_lea.vmem [#allocation4], %s304
        // Predicated region
        $region37: #{evaluation_forward.2} parent=35 // pred_check
          %p306 = pneg %p74
        $region38: #{evaluation_forward.2} parent=35 // pred_check_branch
          %308 = sbr.rel (%p306) target = $region40
        $region39: #{evaluation_forward.2} parent=35 // pred_region
          %309 = dma.done %s302, 1024
        $region40: #{evaluation_forward.2} parent=35 // pred_fallthru
          _
        %s310 = sand.u32 %s30, 1
        %s311 = scalar_lea.sflag [#allocation8], %s310
        %s312 = sand.u32 %s89, 1
        %s313 = smul.addr %s312, 16
        %s314 = scalar_lea.vmem [#allocation7], %s313
        // Predicated region
        $region41: #{evaluation_forward.2} parent=35 // pred_check
          %p315 = pneg %p102
        $region42: #{evaluation_forward.2} parent=35 // pred_check_branch
          %317 = sbr.rel (%p315) target = $region44
        $region43: #{evaluation_forward.2} parent=35 // pred_region
          %318 = dma.done %s311, 256
        $region44: #{evaluation_forward.2} parent=35 // pred_fallthru
          _
        // Predicated region
        $region45: #{evaluation_forward.2} parent=35 // pred_check
          %p319 = pneg %p123
        $region46: #{evaluation_forward.2} parent=35 // pred_check_branch
          %321 = sbr.rel (%p319) target = $region48
        $region47: #{evaluation_forward.2} parent=35 // pred_region
          %322 = dma.done [#allocation8], 512
        $region48: #{evaluation_forward.2} parent=35 // pred_fallthru
          _
        // Predicated region
        $region49: #{evaluation_forward.2} parent=35 // pred_check
          %p323 = pneg %p144
        $region50: #{evaluation_forward.2} parent=35 // pred_check_branch
          %325 = sbr.rel (%p323) target = $region52
        $region51: #{evaluation_forward.2} parent=35 // pred_region
          %326 = dma.done [#allocation11], 512
        $region52: #{evaluation_forward.2} parent=35 // pred_fallthru
          _
        %s327 = sand.u32 %s61, 1
        %s328 = scalar_lea.sflag [#allocation5], %s327
        %s329 = sand.u32 %s61, 1
        %s330 = smul.addr %s329, 64
        %s331 = scalar_lea.vmem [#allocation4], %s330
        %p332 = pneg %p74
        %p333 = pneg %p71
        %s334 = sand.u32 %s30, 1
        %s335 = scalar_lea.sflag [#allocation8], %s334
        %s336 = sand.u32 %s89, 1
        %s337 = smul.addr %s336, 16
        %s338 = scalar_lea.vmem [#allocation7], %s337
        %p339 = pneg %p102
        %p340 = pneg %p99
        %p341 = pneg %p123
        %p342 = pneg %p120
        %p343 = pneg %p144
        %p344 = pneg %p141
        %p345 = pneg %p174
        %p346 = pneg %p171
        %s347 = sand.u32 %s161, 1
        %s348 = scalar_lea.sflag [#allocation6], %s347
        %s349 = sand.u32 %s161, 1
        %s350 = scalar_lea.vmem [#allocation12], %s349
        %p351 = pneg %p202
        %p352 = pneg %p199
        %s353 = sand.u32 %s189, 1
        %s354 = scalar_lea.sflag [#allocation14], %s353
        %s355 = sand.u32 %s189, 1
        %s356 = smul.addr %s355, 8
        %s357 = scalar_lea.vmem [#allocation13], %s356
        %s358 = smul.u32 8, %s35
        %v360 = vld [vmem:[%s314] sm:$0xff]
        %v361 = vld [vmem:[%s314 + $0x8] sm:$0xff]
        %v362 = vld [vmem:[#allocation9] sm:$0xff]
        %v363 = vld [vmem:[#allocation9 + $0x8] sm:$0xff]
        %v364 = vld [vmem:[#allocation9 + $0x10] sm:$0xff]
        %v365 = vld [vmem:[#allocation9 + $0x18] sm:$0xff]
        %v366 = vpack.c.bf16 %v363, %v362
        %v367 = vpack.c.bf16 %v364, %v364
        %v368 = vpack.c.bf16 %v365, %v365
        %v369 = vld [vmem:[%s305] sm:$0xf]
        %v370 = vld [vmem:[%s305 + $0x20] sm:$0xf]
        %v371 = vunpack.c.l.bf16 %v369
        %v372 = vunpack.c.l.bf16 %v370
        %v373 = vmul.f32 %v371, %v360
        %v374 = vmul.f32 %v372, %v361
        %v375 = vadd.f32 %v373, %v374
        %v376 = vpack.c.bf16 %v375, %v375
        %378 = vset.pattern.permute.xlu0 8
        %379 = vperm.xlu0 %378, %v362
        %v380 = vpop.permute.xlu0 %379
        %383 = vset.pattern.permute.xlu0 8
        %384 = vperm.xlu0 %383, %v363
        %v385 = vpop.permute.xlu0 %384
        %vm387 = vcmask 64512
        %v389 = vsel %vm387, %v366, 0
        %vm391 = vcmask 1043456
        %v393 = vsel %vm391, %v376, 0
        %395 = vmatprep.subr.bf16.mxu0 0
        %396 = vmatpush1.bf16.msra.mxu0 %v393
        %397 = vmatprep.subr.bf16.mxu0 0
        %398 = vmatpush1.bf16.msra.mxu0 0
        %399 = vmatprep.subr.bf16.mxu0 0
        %400 = vmatpush1.bf16.msra.mxu0 0
        %401 = vmatprep.subr.bf16.mxu0 0
        %402 = vmatpush1.bf16.msra.mxu0 0
        %403 = vmatprep.subr.bf16.mxu0 0
        %404 = vmatpush1.bf16.msra.mxu0 0
        %405 = vmatprep.subr.bf16.mxu0 0
        %406 = vmatpush1.bf16.msra.mxu0 0
        %407 = vmatprep.subr.bf16.mxu0 0
        %408 = vmatpush1.bf16.msra.mxu0 0
        %409 = vmatprep.subr.bf16.mxu0 0
        %410 = vmatpush1.bf16.msra.mxu0 0
        %411 = vmatprep.subr.bf16.mxu0 0
        %412 = vmatpush1.bf16.msra.mxu0 0
        %413 = vmatprep.subr.bf16.mxu0 0
        %414 = vmatpush1.bf16.msra.mxu0 0
        %415 = vmatprep.subr.bf16.mxu0 0
        %416 = vmatpush1.bf16.msra.mxu0 0
        %417 = vmatprep.subr.bf16.mxu0 0
        %418 = vmatpush1.bf16.msra.mxu0 0
        %419 = vmatprep.subr.bf16.mxu0 0
        %420 = vmatpush1.bf16.msra.mxu0 0
        %421 = vmatprep.subr.bf16.mxu0 0
        %422 = vmatpush1.bf16.msra.mxu0 0
        %423 = vmatprep.subr.bf16.mxu0 0
        %424 = vmatpush1.bf16.msra.mxu0 0
        %425 = vmatprep.subr.bf16.mxu0 0
        %426 = vmatpush1.bf16.msra.mxu0 0
        %427 = vmatprep.mubr.bf16.mxu0 0
        %428 = vmatmul.mubr.bf16.gmra.mrb[0].mxu0 %v389
        %v429 = vpop.f32.mrb[0].mxu0
        %v430 = vadd.f32 %v380, %v429
        %v431 = vpop.f32.mrb[0].mxu0
        %v432 = vpop.f32.mrb[0].mxu0
        %v433 = vadd.f32 %v385, %v432
        %v434 = vpop.f32.mrb[0].mxu0
        %435 = vdwg.mxu0
        %v436 = vmax.f32 %v430, 0.0
        %v437 = vmax.f32 %v433, 0.0
        %v438 = vpack.c.bf16 %v437, %v436
        %440 = vset.pattern.permute.xlu0 16
        %441 = vperm.xlu0 %440, %v364
        %v442 = vpop.permute.xlu0 %441
        %vm444 = vcmask 130048
        %v446 = vsel %vm444, %v367, 0
        %448 = vmatprep.subr.bf16.mxu0 0
        %449 = vmatpush1.bf16.msra.mxu0 %v438
        %450 = vmatprep.subr.bf16.mxu0 0
        %451 = vmatpush1.bf16.msra.mxu0 0
        %452 = vmatprep.subr.bf16.mxu0 0
        %453 = vmatpush1.bf16.msra.mxu0 0
        %454 = vmatprep.subr.bf16.mxu0 0
        %455 = vmatpush1.bf16.msra.mxu0 0
        %456 = vmatprep.subr.bf16.mxu0 0
        %457 = vmatpush1.bf16.msra.mxu0 0
        %458 = vmatprep.subr.bf16.mxu0 0
        %459 = vmatpush1.bf16.msra.mxu0 0
        %460 = vmatprep.subr.bf16.mxu0 0
        %461 = vmatpush1.bf16.msra.mxu0 0
        %462 = vmatprep.subr.bf16.mxu0 0
        %463 = vmatpush1.bf16.msra.mxu0 0
        %464 = vmatprep.subr.bf16.mxu0 0
        %465 = vmatpush1.bf16.msra.mxu0 0
        %466 = vmatprep.subr.bf16.mxu0 0
        %467 = vmatpush1.bf16.msra.mxu0 0
        %468 = vmatprep.subr.bf16.mxu0 0
        %469 = vmatpush1.bf16.msra.mxu0 0
        %470 = vmatprep.subr.bf16.mxu0 0
        %471 = vmatpush1.bf16.msra.mxu0 0
        %472 = vmatprep.subr.bf16.mxu0 0
        %473 = vmatpush1.bf16.msra.mxu0 0
        %474 = vmatprep.subr.bf16.mxu0 0
        %475 = vmatpush1.bf16.msra.mxu0 0
        %476 = vmatprep.subr.bf16.mxu0 0
        %477 = vmatpush1.bf16.msra.mxu0 0
        %478 = vmatprep.subr.bf16.mxu0 0
        %479 = vmatpush1.bf16.msra.mxu0 0
        %480 = vmatprep.mubr.bf16.mxu0 0
        %481 = vmatmul.mubr.bf16.gmra.mrb[0].mxu0 %v446
        %v482 = vpop.f32.mrb[0].mxu0
        %v483 = vadd.f32 %v442, %v482
        %v484 = vpop.f32.mrb[0].mxu0
        %v485 = vpop.f32.mrb[0].mxu0
        %v486 = vpop.f32.mrb[0].mxu0
        %487 = vdwg.mxu0
        %v488 = vmax.f32 %v483, 0.0
        %v489 = vpack.c.bf16 %v488, %v488
        %491 = vset.pattern.permute.xlu0 8
        %492 = vperm.xlu0 %491, %v365
        %v493 = vpop.permute.xlu0 %492
        %v496 = vsel %vm387, %v368, 0
        %v499 = vsel %vm391, %v489, 0
        %501 = vmatprep.subr.bf16.mxu0 0
        %502 = vmatpush1.bf16.msra.mxu0 %v499
        %503 = vmatprep.subr.bf16.mxu0 0
        %504 = vmatpush1.bf16.msra.mxu0 0
        %505 = vmatprep.subr.bf16.mxu0 0
        %506 = vmatpush1.bf16.msra.mxu0 0
        %507 = vmatprep.subr.bf16.mxu0 0
        %508 = vmatpush1.bf16.msra.mxu0 0
        %509 = vmatprep.subr.bf16.mxu0 0
        %510 = vmatpush1.bf16.msra.mxu0 0
        %511 = vmatprep.subr.bf16.mxu0 0
        %512 = vmatpush1.bf16.msra.mxu0 0
        %513 = vmatprep.subr.bf16.mxu0 0
        %514 = vmatpush1.bf16.msra.mxu0 0
        %515 = vmatprep.subr.bf16.mxu0 0
        %516 = vmatpush1.bf16.msra.mxu0 0
        %517 = vmatprep.subr.bf16.mxu0 0
        %518 = vmatpush1.bf16.msra.mxu0 0
        %519 = vmatprep.subr.bf16.mxu0 0
        %520 = vmatpush1.bf16.msra.mxu0 0
        %521 = vmatprep.subr.bf16.mxu0 0
        %522 = vmatpush1.bf16.msra.mxu0 0
        %523 = vmatprep.subr.bf16.mxu0 0
        %524 = vmatpush1.bf16.msra.mxu0 0
        %525 = vmatprep.subr.bf16.mxu0 0
        %526 = vmatpush1.bf16.msra.mxu0 0
        %527 = vmatprep.subr.bf16.mxu0 0
        %528 = vmatpush1.bf16.msra.mxu0 0
        %529 = vmatprep.subr.bf16.mxu0 0
        %530 = vmatpush1.bf16.msra.mxu0 0
        %531 = vmatprep.subr.bf16.mxu0 0
        %532 = vmatpush1.bf16.msra.mxu0 0
        %533 = vmatprep.mubr.bf16.mxu0 0
        %534 = vmatmul.mubr.bf16.gmra.mrb[0].mxu0 %v496
        %v535 = vpop.f32.mrb[0].mxu0
        %v536 = vadd.f32 %v493, %v535
        %v537 = vpop.f32.mrb[0].mxu0
        %v538 = vpop.f32.mrb[0].mxu0
        %v539 = vpop.f32.mrb[0].mxu0
        %540 = vdwg.mxu0
        %v541 = vxor.u32 %v536, 2147483648
        %v542 = vmul.f32 %v541, 1.442695
        %v543 = vpow.pop %v542
        %v544 = vadd.f32 %v543, 1.0
        %v545 = vrcp.pop %v544
        %v546 = vmul.f32 1.0, %v545
        %v547 = vld [vmem:[%s305 + $0x4] sm:$0xf]
        %v548 = vld [vmem:[%s305 + $0x24] sm:$0xf]
        %v549 = vunpack.c.l.bf16 %v547
        %v550 = vunpack.c.l.bf16 %v548
        %v551 = vmul.f32 %v549, %v360
        %v552 = vmul.f32 %v550, %v361
        %v553 = vadd.f32 %v551, %v552
        %v554 = vpack.c.bf16 %v553, %v553
        %v556 = vsel %vm391, %v554, 0
        %558 = vmatprep.subr.bf16.mxu0 0
        %559 = vmatpush1.bf16.msra.mxu0 %v556
        %560 = vmatprep.subr.bf16.mxu0 0
        %561 = vmatpush1.bf16.msra.mxu0 0
        %562 = vmatprep.subr.bf16.mxu0 0
        %563 = vmatpush1.bf16.msra.mxu0 0
        %564 = vmatprep.subr.bf16.mxu0 0
        %565 = vmatpush1.bf16.msra.mxu0 0
        %566 = vmatprep.subr.bf16.mxu0 0
        %567 = vmatpush1.bf16.msra.mxu0 0
        %568 = vmatprep.subr.bf16.mxu0 0
        %569 = vmatpush1.bf16.msra.mxu0 0
        %570 = vmatprep.subr.bf16.mxu0 0
        %571 = vmatpush1.bf16.msra.mxu0 0
        %572 = vmatprep.subr.bf16.mxu0 0
        %573 = vmatpush1.bf16.msra.mxu0 0
        %574 = vmatprep.subr.bf16.mxu0 0
        %575 = vmatpush1.bf16.msra.mxu0 0
        %576 = vmatprep.subr.bf16.mxu0 0
        %577 = vmatpush1.bf16.msra.mxu0 0
        %578 = vmatprep.subr.bf16.mxu0 0
        %579 = vmatpush1.bf16.msra.mxu0 0
        %580 = vmatprep.subr.bf16.mxu0 0
        %581 = vmatpush1.bf16.msra.mxu0 0
        %582 = vmatprep.subr.bf16.mxu0 0
        %583 = vmatpush1.bf16.msra.mxu0 0
        %584 = vmatprep.subr.bf16.mxu0 0
        %585 = vmatpush1.bf16.msra.mxu0 0
        %586 = vmatprep.subr.bf16.mxu0 0
        %587 = vmatpush1.bf16.msra.mxu0 0
        %588 = vmatprep.subr.bf16.mxu0 0
        %589 = vmatpush1.bf16.msra.mxu0 0
        %590 = vmatprep.mubr.bf16.mxu0 0
        %591 = vmatmul.mubr.bf16.gmra.mrb[0].mxu0 %v389
        %v592 = vpop.f32.mrb[0].mxu0
        %v593 = vadd.f32 %v380, %v592
        %v594 = vpop.f32.mrb[0].mxu0
        %v595 = vpop.f32.mrb[0].mxu0
        %v596 = vadd.f32 %v385, %v595
        %v597 = vpop.f32.mrb[0].mxu0
        %598 = vdwg.mxu0
        %v599 = vmax.f32 %v593, 0.0
        %v600 = vmax.f32 %v596, 0.0
        %v601 = vpack.c.bf16 %v600, %v599
        %602 = vmatprep.subr.bf16.mxu0 0
        %603 = vmatpush1.bf16.msra.mxu0 %v601
        %604 = vmatprep.subr.bf16.mxu0 0
        %605 = vmatpush1.bf16.msra.mxu0 0
        %606 = vmatprep.subr.bf16.mxu0 0
        %607 = vmatpush1.bf16.msra.mxu0 0
        %608 = vmatprep.subr.bf16.mxu0 0
        %609 = vmatpush1.bf16.msra.mxu0 0
        %610 = vmatprep.subr.bf16.mxu0 0
        %611 = vmatpush1.bf16.msra.mxu0 0
        %612 = vmatprep.subr.bf16.mxu0 0
        %613 = vmatpush1.bf16.msra.mxu0 0
        %614 = vmatprep.subr.bf16.mxu0 0
        %615 = vmatpush1.bf16.msra.mxu0 0
        %616 = vmatprep.subr.bf16.mxu0 0
        %617 = vmatpush1.bf16.msra.mxu0 0
        %618 = vmatprep.subr.bf16.mxu0 0
        %619 = vmatpush1.bf16.msra.mxu0 0
        %620 = vmatprep.subr.bf16.mxu0 0
        %621 = vmatpush1.bf16.msra.mxu0 0
        %622 = vmatprep.subr.bf16.mxu0 0
        %623 = vmatpush1.bf16.msra.mxu0 0
        %624 = vmatprep.subr.bf16.mxu0 0
        %625 = vmatpush1.bf16.msra.mxu0 0
        %626 = vmatprep.subr.bf16.mxu0 0
        %627 = vmatpush1.bf16.msra.mxu0 0
        %628 = vmatprep.subr.bf16.mxu0 0
        %629 = vmatpush1.bf16.msra.mxu0 0
        %630 = vmatprep.subr.bf16.mxu0 0
        %631 = vmatpush1.bf16.msra.mxu0 0
        %632 = vmatprep.subr.bf16.mxu0 0
        %633 = vmatpush1.bf16.msra.mxu0 0
        %634 = vmatprep.mubr.bf16.mxu0 0
        %635 = vmatmul.mubr.bf16.gmra.mrb[0].mxu0 %v446
        %v636 = vpop.f32.mrb[0].mxu0
        %v637 = vadd.f32 %v442, %v636
        %v638 = vpop.f32.mrb[0].mxu0
        %v639 = vpop.f32.mrb[0].mxu0
        %v640 = vpop.f32.mrb[0].mxu0
        %641 = vdwg.mxu0
        %v642 = vmax.f32 %v637, 0.0
        %v643 = vpack.c.bf16 %v642, %v642
        %v645 = vsel %vm391, %v643, 0
        %647 = vmatprep.subr.bf16.mxu0 0
        %648 = vmatpush1.bf16.msra.mxu0 %v645
        %649 = vmatprep.subr.bf16.mxu0 0
        %650 = vmatpush1.bf16.msra.mxu0 0
        %651 = vmatprep.subr.bf16.mxu0 0
        %652 = vmatpush1.bf16.msra.mxu0 0
        %653 = vmatprep.subr.bf16.mxu0 0
        %654 = vmatpush1.bf16.msra.mxu0 0
        %655 = vmatprep.subr.bf16.mxu0 0
        %656 = vmatpush1.bf16.msra.mxu0 0
        %657 = vmatprep.subr.bf16.mxu0 0
        %658 = vmatpush1.bf16.msra.mxu0 0
        %659 = vmatprep.subr.bf16.mxu0 0
        %660 = vmatpush1.bf16.msra.mxu0 0
        %661 = vmatprep.subr.bf16.mxu0 0
        %662 = vmatpush1.bf16.msra.mxu0 0
        %663 = vmatprep.subr.bf16.mxu0 0
        %664 = vmatpush1.bf16.msra.mxu0 0
        %665 = vmatprep.subr.bf16.mxu0 0
        %666 = vmatpush1.bf16.msra.mxu0 0
        %667 = vmatprep.subr.bf16.mxu0 0
        %668 = vmatpush1.bf16.msra.mxu0 0
        %669 = vmatprep.subr.bf16.mxu0 0
        %670 = vmatpush1.bf16.msra.mxu0 0
        %671 = vmatprep.subr.bf16.mxu0 0
        %672 = vmatpush1.bf16.msra.mxu0 0
        %673 = vmatprep.subr.bf16.mxu0 0
        %674 = vmatpush1.bf16.msra.mxu0 0
        %675 = vmatprep.subr.bf16.mxu0 0
        %676 = vmatpush1.bf16.msra.mxu0 0
        %677 = vmatprep.subr.bf16.mxu0 0
        %678 = vmatpush1.bf16.msra.mxu0 0
        %679 = vmatprep.mubr.bf16.mxu0 0
        %680 = vmatmul.mubr.bf16.gmra.mrb[0].mxu0 %v496
        %v681 = vpop.f32.mrb[0].mxu0
        %v682 = vadd.f32 %v493, %v681
        %v683 = vpop.f32.mrb[0].mxu0
        %v684 = vpop.f32.mrb[0].mxu0
        %v685 = vpop.f32.mrb[0].mxu0
        %686 = vdwg.mxu0
        %v687 = vxor.u32 %v682, 2147483648
        %v688 = vmul.f32 %v687, 1.442695
        %v689 = vpow.pop %v688
        %v690 = vadd.f32 %v689, 1.0
        %v691 = vrcp.pop %v690
        %v692 = vmul.f32 1.0, %v691
        %v693 = vmax.f32 %v546, %v692
        %v694 = vld [vmem:[%s305 + $0x8] sm:$0xf]
        %v695 = vld [vmem:[%s305 + $0x28] sm:$0xf]
        %v696 = vunpack.c.l.bf16 %v694
        %v697 = vunpack.c.l.bf16 %v695
        %v698 = vmul.f32 %v696, %v360
        %v699 = vmul.f32 %v697, %v361
        %v700 = vadd.f32 %v698, %v699
        %v701 = vpack.c.bf16 %v700, %v700
        %v703 = vsel %vm391, %v701, 0
        %705 = vmatprep.subr.bf16.mxu0 0
        %706 = vmatpush1.bf16.msra.mxu0 %v703
        %707 = vmatprep.subr.bf16.mxu0 0
        %708 = vmatpush1.bf16.msra.mxu0 0
        %709 = vmatprep.subr.bf16.mxu0 0
        %710 = vmatpush1.bf16.msra.mxu0 0
        %711 = vmatprep.subr.bf16.mxu0 0
        %712 = vmatpush1.bf16.msra.mxu0 0
        %713 = vmatprep.subr.bf16.mxu0 0
        %714 = vmatpush1.bf16.msra.mxu0 0
        %715 = vmatprep.subr.bf16.mxu0 0
        %716 = vmatpush1.bf16.msra.mxu0 0
        %717 = vmatprep.subr.bf16.mxu0 0
        %718 = vmatpush1.bf16.msra.mxu0 0
        %719 = vmatprep.subr.bf16.mxu0 0
        %720 = vmatpush1.bf16.msra.mxu0 0
        %721 = vmatprep.subr.bf16.mxu0 0
        %722 = vmatpush1.bf16.msra.mxu0 0
        %723 = vmatprep.subr.bf16.mxu0 0
        %724 = vmatpush1.bf16.msra.mxu0 0
        %725 = vmatprep.subr.bf16.mxu0 0
        %726 = vmatpush1.bf16.msra.mxu0 0
        %727 = vmatprep.subr.bf16.mxu0 0
        %728 = vmatpush1.bf16.msra.mxu0 0
        %729 = vmatprep.subr.bf16.mxu0 0
        %730 = vmatpush1.bf16.msra.mxu0 0
        %731 = vmatprep.subr.bf16.mxu0 0
        %732 = vmatpush1.bf16.msra.mxu0 0
        %733 = vmatprep.subr.bf16.mxu0 0
        %734 = vmatpush1.bf16.msra.mxu0 0
        %735 = vmatprep.subr.bf16.mxu0 0
        %736 = vmatpush1.bf16.msra.mxu0 0
        %737 = vmatprep.mubr.bf16.mxu0 0
        %738 = vmatmul.mubr.bf16.gmra.mrb[0].mxu0 %v389
        %v739 = vpop.f32.mrb[0].mxu0
        %v740 = vadd.f32 %v380, %v739
        %v741 = vpop.f32.mrb[0].mxu0
        %v742 = vpop.f32.mrb[0].mxu0
        %v743 = vadd.f32 %v385, %v742
        %v744 = vpop.f32.mrb[0].mxu0
        %745 = vdwg.mxu0
        %v746 = vmax.f32 %v740, 0.0
        %v747 = vmax.f32 %v743, 0.0
        %v748 = vpack.c.bf16 %v747, %v746
        %749 = vmatprep.subr.bf16.mxu0 0
        %750 = vmatpush1.bf16.msra.mxu0 %v748
        %751 = vmatprep.subr.bf16.mxu0 0
        %752 = vmatpush1.bf16.msra.mxu0 0
        %753 = vmatprep.subr.bf16.mxu0 0
        %754 = vmatpush1.bf16.msra.mxu0 0
        %755 = vmatprep.subr.bf16.mxu0 0
        %756 = vmatpush1.bf16.msra.mxu0 0
        %757 = vmatprep.subr.bf16.mxu0 0
        %758 = vmatpush1.bf16.msra.mxu0 0
        %759 = vmatprep.subr.bf16.mxu0 0
        %760 = vmatpush1.bf16.msra.mxu0 0
        %761 = vmatprep.subr.bf16.mxu0 0
        %762 = vmatpush1.bf16.msra.mxu0 0
        %763 = vmatprep.subr.bf16.mxu0 0
        %764 = vmatpush1.bf16.msra.mxu0 0
        %765 = vmatprep.subr.bf16.mxu0 0
        %766 = vmatpush1.bf16.msra.mxu0 0
        %767 = vmatprep.subr.bf16.mxu0 0
        %768 = vmatpush1.bf16.msra.mxu0 0
        %769 = vmatprep.subr.bf16.mxu0 0
        %770 = vmatpush1.bf16.msra.mxu0 0
        %771 = vmatprep.subr.bf16.mxu0 0
        %772 = vmatpush1.bf16.msra.mxu0 0
        %773 = vmatprep.subr.bf16.mxu0 0
        %774 = vmatpush1.bf16.msra.mxu0 0
        %775 = vmatprep.subr.bf16.mxu0 0
        %776 = vmatpush1.bf16.msra.mxu0 0
        %777 = vmatprep.subr.bf16.mxu0 0
        %778 = vmatpush1.bf16.msra.mxu0 0
        %779 = vmatprep.subr.bf16.mxu0 0
        %780 = vmatpush1.bf16.msra.mxu0 0
        %781 = vmatprep.mubr.bf16.mxu0 0
        %782 = vmatmul.mubr.bf16.gmra.mrb[0].mxu0 %v446
        %v783 = vpop.f32.mrb[0].mxu0
        %v784 = vadd.f32 %v442, %v783
        %v785 = vpop.f32.mrb[0].mxu0
        %v786 = vpop.f32.mrb[0].mxu0
        %v787 = vpop.f32.mrb[0].mxu0
        %788 = vdwg.mxu0
        %v789 = vmax.f32 %v784, 0.0
        %v790 = vpack.c.bf16 %v789, %v789
        %v792 = vsel %vm391, %v790, 0
        %794 = vmatprep.subr.bf16.mxu0 0
        %795 = vmatpush1.bf16.msra.mxu0 %v792
        %796 = vmatprep.subr.bf16.mxu0 0
        %797 = vmatpush1.bf16.msra.mxu0 0
        %798 = vmatprep.subr.bf16.mxu0 0
        %799 = vmatpush1.bf16.msra.mxu0 0
        %800 = vmatprep.subr.bf16.mxu0 0
        %801 = vmatpush1.bf16.msra.mxu0 0
        %802 = vmatprep.subr.bf16.mxu0 0
        %803 = vmatpush1.bf16.msra.mxu0 0
        %804 = vmatprep.subr.bf16.mxu0 0
        %805 = vmatpush1.bf16.msra.mxu0 0
        %806 = vmatprep.subr.bf16.mxu0 0
        %807 = vmatpush1.bf16.msra.mxu0 0
        %808 = vmatprep.subr.bf16.mxu0 0
        %809 = vmatpush1.bf16.msra.mxu0 0
        %810 = vmatprep.subr.bf16.mxu0 0
        %811 = vmatpush1.bf16.msra.mxu0 0
        %812 = vmatprep.subr.bf16.mxu0 0
        %813 = vmatpush1.bf16.msra.mxu0 0
        %814 = vmatprep.subr.bf16.mxu0 0
        %815 = vmatpush1.bf16.msra.mxu0 0
        %816 = vmatprep.subr.bf16.mxu0 0
        %817 = vmatpush1.bf16.msra.mxu0 0
        %818 = vmatprep.subr.bf16.mxu0 0
        %819 = vmatpush1.bf16.msra.mxu0 0
        %820 = vmatprep.subr.bf16.mxu0 0
        %821 = vmatpush1.bf16.msra.mxu0 0
        %822 = vmatprep.subr.bf16.mxu0 0
        %823 = vmatpush1.bf16.msra.mxu0 0
        %824 = vmatprep.subr.bf16.mxu0 0
        %825 = vmatpush1.bf16.msra.mxu0 0
        %826 = vmatprep.mubr.bf16.mxu0 0
        %827 = vmatmul.mubr.bf16.gmra.mrb[0].mxu0 %v496
        %v828 = vpop.f32.mrb[0].mxu0
        %v829 = vadd.f32 %v493, %v828
        %v830 = vpop.f32.mrb[0].mxu0
        %v831 = vpop.f32.mrb[0].mxu0
        %v832 = vpop.f32.mrb[0].mxu0
        %833 = vdwg.mxu0
        %v834 = vxor.u32 %v829, 2147483648
        %v835 = vmul.f32 %v834, 1.442695
        %v836 = vpow.pop %v835
        %v837 = vadd.f32 %v836, 1.0
        %v838 = vrcp.pop %v837
        %v839 = vmul.f32 1.0, %v838
        %v840 = vmax.f32 %v693, %v839
        %v841 = vld [vmem:[%s305 + $0xc] sm:$0xf]
        %v842 = vld [vmem:[%s305 + $0x2c] sm:$0xf]
        %v843 = vunpack.c.l.bf16 %v841
        %v844 = vunpack.c.l.bf16 %v842
        %v845 = vmul.f32 %v843, %v360
        %v846 = vmul.f32 %v844, %v361
        %v847 = vadd.f32 %v845, %v846
        %v848 = vpack.c.bf16 %v847, %v847
        %v850 = vsel %vm391, %v848, 0
        %852 = vmatprep.subr.bf16.mxu0 0
        %853 = vmatpush1.bf16.msra.mxu0 %v850
        %854 = vmatprep.subr.bf16.mxu0 0
        %855 = vmatpush1.bf16.msra.mxu0 0
        %856 = vmatprep.subr.bf16.mxu0 0
        %857 = vmatpush1.bf16.msra.mxu0 0
        %858 = vmatprep.subr.bf16.mxu0 0
        %859 = vmatpush1.bf16.msra.mxu0 0
        %860 = vmatprep.subr.bf16.mxu0 0
        %861 = vmatpush1.bf16.msra.mxu0 0
        %862 = vmatprep.subr.bf16.mxu0 0
        %863 = vmatpush1.bf16.msra.mxu0 0
        %864 = vmatprep.subr.bf16.mxu0 0
        %865 = vmatpush1.bf16.msra.mxu0 0
        %866 = vmatprep.subr.bf16.mxu0 0
        %867 = vmatpush1.bf16.msra.mxu0 0
        %868 = vmatprep.subr.bf16.mxu0 0
        %869 = vmatpush1.bf16.msra.mxu0 0
        %870 = vmatprep.subr.bf16.mxu0 0
        %871 = vmatpush1.bf16.msra.mxu0 0
        %872 = vmatprep.subr.bf16.mxu0 0
        %873 = vmatpush1.bf16.msra.mxu0 0
        %874 = vmatprep.subr.bf16.mxu0 0
        %875 = vmatpush1.bf16.msra.mxu0 0
        %876 = vmatprep.subr.bf16.mxu0 0
        %877 = vmatpush1.bf16.msra.mxu0 0
        %878 = vmatprep.subr.bf16.mxu0 0
        %879 = vmatpush1.bf16.msra.mxu0 0
        %880 = vmatprep.subr.bf16.mxu0 0
        %881 = vmatpush1.bf16.msra.mxu0 0
        %882 = vmatprep.subr.bf16.mxu0 0
        %883 = vmatpush1.bf16.msra.mxu0 0
        %884 = vmatprep.mubr.bf16.mxu0 0
        %885 = vmatmul.mubr.bf16.gmra.mrb[0].mxu0 %v389
        %v886 = vpop.f32.mrb[0].mxu0
        %v887 = vadd.f32 %v380, %v886
        %v888 = vpop.f32.mrb[0].mxu0
        %v889 = vpop.f32.mrb[0].mxu0
        %v890 = vadd.f32 %v385, %v889
        %v891 = vpop.f32.mrb[0].mxu0
        %892 = vdwg.mxu0
        %v893 = vmax.f32 %v887, 0.0
        %v894 = vmax.f32 %v890, 0.0
        %v895 = vpack.c.bf16 %v894, %v893
        %896 = vmatprep.subr.bf16.mxu0 0
        %897 = vmatpush1.bf16.msra.mxu0 %v895
        %898 = vmatprep.subr.bf16.mxu0 0
        %899 = vmatpush1.bf16.msra.mxu0 0
        %900 = vmatprep.subr.bf16.mxu0 0
        %901 = vmatpush1.bf16.msra.mxu0 0
        %902 = vmatprep.subr.bf16.mxu0 0
        %903 = vmatpush1.bf16.msra.mxu0 0
        %904 = vmatprep.subr.bf16.mxu0 0
        %905 = vmatpush1.bf16.msra.mxu0 0
        %906 = vmatprep.subr.bf16.mxu0 0
        %907 = vmatpush1.bf16.msra.mxu0 0
        %908 = vmatprep.subr.bf16.mxu0 0
        %909 = vmatpush1.bf16.msra.mxu0 0
        %910 = vmatprep.subr.bf16.mxu0 0
        %911 = vmatpush1.bf16.msra.mxu0 0
        %912 = vmatprep.subr.bf16.mxu0 0
        %913 = vmatpush1.bf16.msra.mxu0 0
        %914 = vmatprep.subr.bf16.mxu0 0
        %915 = vmatpush1.bf16.msra.mxu0 0
        %916 = vmatprep.subr.bf16.mxu0 0
        %917 = vmatpush1.bf16.msra.mxu0 0
        %918 = vmatprep.subr.bf16.mxu0 0
        %919 = vmatpush1.bf16.msra.mxu0 0
        %920 = vmatprep.subr.bf16.mxu0 0
        %921 = vmatpush1.bf16.msra.mxu0 0
        %922 = vmatprep.subr.bf16.mxu0 0
        %923 = vmatpush1.bf16.msra.mxu0 0
        %924 = vmatprep.subr.bf16.mxu0 0
        %925 = vmatpush1.bf16.msra.mxu0 0
        %926 = vmatprep.subr.bf16.mxu0 0
        %927 = vmatpush1.bf16.msra.mxu0 0
        %928 = vmatprep.mubr.bf16.mxu0 0
        %929 = vmatmul.mubr.bf16.gmra.mrb[0].mxu0 %v446
        %v930 = vpop.f32.mrb[0].mxu0
        %v931 = vadd.f32 %v442, %v930
        %v932 = vpop.f32.mrb[0].mxu0
        %v933 = vpop.f32.mrb[0].mxu0
        %v934 = vpop.f32.mrb[0].mxu0
        %935 = vdwg.mxu0
        %v936 = vmax.f32 %v931, 0.0
        %v937 = vpack.c.bf16 %v936, %v936
        %v939 = vsel %vm391, %v937, 0
        %941 = vmatprep.subr.bf16.mxu0 0
        %942 = vmatpush1.bf16.msra.mxu0 %v939
        %943 = vmatprep.subr.bf16.mxu0 0
        %944 = vmatpush1.bf16.msra.mxu0 0
        %945 = vmatprep.subr.bf16.mxu0 0
        %946 = vmatpush1.bf16.msra.mxu0 0
        %947 = vmatprep.subr.bf16.mxu0 0
        %948 = vmatpush1.bf16.msra.mxu0 0
        %949 = vmatprep.subr.bf16.mxu0 0
        %950 = vmatpush1.bf16.msra.mxu0 0
        %951 = vmatprep.subr.bf16.mxu0 0
        %952 = vmatpush1.bf16.msra.mxu0 0
        %953 = vmatprep.subr.bf16.mxu0 0
        %954 = vmatpush1.bf16.msra.mxu0 0
        %955 = vmatprep.subr.bf16.mxu0 0
        %956 = vmatpush1.bf16.msra.mxu0 0
        %957 = vmatprep.subr.bf16.mxu0 0
        %958 = vmatpush1.bf16.msra.mxu0 0
        %959 = vmatprep.subr.bf16.mxu0 0
        %960 = vmatpush1.bf16.msra.mxu0 0
        %961 = vmatprep.subr.bf16.mxu0 0
        %962 = vmatpush1.bf16.msra.mxu0 0
        %963 = vmatprep.subr.bf16.mxu0 0
        %964 = vmatpush1.bf16.msra.mxu0 0
        %965 = vmatprep.subr.bf16.mxu0 0
        %966 = vmatpush1.bf16.msra.mxu0 0
        %967 = vmatprep.subr.bf16.mxu0 0
        %968 = vmatpush1.bf16.msra.mxu0 0
        %969 = vmatprep.subr.bf16.mxu0 0
        %970 = vmatpush1.bf16.msra.mxu0 0
        %971 = vmatprep.subr.bf16.mxu0 0
        %972 = vmatpush1.bf16.msra.mxu0 0
        %973 = vmatprep.mubr.bf16.mxu0 0
        %974 = vmatmul.mubr.bf16.gmra.mrb[0].mxu0 %v496
        %v975 = vpop.f32.mrb[0].mxu0
        %v976 = vadd.f32 %v493, %v975
        %v977 = vpop.f32.mrb[0].mxu0
        %v978 = vpop.f32.mrb[0].mxu0
        %v979 = vpop.f32.mrb[0].mxu0
        %980 = vdwg.mxu0
        %v981 = vxor.u32 %v976, 2147483648
        %v982 = vmul.f32 %v981, 1.442695
        %v983 = vpow.pop %v982
        %v984 = vadd.f32 %v983, 1.0
        %v985 = vrcp.pop %v984
        %v986 = vmul.f32 1.0, %v985
        %v987 = vmax.f32 %v840, %v986
        %v988 = vld [vmem:[%s305 + $0x10] sm:$0xf]
        %v989 = vld [vmem:[%s305 + $0x30] sm:$0xf]
        %v990 = vunpack.c.l.bf16 %v988
        %v991 = vunpack.c.l.bf16 %v989
        %v992 = vmul.f32 %v990, %v360
        %v993 = vmul.f32 %v991, %v361
        %v994 = vadd.f32 %v992, %v993
        %v995 = vpack.c.bf16 %v994, %v994
        %v997 = vsel %vm391, %v995, 0
        %999 = vmatprep.subr.bf16.mxu0 0
        %1000 = vmatpush1.bf16.msra.mxu0 %v997
        %1001 = vmatprep.subr.bf16.mxu0 0
        %1002 = vmatpush1.bf16.msra.mxu0 0
        %1003 = vmatprep.subr.bf16.mxu0 0
        %1004 = vmatpush1.bf16.msra.mxu0 0
        %1005 = vmatprep.subr.bf16.mxu0 0
        %1006 = vmatpush1.bf16.msra.mxu0 0
        %1007 = vmatprep.subr.bf16.mxu0 0
        %1008 = vmatpush1.bf16.msra.mxu0 0
        %1009 = vmatprep.subr.bf16.mxu0 0
        %1010 = vmatpush1.bf16.msra.mxu0 0
        %1011 = vmatprep.subr.bf16.mxu0 0
        %1012 = vmatpush1.bf16.msra.mxu0 0
        %1013 = vmatprep.subr.bf16.mxu0 0
        %1014 = vmatpush1.bf16.msra.mxu0 0
        %1015 = vmatprep.subr.bf16.mxu0 0
        %1016 = vmatpush1.bf16.msra.mxu0 0
        %1017 = vmatprep.subr.bf16.mxu0 0
        %1018 = vmatpush1.bf16.msra.mxu0 0
        %1019 = vmatprep.subr.bf16.mxu0 0
        %1020 = vmatpush1.bf16.msra.mxu0 0
        %1021 = vmatprep.subr.bf16.mxu0 0
        %1022 = vmatpush1.bf16.msra.mxu0 0
        %1023 = vmatprep.subr.bf16.mxu0 0
        %1024 = vmatpush1.bf16.msra.mxu0 0
        %1025 = vmatprep.subr.bf16.mxu0 0
        %1026 = vmatpush1.bf16.msra.mxu0 0
        %1027 = vmatprep.subr.bf16.mxu0 0
        %1028 = vmatpush1.bf16.msra.mxu0 0
        %1029 = vmatprep.subr.bf16.mxu0 0
        %1030 = vmatpush1.bf16.msra.mxu0 0
        %1031 = vmatprep.mubr.bf16.mxu0 0
        %1032 = vmatmul.mubr.bf16.gmra.mrb[0].mxu0 %v389
        %v1033 = vpop.f32.mrb[0].mxu0
        %v1034 = vadd.f32 %v380, %v1033
        %v1035 = vpop.f32.mrb[0].mxu0
        %v1036 = vpop.f32.mrb[0].mxu0
        %v1037 = vadd.f32 %v385, %v1036
        %v1038 = vpop.f32.mrb[0].mxu0
        %1039 = vdwg.mxu0
        %v1040 = vmax.f32 %v1034, 0.0
        %v1041 = vmax.f32 %v1037, 0.0
        %v1042 = vpack.c.bf16 %v1041, %v1040
        %1043 = vmatprep.subr.bf16.mxu0 0
        %1044 = vmatpush1.bf16.msra.mxu0 %v1042
        %1045 = vmatprep.subr.bf16.mxu0 0
        %1046 = vmatpush1.bf16.msra.mxu0 0
        %1047 = vmatprep.subr.bf16.mxu0 0
        %1048 = vmatpush1.bf16.msra.mxu0 0
        %1049 = vmatprep.subr.bf16.mxu0 0
        %1050 = vmatpush1.bf16.msra.mxu0 0
        %1051 = vmatprep.subr.bf16.mxu0 0
        %1052 = vmatpush1.bf16.msra.mxu0 0
        %1053 = vmatprep.subr.bf16.mxu0 0
        %1054 = vmatpush1.bf16.msra.mxu0 0
        %1055 = vmatprep.subr.bf16.mxu0 0
        %1056 = vmatpush1.bf16.msra.mxu0 0
        %1057 = vmatprep.subr.bf16.mxu0 0
        %1058 = vmatpush1.bf16.msra.mxu0 0
        %1059 = vmatprep.subr.bf16.mxu0 0
        %1060 = vmatpush1.bf16.msra.mxu0 0
        %1061 = vmatprep.subr.bf16.mxu0 0
        %1062 = vmatpush1.bf16.msra.mxu0 0
        %1063 = vmatprep.subr.bf16.mxu0 0
        %1064 = vmatpush1.bf16.msra.mxu0 0
        %1065 = vmatprep.subr.bf16.mxu0 0
        %1066 = vmatpush1.bf16.msra.mxu0 0
        %1067 = vmatprep.subr.bf16.mxu0 0
        %1068 = vmatpush1.bf16.msra.mxu0 0
        %1069 = vmatprep.subr.bf16.mxu0 0
        %1070 = vmatpush1.bf16.msra.mxu0 0
        %1071 = vmatprep.subr.bf16.mxu0 0
        %1072 = vmatpush1.bf16.msra.mxu0 0
        %1073 = vmatprep.subr.bf16.mxu0 0
        %1074 = vmatpush1.bf16.msra.mxu0 0
        %1075 = vmatprep.mubr.bf16.mxu0 0
        %1076 = vmatmul.mubr.bf16.gmra.mrb[0].mxu0 %v446
        %v1077 = vpop.f32.mrb[0].mxu0
        %v1078 = vadd.f32 %v442, %v1077
        %v1079 = vpop.f32.mrb[0].mxu0
        %v1080 = vpop.f32.mrb[0].mxu0
        %v1081 = vpop.f32.mrb[0].mxu0
        %1082 = vdwg.mxu0
        %v1083 = vmax.f32 %v1078, 0.0
        %v1084 = vpack.c.bf16 %v1083, %v1083
        %v1086 = vsel %vm391, %v1084, 0
        %1088 = vmatprep.subr.bf16.mxu0 0
        %1089 = vmatpush1.bf16.msra.mxu0 %v1086
        %1090 = vmatprep.subr.bf16.mxu0 0
        %1091 = vmatpush1.bf16.msra.mxu0 0
        %1092 = vmatprep.subr.bf16.mxu0 0
        %1093 = vmatpush1.bf16.msra.mxu0 0
        %1094 = vmatprep.subr.bf16.mxu0 0
        %1095 = vmatpush1.bf16.msra.mxu0 0
        %1096 = vmatprep.subr.bf16.mxu0 0
        %1097 = vmatpush1.bf16.msra.mxu0 0
        %1098 = vmatprep.subr.bf16.mxu0 0
        %1099 = vmatpush1.bf16.msra.mxu0 0
        %1100 = vmatprep.subr.bf16.mxu0 0
        %1101 = vmatpush1.bf16.msra.mxu0 0
        %1102 = vmatprep.subr.bf16.mxu0 0
        %1103 = vmatpush1.bf16.msra.mxu0 0
        %1104 = vmatprep.subr.bf16.mxu0 0
        %1105 = vmatpush1.bf16.msra.mxu0 0
        %1106 = vmatprep.subr.bf16.mxu0 0
        %1107 = vmatpush1.bf16.msra.mxu0 0
        %1108 = vmatprep.subr.bf16.mxu0 0
        %1109 = vmatpush1.bf16.msra.mxu0 0
        %1110 = vmatprep.subr.bf16.mxu0 0
        %1111 = vmatpush1.bf16.msra.mxu0 0
        %1112 = vmatprep.subr.bf16.mxu0 0
        %1113 = vmatpush1.bf16.msra.mxu0 0
        %1114 = vmatprep.subr.bf16.mxu0 0
        %1115 = vmatpush1.bf16.msra.mxu0 0
        %1116 = vmatprep.subr.bf16.mxu0 0
        %1117 = vmatpush1.bf16.msra.mxu0 0
        %1118 = vmatprep.subr.bf16.mxu0 0
        %1119 = vmatpush1.bf16.msra.mxu0 0
        %1120 = vmatprep.mubr.bf16.mxu0 0
        %1121 = vmatmul.mubr.bf16.gmra.mrb[0].mxu0 %v496
        %v1122 = vpop.f32.mrb[0].mxu0
        %v1123 = vadd.f32 %v493, %v1122
        %v1124 = vpop.f32.mrb[0].mxu0
        %v1125 = vpop.f32.mrb[0].mxu0
        %v1126 = vpop.f32.mrb[0].mxu0
        %1127 = vdwg.mxu0
        %v1128 = vxor.u32 %v1123, 2147483648
        %v1129 = vmul.f32 %v1128, 1.442695
        %v1130 = vpow.pop %v1129
        %v1131 = vadd.f32 %v1130, 1.0
        %v1132 = vrcp.pop %v1131
        %v1133 = vmul.f32 1.0, %v1132
        %v1134 = vmax.f32 %v987, %v1133
        %v1135 = vld [vmem:[%s305 + $0x14] sm:$0xf]
        %v1136 = vld [vmem:[%s305 + $0x34] sm:$0xf]
        %v1137 = vunpack.c.l.bf16 %v1135
        %v1138 = vunpack.c.l.bf16 %v1136
        %v1139 = vmul.f32 %v1137, %v360
        %v1140 = vmul.f32 %v1138, %v361
        %v1141 = vadd.f32 %v1139, %v1140
        %v1142 = vpack.c.bf16 %v1141, %v1141
        %v1144 = vsel %vm391, %v1142, 0
        %1146 = vmatprep.subr.bf16.mxu0 0
        %1147 = vmatpush1.bf16.msra.mxu0 %v1144
        %1148 = vmatprep.subr.bf16.mxu0 0
        %1149 = vmatpush1.bf16.msra.mxu0 0
        %1150 = vmatprep.subr.bf16.mxu0 0
        %1151 = vmatpush1.bf16.msra.mxu0 0
        %1152 = vmatprep.subr.bf16.mxu0 0
        %1153 = vmatpush1.bf16.msra.mxu0 0
        %1154 = vmatprep.subr.bf16.mxu0 0
        %1155 = vmatpush1.bf16.msra.mxu0 0
        %1156 = vmatprep.subr.bf16.mxu0 0
        %1157 = vmatpush1.bf16.msra.mxu0 0
        %1158 = vmatprep.subr.bf16.mxu0 0
        %1159 = vmatpush1.bf16.msra.mxu0 0
        %1160 = vmatprep.subr.bf16.mxu0 0
        %1161 = vmatpush1.bf16.msra.mxu0 0
        %1162 = vmatprep.subr.bf16.mxu0 0
        %1163 = vmatpush1.bf16.msra.mxu0 0
        %1164 = vmatprep.subr.bf16.mxu0 0
        %1165 = vmatpush1.bf16.msra.mxu0 0
        %1166 = vmatprep.subr.bf16.mxu0 0
        %1167 = vmatpush1.bf16.msra.mxu0 0
        %1168 = vmatprep.subr.bf16.mxu0 0
        %1169 = vmatpush1.bf16.msra.mxu0 0
        %1170 = vmatprep.subr.bf16.mxu0 0
        %1171 = vmatpush1.bf16.msra.mxu0 0
        %1172 = vmatprep.subr.bf16.mxu0 0
        %1173 = vmatpush1.bf16.msra.mxu0 0
        %1174 = vmatprep.subr.bf16.mxu0 0
        %1175 = vmatpush1.bf16.msra.mxu0 0
        %1176 = vmatprep.subr.bf16.mxu0 0
        %1177 = vmatpush1.bf16.msra.mxu0 0
        %1178 = vmatprep.mubr.bf16.mxu0 0
        %1179 = vmatmul.mubr.bf16.gmra.mrb[0].mxu0 %v389
        %v1180 = vpop.f32.mrb[0].mxu0
        %v1181 = vadd.f32 %v380, %v1180
        %v1182 = vpop.f32.mrb[0].mxu0
        %v1183 = vpop.f32.mrb[0].mxu0
        %v1184 = vadd.f32 %v385, %v1183
        %v1185 = vpop.f32.mrb[0].mxu0
        %1186 = vdwg.mxu0
        %v1187 = vmax.f32 %v1181, 0.0
        %v1188 = vmax.f32 %v1184, 0.0
        %v1189 = vpack.c.bf16 %v1188, %v1187
        %1190 = vmatprep.subr.bf16.mxu0 0
        %1191 = vmatpush1.bf16.msra.mxu0 %v1189
        %1192 = vmatprep.subr.bf16.mxu0 0
        %1193 = vmatpush1.bf16.msra.mxu0 0
        %1194 = vmatprep.subr.bf16.mxu0 0
        %1195 = vmatpush1.bf16.msra.mxu0 0
        %1196 = vmatprep.subr.bf16.mxu0 0
        %1197 = vmatpush1.bf16.msra.mxu0 0
        %1198 = vmatprep.subr.bf16.mxu0 0
        %1199 = vmatpush1.bf16.msra.mxu0 0
        %1200 = vmatprep.subr.bf16.mxu0 0
        %1201 = vmatpush1.bf16.msra.mxu0 0
        %1202 = vmatprep.subr.bf16.mxu0 0
        %1203 = vmatpush1.bf16.msra.mxu0 0
        %1204 = vmatprep.subr.bf16.mxu0 0
        %1205 = vmatpush1.bf16.msra.mxu0 0
        %1206 = vmatprep.subr.bf16.mxu0 0
        %1207 = vmatpush1.bf16.msra.mxu0 0
        %1208 = vmatprep.subr.bf16.mxu0 0
        %1209 = vmatpush1.bf16.msra.mxu0 0
        %1210 = vmatprep.subr.bf16.mxu0 0
        %1211 = vmatpush1.bf16.msra.mxu0 0
        %1212 = vmatprep.subr.bf16.mxu0 0
        %1213 = vmatpush1.bf16.msra.mxu0 0
        %1214 = vmatprep.subr.bf16.mxu0 0
        %1215 = vmatpush1.bf16.msra.mxu0 0
        %1216 = vmatprep.subr.bf16.mxu0 0
        %1217 = vmatpush1.bf16.msra.mxu0 0
        %1218 = vmatprep.subr.bf16.mxu0 0
        %1219 = vmatpush1.bf16.msra.mxu0 0
        %1220 = vmatprep.subr.bf16.mxu0 0
        %1221 = vmatpush1.bf16.msra.mxu0 0
        %1222 = vmatprep.mubr.bf16.mxu0 0
        %1223 = vmatmul.mubr.bf16.gmra.mrb[0].mxu0 %v446
        %v1224 = vpop.f32.mrb[0].mxu0
        %v1225 = vadd.f32 %v442, %v1224
        %v1226 = vpop.f32.mrb[0].mxu0
        %v1227 = vpop.f32.mrb[0].mxu0
        %v1228 = vpop.f32.mrb[0].mxu0
        %1229 = vdwg.mxu0
        %v1230 = vmax.f32 %v1225, 0.0
        %v1231 = vpack.c.bf16 %v1230, %v1230
        %v1233 = vsel %vm391, %v1231, 0
        %1235 = vmatprep.subr.bf16.mxu0 0
        %1236 = vmatpush1.bf16.msra.mxu0 %v1233
        %1237 = vmatprep.subr.bf16.mxu0 0
        %1238 = vmatpush1.bf16.msra.mxu0 0
        %1239 = vmatprep.subr.bf16.mxu0 0
        %1240 = vmatpush1.bf16.msra.mxu0 0
        %1241 = vmatprep.subr.bf16.mxu0 0
        %1242 = vmatpush1.bf16.msra.mxu0 0
        %1243 = vmatprep.subr.bf16.mxu0 0
        %1244 = vmatpush1.bf16.msra.mxu0 0
        %1245 = vmatprep.subr.bf16.mxu0 0
        %1246 = vmatpush1.bf16.msra.mxu0 0
        %1247 = vmatprep.subr.bf16.mxu0 0
        %1248 = vmatpush1.bf16.msra.mxu0 0
        %1249 = vmatprep.subr.bf16.mxu0 0
        %1250 = vmatpush1.bf16.msra.mxu0 0
        %1251 = vmatprep.subr.bf16.mxu0 0
        %1252 = vmatpush1.bf16.msra.mxu0 0
        %1253 = vmatprep.subr.bf16.mxu0 0
        %1254 = vmatpush1.bf16.msra.mxu0 0
        %1255 = vmatprep.subr.bf16.mxu0 0
        %1256 = vmatpush1.bf16.msra.mxu0 0
        %1257 = vmatprep.subr.bf16.mxu0 0
        %1258 = vmatpush1.bf16.msra.mxu0 0
        %1259 = vmatprep.subr.bf16.mxu0 0
        %1260 = vmatpush1.bf16.msra.mxu0 0
        %1261 = vmatprep.subr.bf16.mxu0 0
        %1262 = vmatpush1.bf16.msra.mxu0 0
        %1263 = vmatprep.subr.bf16.mxu0 0
        %1264 = vmatpush1.bf16.msra.mxu0 0
        %1265 = vmatprep.subr.bf16.mxu0 0
        %1266 = vmatpush1.bf16.msra.mxu0 0
        %1267 = vmatprep.mubr.bf16.mxu0 0
        %1268 = vmatmul.mubr.bf16.gmra.mrb[0].mxu0 %v496
        %v1269 = vpop.f32.mrb[0].mxu0
        %v1270 = vadd.f32 %v493, %v1269
        %v1271 = vpop.f32.mrb[0].mxu0
        %v1272 = vpop.f32.mrb[0].mxu0
        %v1273 = vpop.f32.mrb[0].mxu0
        %1274 = vdwg.mxu0
        %v1275 = vxor.u32 %v1270, 2147483648
        %v1276 = vmul.f32 %v1275, 1.442695
        %v1277 = vpow.pop %v1276
        %v1278 = vadd.f32 %v1277, 1.0
        %v1279 = vrcp.pop %v1278
        %v1280 = vmul.f32 1.0, %v1279
        %v1281 = vmax.f32 %v1134, %v1280
        %v1282 = vld [vmem:[%s305 + $0x18] sm:$0xf]
        %v1283 = vld [vmem:[%s305 + $0x38] sm:$0xf]
        %v1284 = vunpack.c.l.bf16 %v1282
        %v1285 = vunpack.c.l.bf16 %v1283
        %v1286 = vmul.f32 %v1284, %v360
        %v1287 = vmul.f32 %v1285, %v361
        %v1288 = vadd.f32 %v1286, %v1287
        %v1289 = vpack.c.bf16 %v1288, %v1288
        %v1291 = vsel %vm391, %v1289, 0
        %1293 = vmatprep.subr.bf16.mxu0 0
        %1294 = vmatpush1.bf16.msra.mxu0 %v1291
        %1295 = vmatprep.subr.bf16.mxu0 0
        %1296 = vmatpush1.bf16.msra.mxu0 0
        %1297 = vmatprep.subr.bf16.mxu0 0
        %1298 = vmatpush1.bf16.msra.mxu0 0
        %1299 = vmatprep.subr.bf16.mxu0 0
        %1300 = vmatpush1.bf16.msra.mxu0 0
        %1301 = vmatprep.subr.bf16.mxu0 0
        %1302 = vmatpush1.bf16.msra.mxu0 0
        %1303 = vmatprep.subr.bf16.mxu0 0
        %1304 = vmatpush1.bf16.msra.mxu0 0
        %1305 = vmatprep.subr.bf16.mxu0 0
        %1306 = vmatpush1.bf16.msra.mxu0 0
        %1307 = vmatprep.subr.bf16.mxu0 0
        %1308 = vmatpush1.bf16.msra.mxu0 0
        %1309 = vmatprep.subr.bf16.mxu0 0
        %1310 = vmatpush1.bf16.msra.mxu0 0
        %1311 = vmatprep.subr.bf16.mxu0 0
        %1312 = vmatpush1.bf16.msra.mxu0 0
        %1313 = vmatprep.subr.bf16.mxu0 0
        %1314 = vmatpush1.bf16.msra.mxu0 0
        %1315 = vmatprep.subr.bf16.mxu0 0
        %1316 = vmatpush1.bf16.msra.mxu0 0
        %1317 = vmatprep.subr.bf16.mxu0 0
        %1318 = vmatpush1.bf16.msra.mxu0 0
        %1319 = vmatprep.subr.bf16.mxu0 0
        %1320 = vmatpush1.bf16.msra.mxu0 0
        %1321 = vmatprep.subr.bf16.mxu0 0
        %1322 = vmatpush1.bf16.msra.mxu0 0
        %1323 = vmatprep.subr.bf16.mxu0 0
        %1324 = vmatpush1.bf16.msra.mxu0 0
        %1325 = vmatprep.mubr.bf16.mxu0 0
        %1326 = vmatmul.mubr.bf16.gmra.mrb[0].mxu0 %v389
        %v1327 = vpop.f32.mrb[0].mxu0
        %v1328 = vadd.f32 %v380, %v1327
        %v1329 = vpop.f32.mrb[0].mxu0
        %v1330 = vpop.f32.mrb[0].mxu0
        %v1331 = vadd.f32 %v385, %v1330
        %v1332 = vpop.f32.mrb[0].mxu0
        %1333 = vdwg.mxu0
        %v1334 = vmax.f32 %v1328, 0.0
        %v1335 = vmax.f32 %v1331, 0.0
        %v1336 = vpack.c.bf16 %v1335, %v1334
        %1337 = vmatprep.subr.bf16.mxu0 0
        %1338 = vmatpush1.bf16.msra.mxu0 %v1336
        %1339 = vmatprep.subr.bf16.mxu0 0
        %1340 = vmatpush1.bf16.msra.mxu0 0
        %1341 = vmatprep.subr.bf16.mxu0 0
        %1342 = vmatpush1.bf16.msra.mxu0 0
        %1343 = vmatprep.subr.bf16.mxu0 0
        %1344 = vmatpush1.bf16.msra.mxu0 0
        %1345 = vmatprep.subr.bf16.mxu0 0
        %1346 = vmatpush1.bf16.msra.mxu0 0
        %1347 = vmatprep.subr.bf16.mxu0 0
        %1348 = vmatpush1.bf16.msra.mxu0 0
        %1349 = vmatprep.subr.bf16.mxu0 0
        %1350 = vmatpush1.bf16.msra.mxu0 0
        %1351 = vmatprep.subr.bf16.mxu0 0
        %1352 = vmatpush1.bf16.msra.mxu0 0
        %1353 = vmatprep.subr.bf16.mxu0 0
        %1354 = vmatpush1.bf16.msra.mxu0 0
        %1355 = vmatprep.subr.bf16.mxu0 0
        %1356 = vmatpush1.bf16.msra.mxu0 0
        %1357 = vmatprep.subr.bf16.mxu0 0
        %1358 = vmatpush1.bf16.msra.mxu0 0
        %1359 = vmatprep.subr.bf16.mxu0 0
        %1360 = vmatpush1.bf16.msra.mxu0 0
        %1361 = vmatprep.subr.bf16.mxu0 0
        %1362 = vmatpush1.bf16.msra.mxu0 0
        %1363 = vmatprep.subr.bf16.mxu0 0
        %1364 = vmatpush1.bf16.msra.mxu0 0
        %1365 = vmatprep.subr.bf16.mxu0 0
        %1366 = vmatpush1.bf16.msra.mxu0 0
        %1367 = vmatprep.subr.bf16.mxu0 0
        %1368 = vmatpush1.bf16.msra.mxu0 0
        %1369 = vmatprep.mubr.bf16.mxu0 0
        %1370 = vmatmul.mubr.bf16.gmra.mrb[0].mxu0 %v446
        %v1371 = vpop.f32.mrb[0].mxu0
        %v1372 = vadd.f32 %v442, %v1371
        %v1373 = vpop.f32.mrb[0].mxu0
        %v1374 = vpop.f32.mrb[0].mxu0
        %v1375 = vpop.f32.mrb[0].mxu0
        %1376 = vdwg.mxu0
        %v1377 = vmax.f32 %v1372, 0.0
        %v1378 = vpack.c.bf16 %v1377, %v1377
        %v1380 = vsel %vm391, %v1378, 0
        %1382 = vmatprep.subr.bf16.mxu0 0
        %1383 = vmatpush1.bf16.msra.mxu0 %v1380
        %1384 = vmatprep.subr.bf16.mxu0 0
        %1385 = vmatpush1.bf16.msra.mxu0 0
        %1386 = vmatprep.subr.bf16.mxu0 0
        %1387 = vmatpush1.bf16.msra.mxu0 0
        %1388 = vmatprep.subr.bf16.mxu0 0
        %1389 = vmatpush1.bf16.msra.mxu0 0
        %1390 = vmatprep.subr.bf16.mxu0 0
        %1391 = vmatpush1.bf16.msra.mxu0 0
        %1392 = vmatprep.subr.bf16.mxu0 0
        %1393 = vmatpush1.bf16.msra.mxu0 0
        %1394 = vmatprep.subr.bf16.mxu0 0
        %1395 = vmatpush1.bf16.msra.mxu0 0
        %1396 = vmatprep.subr.bf16.mxu0 0
        %1397 = vmatpush1.bf16.msra.mxu0 0
        %1398 = vmatprep.subr.bf16.mxu0 0
        %1399 = vmatpush1.bf16.msra.mxu0 0
        %1400 = vmatprep.subr.bf16.mxu0 0
        %1401 = vmatpush1.bf16.msra.mxu0 0
        %1402 = vmatprep.subr.bf16.mxu0 0
        %1403 = vmatpush1.bf16.msra.mxu0 0
        %1404 = vmatprep.subr.bf16.mxu0 0
        %1405 = vmatpush1.bf16.msra.mxu0 0
        %1406 = vmatprep.subr.bf16.mxu0 0
        %1407 = vmatpush1.bf16.msra.mxu0 0
        %1408 = vmatprep.subr.bf16.mxu0 0
        %1409 = vmatpush1.bf16.msra.mxu0 0
        %1410 = vmatprep.subr.bf16.mxu0 0
        %1411 = vmatpush1.bf16.msra.mxu0 0
        %1412 = vmatprep.subr.bf16.mxu0 0
        %1413 = vmatpush1.bf16.msra.mxu0 0
        %1414 = vmatprep.mubr.bf16.mxu0 0
        %1415 = vmatmul.mubr.bf16.gmra.mrb[0].mxu0 %v496
        %v1416 = vpop.f32.mrb[0].mxu0
        %v1417 = vadd.f32 %v493, %v1416
        %v1418 = vpop.f32.mrb[0].mxu0
        %v1419 = vpop.f32.mrb[0].mxu0
        %v1420 = vpop.f32.mrb[0].mxu0
        %1421 = vdwg.mxu0
        %v1422 = vxor.u32 %v1417, 2147483648
        %v1423 = vmul.f32 %v1422, 1.442695
        %v1424 = vpow.pop %v1423
        %v1425 = vadd.f32 %v1424, 1.0
        %v1426 = vrcp.pop %v1425
        %v1427 = vmul.f32 1.0, %v1426
        %v1428 = vmax.f32 %v1281, %v1427
        %v1429 = vld [vmem:[%s305 + $0x1c] sm:$0xf]
        %v1430 = vld [vmem:[%s305 + $0x3c] sm:$0xf]
        %v1431 = vunpack.c.l.bf16 %v1429
        %v1432 = vunpack.c.l.bf16 %v1430
        %v1433 = vmul.f32 %v1431, %v360
        %v1434 = vmul.f32 %v1432, %v361
        %v1435 = vadd.f32 %v1433, %v1434
        %v1436 = vpack.c.bf16 %v1435, %v1435
        %v1438 = vsel %vm391, %v1436, 0
        %1440 = vmatprep.subr.bf16.mxu0 0
        %1441 = vmatpush1.bf16.msra.mxu0 %v1438
        %1442 = vmatprep.subr.bf16.mxu0 0
        %1443 = vmatpush1.bf16.msra.mxu0 0
        %1444 = vmatprep.subr.bf16.mxu0 0
        %1445 = vmatpush1.bf16.msra.mxu0 0
        %1446 = vmatprep.subr.bf16.mxu0 0
        %1447 = vmatpush1.bf16.msra.mxu0 0
        %1448 = vmatprep.subr.bf16.mxu0 0
        %1449 = vmatpush1.bf16.msra.mxu0 0
        %1450 = vmatprep.subr.bf16.mxu0 0
        %1451 = vmatpush1.bf16.msra.mxu0 0
        %1452 = vmatprep.subr.bf16.mxu0 0
        %1453 = vmatpush1.bf16.msra.mxu0 0
        %1454 = vmatprep.subr.bf16.mxu0 0
        %1455 = vmatpush1.bf16.msra.mxu0 0
        %1456 = vmatprep.subr.bf16.mxu0 0
        %1457 = vmatpush1.bf16.msra.mxu0 0
        %1458 = vmatprep.subr.bf16.mxu0 0
        %1459 = vmatpush1.bf16.msra.mxu0 0
        %1460 = vmatprep.subr.bf16.mxu0 0
        %1461 = vmatpush1.bf16.msra.mxu0 0
        %1462 = vmatprep.subr.bf16.mxu0 0
        %1463 = vmatpush1.bf16.msra.mxu0 0
        %1464 = vmatprep.subr.bf16.mxu0 0
        %1465 = vmatpush1.bf16.msra.mxu0 0
        %1466 = vmatprep.subr.bf16.mxu0 0
        %1467 = vmatpush1.bf16.msra.mxu0 0
        %1468 = vmatprep.subr.bf16.mxu0 0
        %1469 = vmatpush1.bf16.msra.mxu0 0
        %1470 = vmatprep.subr.bf16.mxu0 0
        %1471 = vmatpush1.bf16.msra.mxu0 0
        %1472 = vmatprep.mubr.bf16.mxu0 0
        %1473 = vmatmul.mubr.bf16.gmra.mrb[0].mxu0 %v389
        %v1474 = vpop.f32.mrb[0].mxu0
        %v1475 = vadd.f32 %v380, %v1474
        %v1476 = vpop.f32.mrb[0].mxu0
        %v1477 = vpop.f32.mrb[0].mxu0
        %v1478 = vadd.f32 %v385, %v1477
        %v1479 = vpop.f32.mrb[0].mxu0
        %1480 = vdwg.mxu0
        %v1481 = vmax.f32 %v1475, 0.0
        %v1482 = vmax.f32 %v1478, 0.0
        %v1483 = vpack.c.bf16 %v1482, %v1481
        %1484 = vmatprep.subr.bf16.mxu0 0
        %1485 = vmatpush1.bf16.msra.mxu0 %v1483
        %1486 = vmatprep.subr.bf16.mxu0 0
        %1487 = vmatpush1.bf16.msra.mxu0 0
        %1488 = vmatprep.subr.bf16.mxu0 0
        %1489 = vmatpush1.bf16.msra.mxu0 0
        %1490 = vmatprep.subr.bf16.mxu0 0
        %1491 = vmatpush1.bf16.msra.mxu0 0
        %1492 = vmatprep.subr.bf16.mxu0 0
        %1493 = vmatpush1.bf16.msra.mxu0 0
        %1494 = vmatprep.subr.bf16.mxu0 0
        %1495 = vmatpush1.bf16.msra.mxu0 0
        %1496 = vmatprep.subr.bf16.mxu0 0
        %1497 = vmatpush1.bf16.msra.mxu0 0
        %1498 = vmatprep.subr.bf16.mxu0 0
        %1499 = vmatpush1.bf16.msra.mxu0 0
        %1500 = vmatprep.subr.bf16.mxu0 0
        %1501 = vmatpush1.bf16.msra.mxu0 0
        %1502 = vmatprep.subr.bf16.mxu0 0
        %1503 = vmatpush1.bf16.msra.mxu0 0
        %1504 = vmatprep.subr.bf16.mxu0 0
        %1505 = vmatpush1.bf16.msra.mxu0 0
        %1506 = vmatprep.subr.bf16.mxu0 0
        %1507 = vmatpush1.bf16.msra.mxu0 0
        %1508 = vmatprep.subr.bf16.mxu0 0
        %1509 = vmatpush1.bf16.msra.mxu0 0
        %1510 = vmatprep.subr.bf16.mxu0 0
        %1511 = vmatpush1.bf16.msra.mxu0 0
        %1512 = vmatprep.subr.bf16.mxu0 0
        %1513 = vmatpush1.bf16.msra.mxu0 0
        %1514 = vmatprep.subr.bf16.mxu0 0
        %1515 = vmatpush1.bf16.msra.mxu0 0
        %1516 = vmatprep.mubr.bf16.mxu0 0
        %1517 = vmatmul.mubr.bf16.gmra.mrb[0].mxu0 %v446
        %v1518 = vpop.f32.mrb[0].mxu0
        %v1519 = vadd.f32 %v442, %v1518
        %v1520 = vpop.f32.mrb[0].mxu0
        %v1521 = vpop.f32.mrb[0].mxu0
        %v1522 = vpop.f32.mrb[0].mxu0
        %1523 = vdwg.mxu0
        %v1524 = vmax.f32 %v1519, 0.0
        %v1525 = vpack.c.bf16 %v1524, %v1524
        %v1527 = vsel %vm391, %v1525, 0
        %1529 = vmatprep.subr.bf16.mxu0 0
        %1530 = vmatpush1.bf16.msra.mxu0 %v1527
        %1531 = vmatprep.subr.bf16.mxu0 0
        %1532 = vmatpush1.bf16.msra.mxu0 0
        %1533 = vmatprep.subr.bf16.mxu0 0
        %1534 = vmatpush1.bf16.msra.mxu0 0
        %1535 = vmatprep.subr.bf16.mxu0 0
        %1536 = vmatpush1.bf16.msra.mxu0 0
        %1537 = vmatprep.subr.bf16.mxu0 0
        %1538 = vmatpush1.bf16.msra.mxu0 0
        %1539 = vmatprep.subr.bf16.mxu0 0
        %1540 = vmatpush1.bf16.msra.mxu0 0
        %1541 = vmatprep.subr.bf16.mxu0 0
        %1542 = vmatpush1.bf16.msra.mxu0 0
        %1543 = vmatprep.subr.bf16.mxu0 0
        %1544 = vmatpush1.bf16.msra.mxu0 0
        %1545 = vmatprep.subr.bf16.mxu0 0
        %1546 = vmatpush1.bf16.msra.mxu0 0
        %1547 = vmatprep.subr.bf16.mxu0 0
        %1548 = vmatpush1.bf16.msra.mxu0 0
        %1549 = vmatprep.subr.bf16.mxu0 0
        %1550 = vmatpush1.bf16.msra.mxu0 0
        %1551 = vmatprep.subr.bf16.mxu0 0
        %1552 = vmatpush1.bf16.msra.mxu0 0
        %1553 = vmatprep.subr.bf16.mxu0 0
        %1554 = vmatpush1.bf16.msra.mxu0 0
        %1555 = vmatprep.subr.bf16.mxu0 0
        %1556 = vmatpush1.bf16.msra.mxu0 0
        %1557 = vmatprep.subr.bf16.mxu0 0
        %1558 = vmatpush1.bf16.msra.mxu0 0
        %1559 = vmatprep.subr.bf16.mxu0 0
        %1560 = vmatpush1.bf16.msra.mxu0 0
        %1561 = vmatprep.mubr.bf16.mxu0 0
        %1562 = vmatmul.mubr.bf16.gmra.mrb[0].mxu0 %v496
        %v1563 = vpop.f32.mrb[0].mxu0
        %v1564 = vadd.f32 %v493, %v1563
        %v1565 = vpop.f32.mrb[0].mxu0
        %v1566 = vpop.f32.mrb[0].mxu0
        %v1567 = vpop.f32.mrb[0].mxu0
        %1568 = vdwg.mxu0
        %v1569 = vxor.u32 %v1564, 2147483648
        %v1570 = vmul.f32 %v1569, 1.442695
        %v1571 = vpow.pop %v1570
        %v1572 = vadd.f32 %v1571, 1.0
        %v1573 = vrcp.pop %v1572
        %v1574 = vmul.f32 1.0, %v1573
        %v1575 = vmax.f32 %v1428, %v1574
        %1576 = vst [vmem:[%s350] sm:$0x1] %v1575
        %p1577 = scmp.eq.s32.totalorder %s37, 0
        // Predicated region
        $region53: #{evaluation_forward.2} parent=35 // pred_check
          %p1578 = pneg %p1577
        $region54: #{evaluation_forward.2} parent=35 // pred_check_branch
          %1580 = sbr.rel (%p1578) target = $region56
        $region55: #{evaluation_forward.2} parent=35 // pred_region
          %1581 = vst [vmem:[#allocation2] sm:$0xff] 0.0
          %1582 = vst [vmem:[#allocation2 + $0x8] sm:$0xff] 0.0
          %1583 = vst [vmem:[#allocation2 + $0x10] sm:$0xff] 0.0
          %1584 = vst [vmem:[#allocation2 + $0x18] sm:$0xff] 0.0
          %1585 = vst [vmem:[#allocation2 + $0x20] sm:$0xff] 0.0
          %1586 = vst [vmem:[#allocation2 + $0x28] sm:$0xff] 0.0
          %1587 = vst [vmem:[#allocation2 + $0x30] sm:$0xff] 0.0
          %1588 = vst [vmem:[#allocation2 + $0x38] sm:$0xff] 0.0
          %1589 = vst [vmem:[#allocation3] sm:$0x1] 0.0
        $region56: #{evaluation_forward.2} parent=35 // pred_fallthru
          _
        %v1590 = vld [vmem:[#allocation3] sm:$0x1]
        %v1591 = vadd.f32 %v1590, %v1575
        %1592 = vst [vmem:[#allocation3] sm:$0x1] %v1591
        %v1593 = vld [vmem:[#allocation2] sm:$0xff]
        %v1594 = vlaneseq
        %v1595 = vshrl.u32 %v1594, 7
        %v1596 = vsub.s32 0, %v1595
        %v1597 = vrot.slane %v1575, %v1596
        %v1598 = vmul.f32 %v375, %v1597
        %v1599 = vadd.f32 %v1593, %v1598
        %1600 = vst [vmem:[#allocation2] sm:$0xff] %v1599
        %v1601 = vld [vmem:[#allocation2 + $0x8] sm:$0xff]
        %v1602 = vmul.f32 %v553, %v1597
        %v1603 = vadd.f32 %v1601, %v1602
        %1604 = vst [vmem:[#allocation2 + $0x8] sm:$0xff] %v1603
        %v1605 = vld [vmem:[#allocation2 + $0x10] sm:$0xff]
        %v1606 = vmul.f32 %v700, %v1597
        %v1607 = vadd.f32 %v1605, %v1606
        %1608 = vst [vmem:[#allocation2 + $0x10] sm:$0xff] %v1607
        %v1609 = vld [vmem:[#allocation2 + $0x18] sm:$0xff]
        %v1610 = vmul.f32 %v847, %v1597
        %v1611 = vadd.f32 %v1609, %v1610
        %1612 = vst [vmem:[#allocation2 + $0x18] sm:$0xff] %v1611
        %v1613 = vld [vmem:[#allocation2 + $0x20] sm:$0xff]
        %v1614 = vmul.f32 %v994, %v1597
        %v1615 = vadd.f32 %v1613, %v1614
        %1616 = vst [vmem:[#allocation2 + $0x20] sm:$0xff] %v1615
        %v1617 = vld [vmem:[#allocation2 + $0x28] sm:$0xff]
        %v1618 = vmul.f32 %v1141, %v1597
        %v1619 = vadd.f32 %v1617, %v1618
        %1620 = vst [vmem:[#allocation2 + $0x28] sm:$0xff] %v1619
        %v1621 = vld [vmem:[#allocation2 + $0x30] sm:$0xff]
        %v1622 = vmul.f32 %v1288, %v1597
        %v1623 = vadd.f32 %v1621, %v1622
        %1624 = vst [vmem:[#allocation2 + $0x30] sm:$0xff] %v1623
        %v1625 = vld [vmem:[#allocation2 + $0x38] sm:$0xff]
        %v1626 = vmul.f32 %v1435, %v1597
        %v1627 = vadd.f32 %v1625, %v1626
        %1628 = vst [vmem:[#allocation2 + $0x38] sm:$0xff] %v1627
        %p1629 = scmp.eq.s32.totalorder %s37, 1
        // Predicated region
        $region57: #{evaluation_forward.2} parent=35 // pred_check
          %p1630 = pneg %p1629
        $region58: #{evaluation_forward.2} parent=35 // pred_check_branch
          %1632 = sbr.rel (%p1630) target = $region60
        $region59: #{evaluation_forward.2} parent=35 // pred_region
          %v1633 = vld [vmem:[#allocation10] sm:$0xff]
          %v1634 = vld [vmem:[#allocation10 + $0x8] sm:$0xff]
          %v1635 = vld [vmem:[#allocation10 + $0x10] sm:$0xff]
          %v1636 = vld [vmem:[#allocation10 + $0x18] sm:$0xff]
          %v1637 = vpack.c.bf16 %v1634, %v1633
          %v1638 = vpack.c.bf16 %v1635, %v1635
          %v1639 = vpack.c.bf16 %v1636, %v1636
          %v1640 = vld [vmem:[#allocation3] sm:$0x1]
          %v1641 = vrcp.pop %v1640
          %v1642 = vld [vmem:[#allocation2] sm:$0xff]
          %v1644 = vlaneseq
          %v1645 = vshrl.u32 %v1644, 7
          %v1646 = vsub.s32 0, %v1645
          %v1647 = vrot.slane %v1641, %v1646
          %v1649 = vmul.f32 %v1642, %v1647
          %v1650 = vpack.c.bf16 %v1649, %v1649
          %1652 = vset.pattern.permute.xlu0 8
          %1653 = vperm.xlu0 %1652, %v1633
          %v1654 = vpop.permute.xlu0 %1653
          %1657 = vset.pattern.permute.xlu0 8
          %1658 = vperm.xlu0 %1657, %v1634
          %v1659 = vpop.permute.xlu0 %1658
          %v1662 = vsel %vm387, %v1637, 0
          %v1665 = vsel %vm391, %v1650, 0
          %1667 = vmatprep.subr.bf16.mxu0 0
          %1668 = vmatpush1.bf16.msra.mxu0 %v1665
          %1669 = vmatprep.subr.bf16.mxu0 0
          %1670 = vmatpush1.bf16.msra.mxu0 0
          %1671 = vmatprep.subr.bf16.mxu0 0
          %1672 = vmatpush1.bf16.msra.mxu0 0
          %1673 = vmatprep.subr.bf16.mxu0 0
          %1674 = vmatpush1.bf16.msra.mxu0 0
          %1675 = vmatprep.subr.bf16.mxu0 0
          %1676 = vmatpush1.bf16.msra.mxu0 0
          %1677 = vmatprep.subr.bf16.mxu0 0
          %1678 = vmatpush1.bf16.msra.mxu0 0
          %1679 = vmatprep.subr.bf16.mxu0 0
          %1680 = vmatpush1.bf16.msra.mxu0 0
          %1681 = vmatprep.subr.bf16.mxu0 0
          %1682 = vmatpush1.bf16.msra.mxu0 0
          %1683 = vmatprep.subr.bf16.mxu0 0
          %1684 = vmatpush1.bf16.msra.mxu0 0
          %1685 = vmatprep.subr.bf16.mxu0 0
          %1686 = vmatpush1.bf16.msra.mxu0 0
          %1687 = vmatprep.subr.bf16.mxu0 0
          %1688 = vmatpush1.bf16.msra.mxu0 0
          %1689 = vmatprep.subr.bf16.mxu0 0
          %1690 = vmatpush1.bf16.msra.mxu0 0
          %1691 = vmatprep.subr.bf16.mxu0 0
          %1692 = vmatpush1.bf16.msra.mxu0 0
          %1693 = vmatprep.subr.bf16.mxu0 0
          %1694 = vmatpush1.bf16.msra.mxu0 0
          %1695 = vmatprep.subr.bf16.mxu0 0
          %1696 = vmatpush1.bf16.msra.mxu0 0
          %1697 = vmatprep.subr.bf16.mxu0 0
          %1698 = vmatpush1.bf16.msra.mxu0 0
          %1699 = vmatprep.mubr.bf16.mxu0 0
          %1700 = vmatmul.mubr.bf16.gmra.mrb[0].mxu0 %v1662
          %v1701 = vpop.f32.mrb[0].mxu0
          %v1702 = vadd.f32 %v1654, %v1701
          %v1703 = vpop.f32.mrb[0].mxu0
          %v1704 = vpop.f32.mrb[0].mxu0
          %v1705 = vadd.f32 %v1659, %v1704
          %v1706 = vpop.f32.mrb[0].mxu0
          %1707 = vdwg.mxu0
          %v1708 = vmax.f32 %v1702, 0.0
          %v1709 = vmax.f32 %v1705, 0.0
          %v1710 = vpack.c.bf16 %v1709, %v1708
          %1712 = vset.pattern.permute.xlu0 16
          %1713 = vperm.xlu0 %1712, %v1635
          %v1714 = vpop.permute.xlu0 %1713
          %v1717 = vsel %vm444, %v1638, 0
          %1719 = vmatprep.subr.bf16.mxu0 0
          %1720 = vmatpush1.bf16.msra.mxu0 %v1710
          %1721 = vmatprep.subr.bf16.mxu0 0
          %1722 = vmatpush1.bf16.msra.mxu0 0
          %1723 = vmatprep.subr.bf16.mxu0 0
          %1724 = vmatpush1.bf16.msra.mxu0 0
          %1725 = vmatprep.subr.bf16.mxu0 0
          %1726 = vmatpush1.bf16.msra.mxu0 0
          %1727 = vmatprep.subr.bf16.mxu0 0
          %1728 = vmatpush1.bf16.msra.mxu0 0
          %1729 = vmatprep.subr.bf16.mxu0 0
          %1730 = vmatpush1.bf16.msra.mxu0 0
          %1731 = vmatprep.subr.bf16.mxu0 0
          %1732 = vmatpush1.bf16.msra.mxu0 0
          %1733 = vmatprep.subr.bf16.mxu0 0
          %1734 = vmatpush1.bf16.msra.mxu0 0
          %1735 = vmatprep.subr.bf16.mxu0 0
          %1736 = vmatpush1.bf16.msra.mxu0 0
          %1737 = vmatprep.subr.bf16.mxu0 0
          %1738 = vmatpush1.bf16.msra.mxu0 0
          %1739 = vmatprep.subr.bf16.mxu0 0
          %1740 = vmatpush1.bf16.msra.mxu0 0
          %1741 = vmatprep.subr.bf16.mxu0 0
          %1742 = vmatpush1.bf16.msra.mxu0 0
          %1743 = vmatprep.subr.bf16.mxu0 0
          %1744 = vmatpush1.bf16.msra.mxu0 0
          %1745 = vmatprep.subr.bf16.mxu0 0
          %1746 = vmatpush1.bf16.msra.mxu0 0
          %1747 = vmatprep.subr.bf16.mxu0 0
          %1748 = vmatpush1.bf16.msra.mxu0 0
          %1749 = vmatprep.subr.bf16.mxu0 0
          %1750 = vmatpush1.bf16.msra.mxu0 0
          %1751 = vmatprep.mubr.bf16.mxu0 0
          %1752 = vmatmul.mubr.bf16.gmra.mrb[0].mxu0 %v1717
          %v1753 = vpop.f32.mrb[0].mxu0
          %v1754 = vadd.f32 %v1714, %v1753
          %v1755 = vpop.f32.mrb[0].mxu0
          %v1756 = vpop.f32.mrb[0].mxu0
          %v1757 = vpop.f32.mrb[0].mxu0
          %1758 = vdwg.mxu0
          %v1759 = vmax.f32 %v1754, 0.0
          %v1760 = vpack.c.bf16 %v1759, %v1759
          %1762 = vset.pattern.permute.xlu0 8
          %1763 = vperm.xlu0 %1762, %v1636
          %v1764 = vpop.permute.xlu0 %1763
          %v1767 = vsel %vm387, %v1639, 0
          %v1770 = vsel %vm391, %v1760, 0
          %1772 = vmatprep.subr.bf16.mxu0 0
          %1773 = vmatpush1.bf16.msra.mxu0 %v1770
          %1774 = vmatprep.subr.bf16.mxu0 0
          %1775 = vmatpush1.bf16.msra.mxu0 0
          %1776 = vmatprep.subr.bf16.mxu0 0
          %1777 = vmatpush1.bf16.msra.mxu0 0
          %1778 = vmatprep.subr.bf16.mxu0 0
          %1779 = vmatpush1.bf16.msra.mxu0 0
          %1780 = vmatprep.subr.bf16.mxu0 0
          %1781 = vmatpush1.bf16.msra.mxu0 0
          %1782 = vmatprep.subr.bf16.mxu0 0
          %1783 = vmatpush1.bf16.msra.mxu0 0
          %1784 = vmatprep.subr.bf16.mxu0 0
          %1785 = vmatpush1.bf16.msra.mxu0 0
          %1786 = vmatprep.subr.bf16.mxu0 0
          %1787 = vmatpush1.bf16.msra.mxu0 0
          %1788 = vmatprep.subr.bf16.mxu0 0
          %1789 = vmatpush1.bf16.msra.mxu0 0
          %1790 = vmatprep.subr.bf16.mxu0 0
          %1791 = vmatpush1.bf16.msra.mxu0 0
          %1792 = vmatprep.subr.bf16.mxu0 0
          %1793 = vmatpush1.bf16.msra.mxu0 0
          %1794 = vmatprep.subr.bf16.mxu0 0
          %1795 = vmatpush1.bf16.msra.mxu0 0
          %1796 = vmatprep.subr.bf16.mxu0 0
          %1797 = vmatpush1.bf16.msra.mxu0 0
          %1798 = vmatprep.subr.bf16.mxu0 0
          %1799 = vmatpush1.bf16.msra.mxu0 0
          %1800 = vmatprep.subr.bf16.mxu0 0
          %1801 = vmatpush1.bf16.msra.mxu0 0
          %1802 = vmatprep.subr.bf16.mxu0 0
          %1803 = vmatpush1.bf16.msra.mxu0 0
          %1804 = vmatprep.mubr.bf16.mxu0 0
          %1805 = vmatmul.mubr.bf16.gmra.mrb[0].mxu0 %v1767
          %v1806 = vpop.f32.mrb[0].mxu0
          %v1807 = vadd.f32 %v1764, %v1806
          %v1808 = vpop.f32.mrb[0].mxu0
          %v1809 = vpop.f32.mrb[0].mxu0
          %v1810 = vpop.f32.mrb[0].mxu0
          %1811 = vdwg.mxu0
          %1812 = vst [vmem:[%s357] sm:$0x1] %v1807
          %v1813 = vld [vmem:[#allocation2 + $0x8] sm:$0xff]
          %v1814 = vmul.f32 %v1813, %v1647
          %v1815 = vpack.c.bf16 %v1814, %v1814
          %v1817 = vsel %vm391, %v1815, 0
          %1819 = vmatprep.subr.bf16.mxu0 0
          %1820 = vmatpush1.bf16.msra.mxu0 %v1817
          %1821 = vmatprep.subr.bf16.mxu0 0
          %1822 = vmatpush1.bf16.msra.mxu0 0
          %1823 = vmatprep.subr.bf16.mxu0 0
          %1824 = vmatpush1.bf16.msra.mxu0 0
          %1825 = vmatprep.subr.bf16.mxu0 0
          %1826 = vmatpush1.bf16.msra.mxu0 0
          %1827 = vmatprep.subr.bf16.mxu0 0
          %1828 = vmatpush1.bf16.msra.mxu0 0
          %1829 = vmatprep.subr.bf16.mxu0 0
          %1830 = vmatpush1.bf16.msra.mxu0 0
          %1831 = vmatprep.subr.bf16.mxu0 0
          %1832 = vmatpush1.bf16.msra.mxu0 0
          %1833 = vmatprep.subr.bf16.mxu0 0
          %1834 = vmatpush1.bf16.msra.mxu0 0
          %1835 = vmatprep.subr.bf16.mxu0 0
          %1836 = vmatpush1.bf16.msra.mxu0 0
          %1837 = vmatprep.subr.bf16.mxu0 0
          %1838 = vmatpush1.bf16.msra.mxu0 0
          %1839 = vmatprep.subr.bf16.mxu0 0
          %1840 = vmatpush1.bf16.msra.mxu0 0
          %1841 = vmatprep.subr.bf16.mxu0 0
          %1842 = vmatpush1.bf16.msra.mxu0 0
          %1843 = vmatprep.subr.bf16.mxu0 0
          %1844 = vmatpush1.bf16.msra.mxu0 0
          %1845 = vmatprep.subr.bf16.mxu0 0
          %1846 = vmatpush1.bf16.msra.mxu0 0
          %1847 = vmatprep.subr.bf16.mxu0 0
          %1848 = vmatpush1.bf16.msra.mxu0 0
          %1849 = vmatprep.subr.bf16.mxu0 0
          %1850 = vmatpush1.bf16.msra.mxu0 0
          %1851 = vmatprep.mubr.bf16.mxu0 0
          %1852 = vmatmul.mubr.bf16.gmra.mrb[0].mxu0 %v1662
          %v1853 = vpop.f32.mrb[0].mxu0
          %v1854 = vadd.f32 %v1654, %v1853
          %v1855 = vpop.f32.mrb[0].mxu0
          %v1856 = vpop.f32.mrb[0].mxu0
          %v1857 = vadd.f32 %v1659, %v1856
          %v1858 = vpop.f32.mrb[0].mxu0
          %1859 = vdwg.mxu0
          %v1860 = vmax.f32 %v1854, 0.0
          %v1861 = vmax.f32 %v1857, 0.0
          %v1862 = vpack.c.bf16 %v1861, %v1860
          %1863 = vmatprep.subr.bf16.mxu0 0
          %1864 = vmatpush1.bf16.msra.mxu0 %v1862
          %1865 = vmatprep.subr.bf16.mxu0 0
          %1866 = vmatpush1.bf16.msra.mxu0 0
          %1867 = vmatprep.subr.bf16.mxu0 0
          %1868 = vmatpush1.bf16.msra.mxu0 0
          %1869 = vmatprep.subr.bf16.mxu0 0
          %1870 = vmatpush1.bf16.msra.mxu0 0
          %1871 = vmatprep.subr.bf16.mxu0 0
          %1872 = vmatpush1.bf16.msra.mxu0 0
          %1873 = vmatprep.subr.bf16.mxu0 0
          %1874 = vmatpush1.bf16.msra.mxu0 0
          %1875 = vmatprep.subr.bf16.mxu0 0
          %1876 = vmatpush1.bf16.msra.mxu0 0
          %1877 = vmatprep.subr.bf16.mxu0 0
          %1878 = vmatpush1.bf16.msra.mxu0 0
          %1879 = vmatprep.subr.bf16.mxu0 0
          %1880 = vmatpush1.bf16.msra.mxu0 0
          %1881 = vmatprep.subr.bf16.mxu0 0
          %1882 = vmatpush1.bf16.msra.mxu0 0
          %1883 = vmatprep.subr.bf16.mxu0 0
          %1884 = vmatpush1.bf16.msra.mxu0 0
          %1885 = vmatprep.subr.bf16.mxu0 0
          %1886 = vmatpush1.bf16.msra.mxu0 0
          %1887 = vmatprep.subr.bf16.mxu0 0
          %1888 = vmatpush1.bf16.msra.mxu0 0
          %1889 = vmatprep.subr.bf16.mxu0 0
          %1890 = vmatpush1.bf16.msra.mxu0 0
          %1891 = vmatprep.subr.bf16.mxu0 0
          %1892 = vmatpush1.bf16.msra.mxu0 0
          %1893 = vmatprep.subr.bf16.mxu0 0
          %1894 = vmatpush1.bf16.msra.mxu0 0
          %1895 = vmatprep.mubr.bf16.mxu0 0
          %1896 = vmatmul.mubr.bf16.gmra.mrb[0].mxu0 %v1717
          %v1897 = vpop.f32.mrb[0].mxu0
          %v1898 = vadd.f32 %v1714, %v1897
          %v1899 = vpop.f32.mrb[0].mxu0
          %v1900 = vpop.f32.mrb[0].mxu0
          %v1901 = vpop.f32.mrb[0].mxu0
          %1902 = vdwg.mxu0
          %v1903 = vmax.f32 %v1898, 0.0
          %v1904 = vpack.c.bf16 %v1903, %v1903
          %v1906 = vsel %vm391, %v1904, 0
          %1908 = vmatprep.subr.bf16.mxu0 0
          %1909 = vmatpush1.bf16.msra.mxu0 %v1906
          %1910 = vmatprep.subr.bf16.mxu0 0
          %1911 = vmatpush1.bf16.msra.mxu0 0
          %1912 = vmatprep.subr.bf16.mxu0 0
          %1913 = vmatpush1.bf16.msra.mxu0 0
          %1914 = vmatprep.subr.bf16.mxu0 0
          %1915 = vmatpush1.bf16.msra.mxu0 0
          %1916 = vmatprep.subr.bf16.mxu0 0
          %1917 = vmatpush1.bf16.msra.mxu0 0
          %1918 = vmatprep.subr.bf16.mxu0 0
          %1919 = vmatpush1.bf16.msra.mxu0 0
          %1920 = vmatprep.subr.bf16.mxu0 0
          %1921 = vmatpush1.bf16.msra.mxu0 0
          %1922 = vmatprep.subr.bf16.mxu0 0
          %1923 = vmatpush1.bf16.msra.mxu0 0
          %1924 = vmatprep.subr.bf16.mxu0 0
          %1925 = vmatpush1.bf16.msra.mxu0 0
          %1926 = vmatprep.subr.bf16.mxu0 0
          %1927 = vmatpush1.bf16.msra.mxu0 0
          %1928 = vmatprep.subr.bf16.mxu0 0
          %1929 = vmatpush1.bf16.msra.mxu0 0
          %1930 = vmatprep.subr.bf16.mxu0 0
          %1931 = vmatpush1.bf16.msra.mxu0 0
          %1932 = vmatprep.subr.bf16.mxu0 0
          %1933 = vmatpush1.bf16.msra.mxu0 0
          %1934 = vmatprep.subr.bf16.mxu0 0
          %1935 = vmatpush1.bf16.msra.mxu0 0
          %1936 = vmatprep.subr.bf16.mxu0 0
          %1937 = vmatpush1.bf16.msra.mxu0 0
          %1938 = vmatprep.subr.bf16.mxu0 0
          %1939 = vmatpush1.bf16.msra.mxu0 0
          %1940 = vmatprep.mubr.bf16.mxu0 0
          %1941 = vmatmul.mubr.bf16.gmra.mrb[0].mxu0 %v1767
          %v1942 = vpop.f32.mrb[0].mxu0
          %v1943 = vadd.f32 %v1764, %v1942
          %v1944 = vpop.f32.mrb[0].mxu0
          %v1945 = vpop.f32.mrb[0].mxu0
          %v1946 = vpop.f32.mrb[0].mxu0
          %1947 = vdwg.mxu0
          %1948 = vst [vmem:[%s357 + $0x1] sm:$0x1] %v1943
          %v1949 = vld [vmem:[#allocation2 + $0x10] sm:$0xff]
          %v1950 = vmul.f32 %v1949, %v1647
          %v1951 = vpack.c.bf16 %v1950, %v1950
          %v1953 = vsel %vm391, %v1951, 0
          %1955 = vmatprep.subr.bf16.mxu0 0
          %1956 = vmatpush1.bf16.msra.mxu0 %v1953
          %1957 = vmatprep.subr.bf16.mxu0 0
          %1958 = vmatpush1.bf16.msra.mxu0 0
          %1959 = vmatprep.subr.bf16.mxu0 0
          %1960 = vmatpush1.bf16.msra.mxu0 0
          %1961 = vmatprep.subr.bf16.mxu0 0
          %1962 = vmatpush1.bf16.msra.mxu0 0
          %1963 = vmatprep.subr.bf16.mxu0 0
          %1964 = vmatpush1.bf16.msra.mxu0 0
          %1965 = vmatprep.subr.bf16.mxu0 0
          %1966 = vmatpush1.bf16.msra.mxu0 0
          %1967 = vmatprep.subr.bf16.mxu0 0
          %1968 = vmatpush1.bf16.msra.mxu0 0
          %1969 = vmatprep.subr.bf16.mxu0 0
          %1970 = vmatpush1.bf16.msra.mxu0 0
          %1971 = vmatprep.subr.bf16.mxu0 0
          %1972 = vmatpush1.bf16.msra.mxu0 0
          %1973 = vmatprep.subr.bf16.mxu0 0
          %1974 = vmatpush1.bf16.msra.mxu0 0
          %1975 = vmatprep.subr.bf16.mxu0 0
          %1976 = vmatpush1.bf16.msra.mxu0 0
          %1977 = vmatprep.subr.bf16.mxu0 0
          %1978 = vmatpush1.bf16.msra.mxu0 0
          %1979 = vmatprep.subr.bf16.mxu0 0
          %1980 = vmatpush1.bf16.msra.mxu0 0
          %1981 = vmatprep.subr.bf16.mxu0 0
          %1982 = vmatpush1.bf16.msra.mxu0 0
          %1983 = vmatprep.subr.bf16.mxu0 0
          %1984 = vmatpush1.bf16.msra.mxu0 0
          %1985 = vmatprep.subr.bf16.mxu0 0
          %1986 = vmatpush1.bf16.msra.mxu0 0
          %1987 = vmatprep.mubr.bf16.mxu0 0
          %1988 = vmatmul.mubr.bf16.gmra.mrb[0].mxu0 %v1662
          %v1989 = vpop.f32.mrb[0].mxu0
          %v1990 = vadd.f32 %v1654, %v1989
          %v1991 = vpop.f32.mrb[0].mxu0
          %v1992 = vpop.f32.mrb[0].mxu0
          %v1993 = vadd.f32 %v1659, %v1992
          %v1994 = vpop.f32.mrb[0].mxu0
          %1995 = vdwg.mxu0
          %v1996 = vmax.f32 %v1990, 0.0
          %v1997 = vmax.f32 %v1993, 0.0
          %v1998 = vpack.c.bf16 %v1997, %v1996
          %1999 = vmatprep.subr.bf16.mxu0 0
          %2000 = vmatpush1.bf16.msra.mxu0 %v1998
          %2001 = vmatprep.subr.bf16.mxu0 0
          %2002 = vmatpush1.bf16.msra.mxu0 0
          %2003 = vmatprep.subr.bf16.mxu0 0
          %2004 = vmatpush1.bf16.msra.mxu0 0
          %2005 = vmatprep.subr.bf16.mxu0 0
          %2006 = vmatpush1.bf16.msra.mxu0 0
          %2007 = vmatprep.subr.bf16.mxu0 0
          %2008 = vmatpush1.bf16.msra.mxu0 0
          %2009 = vmatprep.subr.bf16.mxu0 0
          %2010 = vmatpush1.bf16.msra.mxu0 0
          %2011 = vmatprep.subr.bf16.mxu0 0
          %2012 = vmatpush1.bf16.msra.mxu0 0
          %2013 = vmatprep.subr.bf16.mxu0 0
          %2014 = vmatpush1.bf16.msra.mxu0 0
          %2015 = vmatprep.subr.bf16.mxu0 0
          %2016 = vmatpush1.bf16.msra.mxu0 0
          %2017 = vmatprep.subr.bf16.mxu0 0
          %2018 = vmatpush1.bf16.msra.mxu0 0
          %2019 = vmatprep.subr.bf16.mxu0 0
          %2020 = vmatpush1.bf16.msra.mxu0 0
          %2021 = vmatprep.subr.bf16.mxu0 0
          %2022 = vmatpush1.bf16.msra.mxu0 0
          %2023 = vmatprep.subr.bf16.mxu0 0
          %2024 = vmatpush1.bf16.msra.mxu0 0
          %2025 = vmatprep.subr.bf16.mxu0 0
          %2026 = vmatpush1.bf16.msra.mxu0 0
          %2027 = vmatprep.subr.bf16.mxu0 0
          %2028 = vmatpush1.bf16.msra.mxu0 0
          %2029 = vmatprep.subr.bf16.mxu0 0
          %2030 = vmatpush1.bf16.msra.mxu0 0
          %2031 = vmatprep.mubr.bf16.mxu0 0
          %2032 = vmatmul.mubr.bf16.gmra.mrb[0].mxu0 %v1717
          %v2033 = vpop.f32.mrb[0].mxu0
          %v2034 = vadd.f32 %v1714, %v2033
          %v2035 = vpop.f32.mrb[0].mxu0
          %v2036 = vpop.f32.mrb[0].mxu0
          %v2037 = vpop.f32.mrb[0].mxu0
          %2038 = vdwg.mxu0
          %v2039 = vmax.f32 %v2034, 0.0
          %v2040 = vpack.c.bf16 %v2039, %v2039
          %v2042 = vsel %vm391, %v2040, 0
          %2044 = vmatprep.subr.bf16.mxu0 0
          %2045 = vmatpush1.bf16.msra.mxu0 %v2042
          %2046 = vmatprep.subr.bf16.mxu0 0
          %2047 = vmatpush1.bf16.msra.mxu0 0
          %2048 = vmatprep.subr.bf16.mxu0 0
          %2049 = vmatpush1.bf16.msra.mxu0 0
          %2050 = vmatprep.subr.bf16.mxu0 0
          %2051 = vmatpush1.bf16.msra.mxu0 0
          %2052 = vmatprep.subr.bf16.mxu0 0
          %2053 = vmatpush1.bf16.msra.mxu0 0
          %2054 = vmatprep.subr.bf16.mxu0 0
          %2055 = vmatpush1.bf16.msra.mxu0 0
          %2056 = vmatprep.subr.bf16.mxu0 0
          %2057 = vmatpush1.bf16.msra.mxu0 0
          %2058 = vmatprep.subr.bf16.mxu0 0
          %2059 = vmatpush1.bf16.msra.mxu0 0
          %2060 = vmatprep.subr.bf16.mxu0 0
          %2061 = vmatpush1.bf16.msra.mxu0 0
          %2062 = vmatprep.subr.bf16.mxu0 0
          %2063 = vmatpush1.bf16.msra.mxu0 0
          %2064 = vmatprep.subr.bf16.mxu0 0
          %2065 = vmatpush1.bf16.msra.mxu0 0
          %2066 = vmatprep.subr.bf16.mxu0 0
          %2067 = vmatpush1.bf16.msra.mxu0 0
          %2068 = vmatprep.subr.bf16.mxu0 0
          %2069 = vmatpush1.bf16.msra.mxu0 0
          %2070 = vmatprep.subr.bf16.mxu0 0
          %2071 = vmatpush1.bf16.msra.mxu0 0
          %2072 = vmatprep.subr.bf16.mxu0 0
          %2073 = vmatpush1.bf16.msra.mxu0 0
          %2074 = vmatprep.subr.bf16.mxu0 0
          %2075 = vmatpush1.bf16.msra.mxu0 0
          %2076 = vmatprep.mubr.bf16.mxu0 0
          %2077 = vmatmul.mubr.bf16.gmra.mrb[0].mxu0 %v1767
          %v2078 = vpop.f32.mrb[0].mxu0
          %v2079 = vadd.f32 %v1764, %v2078
          %v2080 = vpop.f32.mrb[0].mxu0
          %v2081 = vpop.f32.mrb[0].mxu0
          %v2082 = vpop.f32.mrb[0].mxu0
          %2083 = vdwg.mxu0
          %2084 = vst [vmem:[%s357 + $0x2] sm:$0x1] %v2079
          %v2085 = vld [vmem:[#allocation2 + $0x18] sm:$0xff]
          %v2086 = vmul.f32 %v2085, %v1647
          %v2087 = vpack.c.bf16 %v2086, %v2086
          %v2089 = vsel %vm391, %v2087, 0
          %2091 = vmatprep.subr.bf16.mxu0 0
          %2092 = vmatpush1.bf16.msra.mxu0 %v2089
          %2093 = vmatprep.subr.bf16.mxu0 0
          %2094 = vmatpush1.bf16.msra.mxu0 0
          %2095 = vmatprep.subr.bf16.mxu0 0
          %2096 = vmatpush1.bf16.msra.mxu0 0
          %2097 = vmatprep.subr.bf16.mxu0 0
          %2098 = vmatpush1.bf16.msra.mxu0 0
          %2099 = vmatprep.subr.bf16.mxu0 0
          %2100 = vmatpush1.bf16.msra.mxu0 0
          %2101 = vmatprep.subr.bf16.mxu0 0
          %2102 = vmatpush1.bf16.msra.mxu0 0
          %2103 = vmatprep.subr.bf16.mxu0 0
          %2104 = vmatpush1.bf16.msra.mxu0 0
          %2105 = vmatprep.subr.bf16.mxu0 0
          %2106 = vmatpush1.bf16.msra.mxu0 0
          %2107 = vmatprep.subr.bf16.mxu0 0
          %2108 = vmatpush1.bf16.msra.mxu0 0
          %2109 = vmatprep.subr.bf16.mxu0 0
          %2110 = vmatpush1.bf16.msra.mxu0 0
          %2111 = vmatprep.subr.bf16.mxu0 0
          %2112 = vmatpush1.bf16.msra.mxu0 0
          %2113 = vmatprep.subr.bf16.mxu0 0
          %2114 = vmatpush1.bf16.msra.mxu0 0
          %2115 = vmatprep.subr.bf16.mxu0 0
          %2116 = vmatpush1.bf16.msra.mxu0 0
          %2117 = vmatprep.subr.bf16.mxu0 0
          %2118 = vmatpush1.bf16.msra.mxu0 0
          %2119 = vmatprep.subr.bf16.mxu0 0
          %2120 = vmatpush1.bf16.msra.mxu0 0
          %2121 = vmatprep.subr.bf16.mxu0 0
          %2122 = vmatpush1.bf16.msra.mxu0 0
          %2123 = vmatprep.mubr.bf16.mxu0 0
          %2124 = vmatmul.mubr.bf16.gmra.mrb[0].mxu0 %v1662
          %v2125 = vpop.f32.mrb[0].mxu0
          %v2126 = vadd.f32 %v1654, %v2125
          %v2127 = vpop.f32.mrb[0].mxu0
          %v2128 = vpop.f32.mrb[0].mxu0
          %v2129 = vadd.f32 %v1659, %v2128
          %v2130 = vpop.f32.mrb[0].mxu0
          %2131 = vdwg.mxu0
          %v2132 = vmax.f32 %v2126, 0.0
          %v2133 = vmax.f32 %v2129, 0.0
          %v2134 = vpack.c.bf16 %v2133, %v2132
          %2135 = vmatprep.subr.bf16.mxu0 0
          %2136 = vmatpush1.bf16.msra.mxu0 %v2134
          %2137 = vmatprep.subr.bf16.mxu0 0
          %2138 = vmatpush1.bf16.msra.mxu0 0
          %2139 = vmatprep.subr.bf16.mxu0 0
          %2140 = vmatpush1.bf16.msra.mxu0 0
          %2141 = vmatprep.subr.bf16.mxu0 0
          %2142 = vmatpush1.bf16.msra.mxu0 0
          %2143 = vmatprep.subr.bf16.mxu0 0
          %2144 = vmatpush1.bf16.msra.mxu0 0
          %2145 = vmatprep.subr.bf16.mxu0 0
          %2146 = vmatpush1.bf16.msra.mxu0 0
          %2147 = vmatprep.subr.bf16.mxu0 0
          %2148 = vmatpush1.bf16.msra.mxu0 0
          %2149 = vmatprep.subr.bf16.mxu0 0
          %2150 = vmatpush1.bf16.msra.mxu0 0
          %2151 = vmatprep.subr.bf16.mxu0 0
          %2152 = vmatpush1.bf16.msra.mxu0 0
          %2153 = vmatprep.subr.bf16.mxu0 0
          %2154 = vmatpush1.bf16.msra.mxu0 0
          %2155 = vmatprep.subr.bf16.mxu0 0
          %2156 = vmatpush1.bf16.msra.mxu0 0
          %2157 = vmatprep.subr.bf16.mxu0 0
          %2158 = vmatpush1.bf16.msra.mxu0 0
          %2159 = vmatprep.subr.bf16.mxu0 0
          %2160 = vmatpush1.bf16.msra.mxu0 0
          %2161 = vmatprep.subr.bf16.mxu0 0
          %2162 = vmatpush1.bf16.msra.mxu0 0
          %2163 = vmatprep.subr.bf16.mxu0 0
          %2164 = vmatpush1.bf16.msra.mxu0 0
          %2165 = vmatprep.subr.bf16.mxu0 0
          %2166 = vmatpush1.bf16.msra.mxu0 0
          %2167 = vmatprep.mubr.bf16.mxu0 0
          %2168 = vmatmul.mubr.bf16.gmra.mrb[0].mxu0 %v1717
          %v2169 = vpop.f32.mrb[0].mxu0
          %v2170 = vadd.f32 %v1714, %v2169
          %v2171 = vpop.f32.mrb[0].mxu0
          %v2172 = vpop.f32.mrb[0].mxu0
          %v2173 = vpop.f32.mrb[0].mxu0
          %2174 = vdwg.mxu0
          %v2175 = vmax.f32 %v2170, 0.0
          %v2176 = vpack.c.bf16 %v2175, %v2175
          %v2178 = vsel %vm391, %v2176, 0
          %2180 = vmatprep.subr.bf16.mxu0 0
          %2181 = vmatpush1.bf16.msra.mxu0 %v2178
          %2182 = vmatprep.subr.bf16.mxu0 0
          %2183 = vmatpush1.bf16.msra.mxu0 0
          %2184 = vmatprep.subr.bf16.mxu0 0
          %2185 = vmatpush1.bf16.msra.mxu0 0
          %2186 = vmatprep.subr.bf16.mxu0 0
          %2187 = vmatpush1.bf16.msra.mxu0 0
          %2188 = vmatprep.subr.bf16.mxu0 0
          %2189 = vmatpush1.bf16.msra.mxu0 0
          %2190 = vmatprep.subr.bf16.mxu0 0
          %2191 = vmatpush1.bf16.msra.mxu0 0
          %2192 = vmatprep.subr.bf16.mxu0 0
          %2193 = vmatpush1.bf16.msra.mxu0 0
          %2194 = vmatprep.subr.bf16.mxu0 0
          %2195 = vmatpush1.bf16.msra.mxu0 0
          %2196 = vmatprep.subr.bf16.mxu0 0
          %2197 = vmatpush1.bf16.msra.mxu0 0
          %2198 = vmatprep.subr.bf16.mxu0 0
          %2199 = vmatpush1.bf16.msra.mxu0 0
          %2200 = vmatprep.subr.bf16.mxu0 0
          %2201 = vmatpush1.bf16.msra.mxu0 0
          %2202 = vmatprep.subr.bf16.mxu0 0
          %2203 = vmatpush1.bf16.msra.mxu0 0
          %2204 = vmatprep.subr.bf16.mxu0 0
          %2205 = vmatpush1.bf16.msra.mxu0 0
          %2206 = vmatprep.subr.bf16.mxu0 0
          %2207 = vmatpush1.bf16.msra.mxu0 0
          %2208 = vmatprep.subr.bf16.mxu0 0
          %2209 = vmatpush1.bf16.msra.mxu0 0
          %2210 = vmatprep.subr.bf16.mxu0 0
          %2211 = vmatpush1.bf16.msra.mxu0 0
          %2212 = vmatprep.mubr.bf16.mxu0 0
          %2213 = vmatmul.mubr.bf16.gmra.mrb[0].mxu0 %v1767
          %v2214 = vpop.f32.mrb[0].mxu0
          %v2215 = vadd.f32 %v1764, %v2214
          %v2216 = vpop.f32.mrb[0].mxu0
          %v2217 = vpop.f32.mrb[0].mxu0
          %v2218 = vpop.f32.mrb[0].mxu0
          %2219 = vdwg.mxu0
          %2220 = vst [vmem:[%s357 + $0x3] sm:$0x1] %v2215
          %v2221 = vld [vmem:[#allocation2 + $0x20] sm:$0xff]
          %v2222 = vmul.f32 %v2221, %v1647
          %v2223 = vpack.c.bf16 %v2222, %v2222
          %v2225 = vsel %vm391, %v2223, 0
          %2227 = vmatprep.subr.bf16.mxu0 0
          %2228 = vmatpush1.bf16.msra.mxu0 %v2225
          %2229 = vmatprep.subr.bf16.mxu0 0
          %2230 = vmatpush1.bf16.msra.mxu0 0
          %2231 = vmatprep.subr.bf16.mxu0 0
          %2232 = vmatpush1.bf16.msra.mxu0 0
          %2233 = vmatprep.subr.bf16.mxu0 0
          %2234 = vmatpush1.bf16.msra.mxu0 0
          %2235 = vmatprep.subr.bf16.mxu0 0
          %2236 = vmatpush1.bf16.msra.mxu0 0
          %2237 = vmatprep.subr.bf16.mxu0 0
          %2238 = vmatpush1.bf16.msra.mxu0 0
          %2239 = vmatprep.subr.bf16.mxu0 0
          %2240 = vmatpush1.bf16.msra.mxu0 0
          %2241 = vmatprep.subr.bf16.mxu0 0
          %2242 = vmatpush1.bf16.msra.mxu0 0
          %2243 = vmatprep.subr.bf16.mxu0 0
          %2244 = vmatpush1.bf16.msra.mxu0 0
          %2245 = vmatprep.subr.bf16.mxu0 0
          %2246 = vmatpush1.bf16.msra.mxu0 0
          %2247 = vmatprep.subr.bf16.mxu0 0
          %2248 = vmatpush1.bf16.msra.mxu0 0
          %2249 = vmatprep.subr.bf16.mxu0 0
          %2250 = vmatpush1.bf16.msra.mxu0 0
          %2251 = vmatprep.subr.bf16.mxu0 0
          %2252 = vmatpush1.bf16.msra.mxu0 0
          %2253 = vmatprep.subr.bf16.mxu0 0
          %2254 = vmatpush1.bf16.msra.mxu0 0
          %2255 = vmatprep.subr.bf16.mxu0 0
          %2256 = vmatpush1.bf16.msra.mxu0 0
          %2257 = vmatprep.subr.bf16.mxu0 0
          %2258 = vmatpush1.bf16.msra.mxu0 0
          %2259 = vmatprep.mubr.bf16.mxu0 0
          %2260 = vmatmul.mubr.bf16.gmra.mrb[0].mxu0 %v1662
          %v2261 = vpop.f32.mrb[0].mxu0
          %v2262 = vadd.f32 %v1654, %v2261
          %v2263 = vpop.f32.mrb[0].mxu0
          %v2264 = vpop.f32.mrb[0].mxu0
          %v2265 = vadd.f32 %v1659, %v2264
          %v2266 = vpop.f32.mrb[0].mxu0
          %2267 = vdwg.mxu0
          %v2268 = vmax.f32 %v2262, 0.0
          %v2269 = vmax.f32 %v2265, 0.0
          %v2270 = vpack.c.bf16 %v2269, %v2268
          %2271 = vmatprep.subr.bf16.mxu0 0
          %2272 = vmatpush1.bf16.msra.mxu0 %v2270
          %2273 = vmatprep.subr.bf16.mxu0 0
          %2274 = vmatpush1.bf16.msra.mxu0 0
          %2275 = vmatprep.subr.bf16.mxu0 0
          %2276 = vmatpush1.bf16.msra.mxu0 0
          %2277 = vmatprep.subr.bf16.mxu0 0
          %2278 = vmatpush1.bf16.msra.mxu0 0
          %2279 = vmatprep.subr.bf16.mxu0 0
          %2280 = vmatpush1.bf16.msra.mxu0 0
          %2281 = vmatprep.subr.bf16.mxu0 0
          %2282 = vmatpush1.bf16.msra.mxu0 0
          %2283 = vmatprep.subr.bf16.mxu0 0
          %2284 = vmatpush1.bf16.msra.mxu0 0
          %2285 = vmatprep.subr.bf16.mxu0 0
          %2286 = vmatpush1.bf16.msra.mxu0 0
          %2287 = vmatprep.subr.bf16.mxu0 0
          %2288 = vmatpush1.bf16.msra.mxu0 0
          %2289 = vmatprep.subr.bf16.mxu0 0
          %2290 = vmatpush1.bf16.msra.mxu0 0
          %2291 = vmatprep.subr.bf16.mxu0 0
          %2292 = vmatpush1.bf16.msra.mxu0 0
          %2293 = vmatprep.subr.bf16.mxu0 0
          %2294 = vmatpush1.bf16.msra.mxu0 0
          %2295 = vmatprep.subr.bf16.mxu0 0
          %2296 = vmatpush1.bf16.msra.mxu0 0
          %2297 = vmatprep.subr.bf16.mxu0 0
          %2298 = vmatpush1.bf16.msra.mxu0 0
          %2299 = vmatprep.subr.bf16.mxu0 0
          %2300 = vmatpush1.bf16.msra.mxu0 0
          %2301 = vmatprep.subr.bf16.mxu0 0
          %2302 = vmatpush1.bf16.msra.mxu0 0
          %2303 = vmatprep.mubr.bf16.mxu0 0
          %2304 = vmatmul.mubr.bf16.gmra.mrb[0].mxu0 %v1717
          %v2305 = vpop.f32.mrb[0].mxu0
          %v2306 = vadd.f32 %v1714, %v2305
          %v2307 = vpop.f32.mrb[0].mxu0
          %v2308 = vpop.f32.mrb[0].mxu0
          %v2309 = vpop.f32.mrb[0].mxu0
          %2310 = vdwg.mxu0
          %v2311 = vmax.f32 %v2306, 0.0
          %v2312 = vpack.c.bf16 %v2311, %v2311
          %v2314 = vsel %vm391, %v2312, 0
          %2316 = vmatprep.subr.bf16.mxu0 0
          %2317 = vmatpush1.bf16.msra.mxu0 %v2314
          %2318 = vmatprep.subr.bf16.mxu0 0
          %2319 = vmatpush1.bf16.msra.mxu0 0
          %2320 = vmatprep.subr.bf16.mxu0 0
          %2321 = vmatpush1.bf16.msra.mxu0 0
          %2322 = vmatprep.subr.bf16.mxu0 0
          %2323 = vmatpush1.bf16.msra.mxu0 0
          %2324 = vmatprep.subr.bf16.mxu0 0
          %2325 = vmatpush1.bf16.msra.mxu0 0
          %2326 = vmatprep.subr.bf16.mxu0 0
          %2327 = vmatpush1.bf16.msra.mxu0 0
          %2328 = vmatprep.subr.bf16.mxu0 0
          %2329 = vmatpush1.bf16.msra.mxu0 0
          %2330 = vmatprep.subr.bf16.mxu0 0
          %2331 = vmatpush1.bf16.msra.mxu0 0
          %2332 = vmatprep.subr.bf16.mxu0 0
          %2333 = vmatpush1.bf16.msra.mxu0 0
          %2334 = vmatprep.subr.bf16.mxu0 0
          %2335 = vmatpush1.bf16.msra.mxu0 0
          %2336 = vmatprep.subr.bf16.mxu0 0
          %2337 = vmatpush1.bf16.msra.mxu0 0
          %2338 = vmatprep.subr.bf16.mxu0 0
          %2339 = vmatpush1.bf16.msra.mxu0 0
          %2340 = vmatprep.subr.bf16.mxu0 0
          %2341 = vmatpush1.bf16.msra.mxu0 0
          %2342 = vmatprep.subr.bf16.mxu0 0
          %2343 = vmatpush1.bf16.msra.mxu0 0
          %2344 = vmatprep.subr.bf16.mxu0 0
          %2345 = vmatpush1.bf16.msra.mxu0 0
          %2346 = vmatprep.subr.bf16.mxu0 0
          %2347 = vmatpush1.bf16.msra.mxu0 0
          %2348 = vmatprep.mubr.bf16.mxu0 0
          %2349 = vmatmul.mubr.bf16.gmra.mrb[0].mxu0 %v1767
          %v2350 = vpop.f32.mrb[0].mxu0
          %v2351 = vadd.f32 %v1764, %v2350
          %v2352 = vpop.f32.mrb[0].mxu0
          %v2353 = vpop.f32.mrb[0].mxu0
          %v2354 = vpop.f32.mrb[0].mxu0
          %2355 = vdwg.mxu0
          %2356 = vst [vmem:[%s357 + $0x4] sm:$0x1] %v2351
          %v2357 = vld [vmem:[#allocation2 + $0x28] sm:$0xff]
          %v2358 = vmul.f32 %v2357, %v1647
          %v2359 = vpack.c.bf16 %v2358, %v2358
          %v2361 = vsel %vm391, %v2359, 0
          %2363 = vmatprep.subr.bf16.mxu0 0
          %2364 = vmatpush1.bf16.msra.mxu0 %v2361
          %2365 = vmatprep.subr.bf16.mxu0 0
          %2366 = vmatpush1.bf16.msra.mxu0 0
          %2367 = vmatprep.subr.bf16.mxu0 0
          %2368 = vmatpush1.bf16.msra.mxu0 0
          %2369 = vmatprep.subr.bf16.mxu0 0
          %2370 = vmatpush1.bf16.msra.mxu0 0
          %2371 = vmatprep.subr.bf16.mxu0 0
          %2372 = vmatpush1.bf16.msra.mxu0 0
          %2373 = vmatprep.subr.bf16.mxu0 0
          %2374 = vmatpush1.bf16.msra.mxu0 0
          %2375 = vmatprep.subr.bf16.mxu0 0
          %2376 = vmatpush1.bf16.msra.mxu0 0
          %2377 = vmatprep.subr.bf16.mxu0 0
          %2378 = vmatpush1.bf16.msra.mxu0 0
          %2379 = vmatprep.subr.bf16.mxu0 0
          %2380 = vmatpush1.bf16.msra.mxu0 0
          %2381 = vmatprep.subr.bf16.mxu0 0
          %2382 = vmatpush1.bf16.msra.mxu0 0
          %2383 = vmatprep.subr.bf16.mxu0 0
          %2384 = vmatpush1.bf16.msra.mxu0 0
          %2385 = vmatprep.subr.bf16.mxu0 0
          %2386 = vmatpush1.bf16.msra.mxu0 0
          %2387 = vmatprep.subr.bf16.mxu0 0
          %2388 = vmatpush1.bf16.msra.mxu0 0
          %2389 = vmatprep.subr.bf16.mxu0 0
          %2390 = vmatpush1.bf16.msra.mxu0 0
          %2391 = vmatprep.subr.bf16.mxu0 0
          %2392 = vmatpush1.bf16.msra.mxu0 0
          %2393 = vmatprep.subr.bf16.mxu0 0
          %2394 = vmatpush1.bf16.msra.mxu0 0
          %2395 = vmatprep.mubr.bf16.mxu0 0
          %2396 = vmatmul.mubr.bf16.gmra.mrb[0].mxu0 %v1662
          %v2397 = vpop.f32.mrb[0].mxu0
          %v2398 = vadd.f32 %v1654, %v2397
          %v2399 = vpop.f32.mrb[0].mxu0
          %v2400 = vpop.f32.mrb[0].mxu0
          %v2401 = vadd.f32 %v1659, %v2400
          %v2402 = vpop.f32.mrb[0].mxu0
          %2403 = vdwg.mxu0
          %v2404 = vmax.f32 %v2398, 0.0
          %v2405 = vmax.f32 %v2401, 0.0
          %v2406 = vpack.c.bf16 %v2405, %v2404
          %2407 = vmatprep.subr.bf16.mxu0 0
          %2408 = vmatpush1.bf16.msra.mxu0 %v2406
          %2409 = vmatprep.subr.bf16.mxu0 0
          %2410 = vmatpush1.bf16.msra.mxu0 0
          %2411 = vmatprep.subr.bf16.mxu0 0
          %2412 = vmatpush1.bf16.msra.mxu0 0
          %2413 = vmatprep.subr.bf16.mxu0 0
          %2414 = vmatpush1.bf16.msra.mxu0 0
          %2415 = vmatprep.subr.bf16.mxu0 0
          %2416 = vmatpush1.bf16.msra.mxu0 0
          %2417 = vmatprep.subr.bf16.mxu0 0
          %2418 = vmatpush1.bf16.msra.mxu0 0
          %2419 = vmatprep.subr.bf16.mxu0 0
          %2420 = vmatpush1.bf16.msra.mxu0 0
          %2421 = vmatprep.subr.bf16.mxu0 0
          %2422 = vmatpush1.bf16.msra.mxu0 0
          %2423 = vmatprep.subr.bf16.mxu0 0
          %2424 = vmatpush1.bf16.msra.mxu0 0
          %2425 = vmatprep.subr.bf16.mxu0 0
          %2426 = vmatpush1.bf16.msra.mxu0 0
          %2427 = vmatprep.subr.bf16.mxu0 0
          %2428 = vmatpush1.bf16.msra.mxu0 0
          %2429 = vmatprep.subr.bf16.mxu0 0
          %2430 = vmatpush1.bf16.msra.mxu0 0
          %2431 = vmatprep.subr.bf16.mxu0 0
          %2432 = vmatpush1.bf16.msra.mxu0 0
          %2433 = vmatprep.subr.bf16.mxu0 0
          %2434 = vmatpush1.bf16.msra.mxu0 0
          %2435 = vmatprep.subr.bf16.mxu0 0
          %2436 = vmatpush1.bf16.msra.mxu0 0
          %2437 = vmatprep.subr.bf16.mxu0 0
          %2438 = vmatpush1.bf16.msra.mxu0 0
          %2439 = vmatprep.mubr.bf16.mxu0 0
          %2440 = vmatmul.mubr.bf16.gmra.mrb[0].mxu0 %v1717
          %v2441 = vpop.f32.mrb[0].mxu0
          %v2442 = vadd.f32 %v1714, %v2441
          %v2443 = vpop.f32.mrb[0].mxu0
          %v2444 = vpop.f32.mrb[0].mxu0
          %v2445 = vpop.f32.mrb[0].mxu0
          %2446 = vdwg.mxu0
          %v2447 = vmax.f32 %v2442, 0.0
          %v2448 = vpack.c.bf16 %v2447, %v2447
          %v2450 = vsel %vm391, %v2448, 0
          %2452 = vmatprep.subr.bf16.mxu0 0
          %2453 = vmatpush1.bf16.msra.mxu0 %v2450
          %2454 = vmatprep.subr.bf16.mxu0 0
          %2455 = vmatpush1.bf16.msra.mxu0 0
          %2456 = vmatprep.subr.bf16.mxu0 0
          %2457 = vmatpush1.bf16.msra.mxu0 0
          %2458 = vmatprep.subr.bf16.mxu0 0
          %2459 = vmatpush1.bf16.msra.mxu0 0
          %2460 = vmatprep.subr.bf16.mxu0 0
          %2461 = vmatpush1.bf16.msra.mxu0 0
          %2462 = vmatprep.subr.bf16.mxu0 0
          %2463 = vmatpush1.bf16.msra.mxu0 0
          %2464 = vmatprep.subr.bf16.mxu0 0
          %2465 = vmatpush1.bf16.msra.mxu0 0
          %2466 = vmatprep.subr.bf16.mxu0 0
          %2467 = vmatpush1.bf16.msra.mxu0 0
          %2468 = vmatprep.subr.bf16.mxu0 0
          %2469 = vmatpush1.bf16.msra.mxu0 0
          %2470 = vmatprep.subr.bf16.mxu0 0
          %2471 = vmatpush1.bf16.msra.mxu0 0
          %2472 = vmatprep.subr.bf16.mxu0 0
          %2473 = vmatpush1.bf16.msra.mxu0 0
          %2474 = vmatprep.subr.bf16.mxu0 0
          %2475 = vmatpush1.bf16.msra.mxu0 0
          %2476 = vmatprep.subr.bf16.mxu0 0
          %2477 = vmatpush1.bf16.msra.mxu0 0
          %2478 = vmatprep.subr.bf16.mxu0 0
          %2479 = vmatpush1.bf16.msra.mxu0 0
          %2480 = vmatprep.subr.bf16.mxu0 0
          %2481 = vmatpush1.bf16.msra.mxu0 0
          %2482 = vmatprep.subr.bf16.mxu0 0
          %2483 = vmatpush1.bf16.msra.mxu0 0
          %2484 = vmatprep.mubr.bf16.mxu0 0
          %2485 = vmatmul.mubr.bf16.gmra.mrb[0].mxu0 %v1767
          %v2486 = vpop.f32.mrb[0].mxu0
          %v2487 = vadd.f32 %v1764, %v2486
          %v2488 = vpop.f32.mrb[0].mxu0
          %v2489 = vpop.f32.mrb[0].mxu0
          %v2490 = vpop.f32.mrb[0].mxu0
          %2491 = vdwg.mxu0
          %2492 = vst [vmem:[%s357 + $0x5] sm:$0x1] %v2487
          %v2493 = vld [vmem:[#allocation2 + $0x30] sm:$0xff]
          %v2494 = vmul.f32 %v2493, %v1647
          %v2495 = vpack.c.bf16 %v2494, %v2494
          %v2497 = vsel %vm391, %v2495, 0
          %2499 = vmatprep.subr.bf16.mxu0 0
          %2500 = vmatpush1.bf16.msra.mxu0 %v2497
          %2501 = vmatprep.subr.bf16.mxu0 0
          %2502 = vmatpush1.bf16.msra.mxu0 0
          %2503 = vmatprep.subr.bf16.mxu0 0
          %2504 = vmatpush1.bf16.msra.mxu0 0
          %2505 = vmatprep.subr.bf16.mxu0 0
          %2506 = vmatpush1.bf16.msra.mxu0 0
          %2507 = vmatprep.subr.bf16.mxu0 0
          %2508 = vmatpush1.bf16.msra.mxu0 0
          %2509 = vmatprep.subr.bf16.mxu0 0
          %2510 = vmatpush1.bf16.msra.mxu0 0
          %2511 = vmatprep.subr.bf16.mxu0 0
          %2512 = vmatpush1.bf16.msra.mxu0 0
          %2513 = vmatprep.subr.bf16.mxu0 0
          %2514 = vmatpush1.bf16.msra.mxu0 0
          %2515 = vmatprep.subr.bf16.mxu0 0
          %2516 = vmatpush1.bf16.msra.mxu0 0
          %2517 = vmatprep.subr.bf16.mxu0 0
          %2518 = vmatpush1.bf16.msra.mxu0 0
          %2519 = vmatprep.subr.bf16.mxu0 0
          %2520 = vmatpush1.bf16.msra.mxu0 0
          %2521 = vmatprep.subr.bf16.mxu0 0
          %2522 = vmatpush1.bf16.msra.mxu0 0
          %2523 = vmatprep.subr.bf16.mxu0 0
          %2524 = vmatpush1.bf16.msra.mxu0 0
          %2525 = vmatprep.subr.bf16.mxu0 0
          %2526 = vmatpush1.bf16.msra.mxu0 0
          %2527 = vmatprep.subr.bf16.mxu0 0
          %2528 = vmatpush1.bf16.msra.mxu0 0
          %2529 = vmatprep.subr.bf16.mxu0 0
          %2530 = vmatpush1.bf16.msra.mxu0 0
          %2531 = vmatprep.mubr.bf16.mxu0 0
          %2532 = vmatmul.mubr.bf16.gmra.mrb[0].mxu0 %v1662
          %v2533 = vpop.f32.mrb[0].mxu0
          %v2534 = vadd.f32 %v1654, %v2533
          %v2535 = vpop.f32.mrb[0].mxu0
          %v2536 = vpop.f32.mrb[0].mxu0
          %v2537 = vadd.f32 %v1659, %v2536
          %v2538 = vpop.f32.mrb[0].mxu0
          %2539 = vdwg.mxu0
          %v2540 = vmax.f32 %v2534, 0.0
          %v2541 = vmax.f32 %v2537, 0.0
          %v2542 = vpack.c.bf16 %v2541, %v2540
          %2543 = vmatprep.subr.bf16.mxu0 0
          %2544 = vmatpush1.bf16.msra.mxu0 %v2542
          %2545 = vmatprep.subr.bf16.mxu0 0
          %2546 = vmatpush1.bf16.msra.mxu0 0
          %2547 = vmatprep.subr.bf16.mxu0 0
          %2548 = vmatpush1.bf16.msra.mxu0 0
          %2549 = vmatprep.subr.bf16.mxu0 0
          %2550 = vmatpush1.bf16.msra.mxu0 0
          %2551 = vmatprep.subr.bf16.mxu0 0
          %2552 = vmatpush1.bf16.msra.mxu0 0
          %2553 = vmatprep.subr.bf16.mxu0 0
          %2554 = vmatpush1.bf16.msra.mxu0 0
          %2555 = vmatprep.subr.bf16.mxu0 0
          %2556 = vmatpush1.bf16.msra.mxu0 0
          %2557 = vmatprep.subr.bf16.mxu0 0
          %2558 = vmatpush1.bf16.msra.mxu0 0
          %2559 = vmatprep.subr.bf16.mxu0 0
          %2560 = vmatpush1.bf16.msra.mxu0 0
          %2561 = vmatprep.subr.bf16.mxu0 0
          %2562 = vmatpush1.bf16.msra.mxu0 0
          %2563 = vmatprep.subr.bf16.mxu0 0
          %2564 = vmatpush1.bf16.msra.mxu0 0
          %2565 = vmatprep.subr.bf16.mxu0 0
          %2566 = vmatpush1.bf16.msra.mxu0 0
          %2567 = vmatprep.subr.bf16.mxu0 0
          %2568 = vmatpush1.bf16.msra.mxu0 0
          %2569 = vmatprep.subr.bf16.mxu0 0
          %2570 = vmatpush1.bf16.msra.mxu0 0
          %2571 = vmatprep.subr.bf16.mxu0 0
          %2572 = vmatpush1.bf16.msra.mxu0 0
          %2573 = vmatprep.subr.bf16.mxu0 0
          %2574 = vmatpush1.bf16.msra.mxu0 0
          %2575 = vmatprep.mubr.bf16.mxu0 0
          %2576 = vmatmul.mubr.bf16.gmra.mrb[0].mxu0 %v1717
          %v2577 = vpop.f32.mrb[0].mxu0
          %v2578 = vadd.f32 %v1714, %v2577
          %v2579 = vpop.f32.mrb[0].mxu0
          %v2580 = vpop.f32.mrb[0].mxu0
          %v2581 = vpop.f32.mrb[0].mxu0
          %2582 = vdwg.mxu0
          %v2583 = vmax.f32 %v2578, 0.0
          %v2584 = vpack.c.bf16 %v2583, %v2583
          %v2586 = vsel %vm391, %v2584, 0
          %2588 = vmatprep.subr.bf16.mxu0 0
          %2589 = vmatpush1.bf16.msra.mxu0 %v2586
          %2590 = vmatprep.subr.bf16.mxu0 0
          %2591 = vmatpush1.bf16.msra.mxu0 0
          %2592 = vmatprep.subr.bf16.mxu0 0
          %2593 = vmatpush1.bf16.msra.mxu0 0
          %2594 = vmatprep.subr.bf16.mxu0 0
          %2595 = vmatpush1.bf16.msra.mxu0 0
          %2596 = vmatprep.subr.bf16.mxu0 0
          %2597 = vmatpush1.bf16.msra.mxu0 0
          %2598 = vmatprep.subr.bf16.mxu0 0
          %2599 = vmatpush1.bf16.msra.mxu0 0
          %2600 = vmatprep.subr.bf16.mxu0 0
          %2601 = vmatpush1.bf16.msra.mxu0 0
          %2602 = vmatprep.subr.bf16.mxu0 0
          %2603 = vmatpush1.bf16.msra.mxu0 0
          %2604 = vmatprep.subr.bf16.mxu0 0
          %2605 = vmatpush1.bf16.msra.mxu0 0
          %2606 = vmatprep.subr.bf16.mxu0 0
          %2607 = vmatpush1.bf16.msra.mxu0 0
          %2608 = vmatprep.subr.bf16.mxu0 0
          %2609 = vmatpush1.bf16.msra.mxu0 0
          %2610 = vmatprep.subr.bf16.mxu0 0
          %2611 = vmatpush1.bf16.msra.mxu0 0
          %2612 = vmatprep.subr.bf16.mxu0 0
          %2613 = vmatpush1.bf16.msra.mxu0 0
          %2614 = vmatprep.subr.bf16.mxu0 0
          %2615 = vmatpush1.bf16.msra.mxu0 0
          %2616 = vmatprep.subr.bf16.mxu0 0
          %2617 = vmatpush1.bf16.msra.mxu0 0
          %2618 = vmatprep.subr.bf16.mxu0 0
          %2619 = vmatpush1.bf16.msra.mxu0 0
          %2620 = vmatprep.mubr.bf16.mxu0 0
          %2621 = vmatmul.mubr.bf16.gmra.mrb[0].mxu0 %v1767
          %v2622 = vpop.f32.mrb[0].mxu0
          %v2623 = vadd.f32 %v1764, %v2622
          %v2624 = vpop.f32.mrb[0].mxu0
          %v2625 = vpop.f32.mrb[0].mxu0
          %v2626 = vpop.f32.mrb[0].mxu0
          %2627 = vdwg.mxu0
          %2628 = vst [vmem:[%s357 + $0x6] sm:$0x1] %v2623
          %v2629 = vld [vmem:[#allocation2 + $0x38] sm:$0xff]
          %v2630 = vmul.f32 %v2629, %v1647
          %v2631 = vpack.c.bf16 %v2630, %v2630
          %v2633 = vsel %vm391, %v2631, 0
          %2635 = vmatprep.subr.bf16.mxu0 0
          %2636 = vmatpush1.bf16.msra.mxu0 %v2633
          %2637 = vmatprep.subr.bf16.mxu0 0
          %2638 = vmatpush1.bf16.msra.mxu0 0
          %2639 = vmatprep.subr.bf16.mxu0 0
          %2640 = vmatpush1.bf16.msra.mxu0 0
          %2641 = vmatprep.subr.bf16.mxu0 0
          %2642 = vmatpush1.bf16.msra.mxu0 0
          %2643 = vmatprep.subr.bf16.mxu0 0
          %2644 = vmatpush1.bf16.msra.mxu0 0
          %2645 = vmatprep.subr.bf16.mxu0 0
          %2646 = vmatpush1.bf16.msra.mxu0 0
          %2647 = vmatprep.subr.bf16.mxu0 0
          %2648 = vmatpush1.bf16.msra.mxu0 0
          %2649 = vmatprep.subr.bf16.mxu0 0
          %2650 = vmatpush1.bf16.msra.mxu0 0
          %2651 = vmatprep.subr.bf16.mxu0 0
          %2652 = vmatpush1.bf16.msra.mxu0 0
          %2653 = vmatprep.subr.bf16.mxu0 0
          %2654 = vmatpush1.bf16.msra.mxu0 0
          %2655 = vmatprep.subr.bf16.mxu0 0
          %2656 = vmatpush1.bf16.msra.mxu0 0
          %2657 = vmatprep.subr.bf16.mxu0 0
          %2658 = vmatpush1.bf16.msra.mxu0 0
          %2659 = vmatprep.subr.bf16.mxu0 0
          %2660 = vmatpush1.bf16.msra.mxu0 0
          %2661 = vmatprep.subr.bf16.mxu0 0
          %2662 = vmatpush1.bf16.msra.mxu0 0
          %2663 = vmatprep.subr.bf16.mxu0 0
          %2664 = vmatpush1.bf16.msra.mxu0 0
          %2665 = vmatprep.subr.bf16.mxu0 0
          %2666 = vmatpush1.bf16.msra.mxu0 0
          %2667 = vmatprep.mubr.bf16.mxu0 0
          %2668 = vmatmul.mubr.bf16.gmra.mrb[0].mxu0 %v1662
          %v2669 = vpop.f32.mrb[0].mxu0
          %v2670 = vadd.f32 %v1654, %v2669
          %v2671 = vpop.f32.mrb[0].mxu0
          %v2672 = vpop.f32.mrb[0].mxu0
          %v2673 = vadd.f32 %v1659, %v2672
          %v2674 = vpop.f32.mrb[0].mxu0
          %2675 = vdwg.mxu0
          %v2676 = vmax.f32 %v2670, 0.0
          %v2677 = vmax.f32 %v2673, 0.0
          %v2678 = vpack.c.bf16 %v2677, %v2676
          %2679 = vmatprep.subr.bf16.mxu0 0
          %2680 = vmatpush1.bf16.msra.mxu0 %v2678
          %2681 = vmatprep.subr.bf16.mxu0 0
          %2682 = vmatpush1.bf16.msra.mxu0 0
          %2683 = vmatprep.subr.bf16.mxu0 0
          %2684 = vmatpush1.bf16.msra.mxu0 0
          %2685 = vmatprep.subr.bf16.mxu0 0
          %2686 = vmatpush1.bf16.msra.mxu0 0
          %2687 = vmatprep.subr.bf16.mxu0 0
          %2688 = vmatpush1.bf16.msra.mxu0 0
          %2689 = vmatprep.subr.bf16.mxu0 0
          %2690 = vmatpush1.bf16.msra.mxu0 0
          %2691 = vmatprep.subr.bf16.mxu0 0
          %2692 = vmatpush1.bf16.msra.mxu0 0
          %2693 = vmatprep.subr.bf16.mxu0 0
          %2694 = vmatpush1.bf16.msra.mxu0 0
          %2695 = vmatprep.subr.bf16.mxu0 0
          %2696 = vmatpush1.bf16.msra.mxu0 0
          %2697 = vmatprep.subr.bf16.mxu0 0
          %2698 = vmatpush1.bf16.msra.mxu0 0
          %2699 = vmatprep.subr.bf16.mxu0 0
          %2700 = vmatpush1.bf16.msra.mxu0 0
          %2701 = vmatprep.subr.bf16.mxu0 0
          %2702 = vmatpush1.bf16.msra.mxu0 0
          %2703 = vmatprep.subr.bf16.mxu0 0
          %2704 = vmatpush1.bf16.msra.mxu0 0
          %2705 = vmatprep.subr.bf16.mxu0 0
          %2706 = vmatpush1.bf16.msra.mxu0 0
          %2707 = vmatprep.subr.bf16.mxu0 0
          %2708 = vmatpush1.bf16.msra.mxu0 0
          %2709 = vmatprep.subr.bf16.mxu0 0
          %2710 = vmatpush1.bf16.msra.mxu0 0
          %2711 = vmatprep.mubr.bf16.mxu0 0
          %2712 = vmatmul.mubr.bf16.gmra.mrb[0].mxu0 %v1717
          %v2713 = vpop.f32.mrb[0].mxu0
          %v2714 = vadd.f32 %v1714, %v2713
          %v2715 = vpop.f32.mrb[0].mxu0
          %v2716 = vpop.f32.mrb[0].mxu0
          %v2717 = vpop.f32.mrb[0].mxu0
          %2718 = vdwg.mxu0
          %v2719 = vmax.f32 %v2714, 0.0
          %v2720 = vpack.c.bf16 %v2719, %v2719
          %v2722 = vsel %vm391, %v2720, 0
          %2724 = vmatprep.subr.bf16.mxu0 0
          %2725 = vmatpush1.bf16.msra.mxu0 %v2722
          %2726 = vmatprep.subr.bf16.mxu0 0
          %2727 = vmatpush1.bf16.msra.mxu0 0
          %2728 = vmatprep.subr.bf16.mxu0 0
          %2729 = vmatpush1.bf16.msra.mxu0 0
          %2730 = vmatprep.subr.bf16.mxu0 0
          %2731 = vmatpush1.bf16.msra.mxu0 0
          %2732 = vmatprep.subr.bf16.mxu0 0
          %2733 = vmatpush1.bf16.msra.mxu0 0
          %2734 = vmatprep.subr.bf16.mxu0 0
          %2735 = vmatpush1.bf16.msra.mxu0 0
          %2736 = vmatprep.subr.bf16.mxu0 0
          %2737 = vmatpush1.bf16.msra.mxu0 0
          %2738 = vmatprep.subr.bf16.mxu0 0
          %2739 = vmatpush1.bf16.msra.mxu0 0
          %2740 = vmatprep.subr.bf16.mxu0 0
          %2741 = vmatpush1.bf16.msra.mxu0 0
          %2742 = vmatprep.subr.bf16.mxu0 0
          %2743 = vmatpush1.bf16.msra.mxu0 0
          %2744 = vmatprep.subr.bf16.mxu0 0
          %2745 = vmatpush1.bf16.msra.mxu0 0
          %2746 = vmatprep.subr.bf16.mxu0 0
          %2747 = vmatpush1.bf16.msra.mxu0 0
          %2748 = vmatprep.subr.bf16.mxu0 0
          %2749 = vmatpush1.bf16.msra.mxu0 0
          %2750 = vmatprep.subr.bf16.mxu0 0
          %2751 = vmatpush1.bf16.msra.mxu0 0
          %2752 = vmatprep.subr.bf16.mxu0 0
          %2753 = vmatpush1.bf16.msra.mxu0 0
          %2754 = vmatprep.subr.bf16.mxu0 0
          %2755 = vmatpush1.bf16.msra.mxu0 0
          %2756 = vmatprep.mubr.bf16.mxu0 0
          %2757 = vmatmul.mubr.bf16.gmra.mrb[0].mxu0 %v1767
          %v2758 = vpop.f32.mrb[0].mxu0
          %v2759 = vadd.f32 %v1764, %v2758
          %v2760 = vpop.f32.mrb[0].mxu0
          %v2761 = vpop.f32.mrb[0].mxu0
          %v2762 = vpop.f32.mrb[0].mxu0
          %2763 = vdwg.mxu0
          %2764 = vst [vmem:[%s357 + $0x7] sm:$0x1] %v2759
        $region60: #{evaluation_forward.2} parent=35 // pred_fallthru
          _
        %s2765 = sand.u32 %s161, 1
        %s2766 = scalar_lea.sflag [#allocation6], %s2765
        %s2767 = sand.u32 %s161, 1
        %s2768 = scalar_lea.vmem [#allocation12], %s2767
        %s2769 = sand.u32 %s189, 1
        %s2770 = scalar_lea.sflag [#allocation14], %s2769
        %s2771 = sand.u32 %s189, 1
        %s2772 = smul.addr %s2771, 8
        %s2773 = scalar_lea.vmem [#allocation13], %s2772
        // Predicated region
        $region61: #{evaluation_forward.2} parent=35 // pred_check
          %p2774 = pneg %p171
        $region62: #{evaluation_forward.2} parent=35 // pred_check_branch
          %2776 = sbr.rel (%p2774) target = $region64
        $region63: #{evaluation_forward.2} parent=35 // pred_region
          %s2778 = ssub.s32 16, 16
          %2779 = vsyncadd %s2766, %s2778
          %s2780 = smul.addr %s37, 2
          %s2781 = sadd.s32 %s35, %s2780
          %s2782 = smul.addr %s36, 4
          %s2783 = sadd.s32 %s2781, %s2782
          %s2784 = smul.addr %s2783, 16
          %s2785 = scalar_lea.hbm %s4, %s2784
          %s2787 = sshll.u32 %s2768, 4
          %s2788 = int_to_ptr.vmem [resolvable:$true] %s2787
          %2790 = dma.vmem_to_hbm [thread:$0]  %s2788, 16, %s2785, %s2766
        $region64: #{evaluation_forward.2} parent=35 // pred_fallthru
          _
        // Predicated region
        $region65: #{evaluation_forward.2} parent=35 // pred_check
          %p2791 = pneg %p199
        $region66: #{evaluation_forward.2} parent=35 // pred_check_branch
          %2793 = sbr.rel (%p2791) target = $region68
        $region67: #{evaluation_forward.2} parent=35 // pred_region
          %s2795 = ssub.s32 128, 128
          %2796 = vsyncadd %s2770, %s2795
          %s2797 = smul.addr %s36, 2
          %s2798 = sadd.s32 %s35, %s2797
          %s2799 = smul.addr %s2798, 128
          %s2800 = scalar_lea.hbm %s5, %s2799
          %s2802 = sshll.u32 %s2773, 4
          %s2803 = int_to_ptr.vmem [resolvable:$true] %s2802
          %2805 = dma.vmem_to_hbm [thread:$0]  %s2803, 128, %s2800, %s2770
        $region68: #{evaluation_forward.2} parent=35 // pred_fallthru
          _
      $region36: #{evaluation_forward.2} parent=5 // pred_fallthru
        _
      %p2806 = scmp.le.s32.totalorder 2, %s25
      // Predicated region
      $region69: #{evaluation_forward.2} parent=5 // pred_check
        %p2807 = pneg %p2806
      $region70: #{evaluation_forward.2} parent=5 // pred_check_branch
        %2809 = sbr.rel (%p2807) target = $region72
      $region71: #{evaluation_forward.2} parent=5 // pred_region
        %s2810 = ssub.s32 %s25, 2
        // Predicated region
        $region73: #{evaluation_forward.2} parent=71 // pred_check
          %p2811 = pneg %p177
        $region74: #{evaluation_forward.2} parent=71 // pred_check_branch
          %2813 = sbr.rel (%p2811) target = $region76
        $region75: #{evaluation_forward.2} parent=71 // pred_region
          %s2814 = sand.u32 %s162, 1
          %s2815 = scalar_lea.sflag [#allocation6], %s2814
          %s2816 = sand.u32 %s162, 1
          %s2817 = scalar_lea.vmem [#allocation12], %s2816
          %2818 = dma.done %s2815, 16
        $region76: #{evaluation_forward.2} parent=71 // pred_fallthru
          _
        // Predicated region
        $region77: #{evaluation_forward.2} parent=71 // pred_check
          %p2819 = pneg %p205
        $region78: #{evaluation_forward.2} parent=71 // pred_check_branch
          %2821 = sbr.rel (%p2819) target = $region80
        $region79: #{evaluation_forward.2} parent=71 // pred_region
          %s2822 = sand.u32 %s190, 1
          %s2823 = scalar_lea.sflag [#allocation14], %s2822
          %s2824 = sand.u32 %s190, 1
          %s2825 = smul.addr %s2824, 8
          %s2826 = scalar_lea.vmem [#allocation13], %s2825
          %2827 = dma.done %s2823, 128
        $region80: #{evaluation_forward.2} parent=71 // pred_fallthru
          _
      $region72: #{evaluation_forward.2} parent=5 // pred_fallthru
        _
    $region6: #{evaluation_forward.2} parent=1 // loop_footer
      %s29 = sadd.s32 1, %s25
    $region7: #{evaluation_forward.2} parent=1 // loop_footer_branch
      %24 = sbr.rel target = $region3
    $region8: #{evaluation_forward.2} parent=1 // loop_exit
      _
    %2828 = vsyncpa [#allocation5], 1
    %s2829 = scalar_lea.sflag [#allocation5], 1
    %2830 = vsyncpa %s2829, 1
    %2831 = vsyncpa [#allocation8], 1
    %s2832 = scalar_lea.sflag [#allocation8], 1
    %2833 = vsyncpa %s2832, 1
    %2834 = vsyncpa [#allocation11], 1
    %2835 = vsyncpa [#allocation6], 1
    %s2836 = scalar_lea.sflag [#allocation6], 1
    %2837 = vsyncpa %s2836, 1
    %2838 = vsyncpa [#allocation14], 1
    %s2839 = scalar_lea.sflag [#allocation14], 1
    %2840 = vsyncpa %s2839, 1

// kernel: evaluation_forward.3
$region0: #{evaluation_forward.3}
  #allocation0 [shape = 'u32[]', space=smem, size = 0x4, offset = 0x4, fixed_abs, tag = 'smem constant byte address 0x4 - core index']
  #allocation1 [shape = 'u32[144,128]{1,0:T(1,128)}', space=vmem, size = 0x12000, scoped, tag = 'internal scratch']
  %s0 = inlined_call_operand.hbm [shape: bf16[1,9,8,256], index: 0, kind: input, shape index: {}]
  %s1 = inlined_call_operand.hbm [shape: bf16[1,9,8,256], index: 1, kind: input, shape index: {}]
  %s2 = inlined_call_operand.hbm [shape: f32[1,8,256], index: 2, kind: input, shape index: {}]
  %s3 = inlined_call_operand.hbm [shape: f32[1,8,256], index: 3, kind: output, shape index: {0}]
  %s4 = inlined_call_operand.hbm [shape: f32[1,1,256], index: 4, kind: output, shape index: {1}]
  %5 = xla_tuple %s3, %s4
  %s6 = sld [smem:[#allocation0]]
  $region65: #{evaluation_forward.3} parent=0
    _
  %s8 = ssub.s32 1, %s6
  %s9 = scalar_select 0, %s8, %s6
  $region1: #{evaluation_forward.3} parent=0
    #allocation2 [shape = 'u8[36864]{0}', space=vmem, size = 0x9000, scoped, tag = 'input window, operand 0']
    #allocation3 [shape = 's32[2]{0}', space=sflag, size = 0x8, scoped, tag = 'scoped memory for evaluation_forward.3']
    #allocation4 [shape = 's32[2]{0}', space=sflag, size = 0x8, scoped, tag = 'scoped memory for evaluation_forward.3']
    #allocation5 [shape = 'u8[36864]{0}', space=vmem, size = 0x9000, scoped, tag = 'input window, operand 1']
    #allocation6 [shape = 's32[2]{0}', space=sflag, size = 0x8, scoped, tag = 'scoped memory for evaluation_forward.3']
    #allocation7 [shape = 'u8[8192]{0}', space=vmem, size = 0x2000, scoped, tag = 'input window, operand 2']
    #allocation8 [shape = 'u8[8192]{0}', space=vmem, size = 0x2000, scoped, tag = 'output window, operand 0']
    #allocation9 [shape = 'u8[1024]{0}', space=vmem, size = 0x400, scoped, tag = 'output window, operand 1']
    #allocation10 [shape = 's32[2]{0}', space=sflag, size = 0x8, scoped, tag = 'scoped memory for evaluation_forward.3']
    %10 = vsyncpa [#allocation3], 0
    %s11 = scalar_lea.sflag [#allocation3], 1
    %12 = vsyncpa %s11, 0
    %13 = vsyncpa [#allocation6], 0
    %s14 = scalar_lea.sflag [#allocation6], 1
    %15 = vsyncpa %s14, 0
    %16 = vsyncpa [#allocation4], 0
    %s17 = scalar_lea.sflag [#allocation4], 1
    %18 = vsyncpa %s17, 0
    %19 = vsyncpa [#allocation10], 0
    %s20 = scalar_lea.sflag [#allocation10], 1
    %21 = vsyncpa %s20, 0
    loop: start=0, step=1, limit=4
    $region2: #{evaluation_forward.3} parent=1 // loop_pre_header
      _
    $region3: #{evaluation_forward.3} parent=1 // loop_header
      %s23 = sphi 0, %s27
      %p24 = scmp.ge.s32.totalorder %s23, 4
      %s30 = sphi 0, %s42
      %s31 = sphi 0, %s38
      %s32 = sphi 0, %s30
      %s33 = sphi 0, %s31
      %s34 = sphi 0, %s32
      %s35 = sphi 0, %s33
      %s47 = sphi 0, %s49
      %s50 = sphi 0, %s47
      %s51 = sphi 0, %s50
      %s67 = sphi 0, %s51
      %s75 = sphi 0, %s77
      %s78 = sphi 0, %s75
      %s79 = sphi 0, %s78
      %s95 = sphi 0, %s79
      %s103 = sphi 0, %s105
      %s106 = sphi 0, %s103
      %s107 = sphi 0, %s106
      %s123 = sphi 0, %s107
      %s131 = sphi 0, %s133
      %s134 = sphi 0, %s131
      %s135 = sphi 0, %s134
      %s151 = sphi 0, %s135
      %s159 = sphi 0, %s161
      %s162 = sphi 0, %s159
      %s163 = sphi 0, %s162
      %s179 = sphi 0, %s163
    $region4: #{evaluation_forward.3} parent=1 // loop_header_branch
      %26 = sbr.rel (%p24) target = $region8
    $region5: #{evaluation_forward.3} parent=1 // loop_body
      %s28 = ssub.s32 %s23, 1
      %s29 = ssub.s32 %s23, 2
      %s36 = sadd.s32 1, %s31
      %p37 = scmp.ge.s32.totalorder %s36, 2
      %s38 = scalar_select %p37, 0, %s36
      %s39 = sadd.s32 1, %s30
      %s40 = scalar_select %p37, %s39, %s30
      %p41 = scmp.ge.s32.totalorder %s40, 1
      %s42 = scalar_select %p41, 0, %s40
      %s43 = ssub.s32 %s30, %s42
      %s44 = ssub.s32 %s31, %s38
      %s45 = sor.u32 %s43, %s44
      %p46 = scmp.eq.s32.totalorder %s45, 0
      %s48 = sadd.s32 %s47, 1
      %s49 = scalar_select %p46, %s47, %s48
      %p52 = pneg %p46
      %p53 = scmp.eq.s32.totalorder %s23, 1
      %p54 = por %p52, %p53
      %p55 = scmp.ne.s32.totalorder %s47, %s50
      %p56 = scmp.eq.s32.totalorder %s23, 0
      %p57 = por %p55, %p56
      %p58 = scmp.ne.s32.totalorder %s47, %s50
      %p59 = scmp.eq.s32.totalorder %s28, 1
      %p60 = por %p58, %p59
      %p61 = scmp.ne.s32.totalorder %s50, %s51
      %p62 = scmp.eq.s32.totalorder %s28, 0
      %p63 = por %p61, %p62
      %p64 = scmp.ne.s32.totalorder %s50, %s51
      %p65 = scmp.eq.s32.totalorder %s29, 1
      %p66 = por %p64, %p65
      %p68 = scmp.ne.s32.totalorder %s51, %s67
      %p69 = scmp.eq.s32.totalorder %s29, 0
      %p70 = por %p68, %p69
      %s71 = ssub.s32 %s30, %s42
      %s72 = ssub.s32 %s31, %s38
      %s73 = sor.u32 %s71, %s72
      %p74 = scmp.eq.s32.totalorder %s73, 0
      %s76 = sadd.s32 %s75, 1
      %s77 = scalar_select %p74, %s75, %s76
      %p80 = pneg %p74
      %p81 = scmp.eq.s32.totalorder %s23, 1
      %p82 = por %p80, %p81
      %p83 = scmp.ne.s32.totalorder %s75, %s78
      %p84 = scmp.eq.s32.totalorder %s23, 0
      %p85 = por %p83, %p84
      %p86 = scmp.ne.s32.totalorder %s75, %s78
      %p87 = scmp.eq.s32.totalorder %s28, 1
      %p88 = por %p86, %p87
      %p89 = scmp.ne.s32.totalorder %s78, %s79
      %p90 = scmp.eq.s32.totalorder %s28, 0
      %p91 = por %p89, %p90
      %p92 = scmp.ne.s32.totalorder %s78, %s79
      %p93 = scmp.eq.s32.totalorder %s29, 1
      %p94 = por %p92, %p93
      %p96 = scmp.ne.s32.totalorder %s79, %s95
      %p97 = scmp.eq.s32.totalorder %s29, 0
      %p98 = por %p96, %p97
      %s99 = ssub.s32 %s30, %s42
      %s100 = ssub.s32 %s31, %s38
      %s101 = sor.u32 %s99, %s100
      %p102 = scmp.eq.s32.totalorder %s101, 0
      %s104 = sadd.s32 %s103, 1
      %s105 = scalar_select %p102, %s103, %s104
      %p108 = pneg %p102
      %p109 = scmp.eq.s32.totalorder %s23, 1
      %p110 = por %p108, %p109
      %p111 = scmp.ne.s32.totalorder %s103, %s106
      %p112 = scmp.eq.s32.totalorder %s23, 0
      %p113 = por %p111, %p112
      %p114 = scmp.ne.s32.totalorder %s103, %s106
      %p115 = scmp.eq.s32.totalorder %s28, 1
      %p116 = por %p114, %p115
      %p117 = scmp.ne.s32.totalorder %s106, %s107
      %p118 = scmp.eq.s32.totalorder %s28, 0
      %p119 = por %p117, %p118
      %p120 = scmp.ne.s32.totalorder %s106, %s107
      %p121 = scmp.eq.s32.totalorder %s29, 1
      %p122 = por %p120, %p121
      %p124 = scmp.ne.s32.totalorder %s107, %s123
      %p125 = scmp.eq.s32.totalorder %s29, 0
      %p126 = por %p124, %p125
      %s127 = ssub.s32 %s30, %s42
      %s128 = ssub.s32 %s31, %s38
      %s129 = sor.u32 %s127, %s128
      %p130 = scmp.eq.s32.totalorder %s129, 0
      %s132 = sadd.s32 %s131, 1
      %s133 = scalar_select %p130, %s131, %s132
      %p136 = pneg %p130
      %p137 = scmp.eq.s32.totalorder %s23, 1
      %p138 = por %p136, %p137
      %p139 = scmp.ne.s32.totalorder %s131, %s134
      %p140 = scmp.eq.s32.totalorder %s23, 0
      %p141 = por %p139, %p140
      %p142 = scmp.ne.s32.totalorder %s131, %s134
      %p143 = scmp.eq.s32.totalorder %s28, 1
      %p144 = por %p142, %p143
      %p145 = scmp.ne.s32.totalorder %s134, %s135
      %p146 = scmp.eq.s32.totalorder %s28, 0
      %p147 = por %p145, %p146
      %p148 = scmp.ne.s32.totalorder %s134, %s135
      %p149 = scmp.eq.s32.totalorder %s29, 1
      %p150 = por %p148, %p149
      %p152 = scmp.ne.s32.totalorder %s135, %s151
      %p153 = scmp.eq.s32.totalorder %s29, 0
      %p154 = por %p152, %p153
      %s155 = ssub.s32 %s30, %s42
      %s156 = ssub.s32 %s31, %s38
      %s157 = sor.u32 %s155, %s156
      %p158 = scmp.eq.s32.totalorder %s157, 0
      %s160 = sadd.s32 %s159, 1
      %s161 = scalar_select %p158, %s159, %s160
      %p164 = pneg %p158
      %p165 = scmp.eq.s32.totalorder %s23, 1
      %p166 = por %p164, %p165
      %p167 = scmp.ne.s32.totalorder %s159, %s162
      %p168 = scmp.eq.s32.totalorder %s23, 0
      %p169 = por %p167, %p168
      %p170 = scmp.ne.s32.totalorder %s159, %s162
      %p171 = scmp.eq.s32.totalorder %s28, 1
      %p172 = por %p170, %p171
      %p173 = scmp.ne.s32.totalorder %s162, %s163
      %p174 = scmp.eq.s32.totalorder %s28, 0
      %p175 = por %p173, %p174
      %p176 = scmp.ne.s32.totalorder %s162, %s163
      %p177 = scmp.eq.s32.totalorder %s29, 1
      %p178 = por %p176, %p177
      %p180 = scmp.ne.s32.totalorder %s163, %s179
      %p181 = scmp.eq.s32.totalorder %s29, 0
      %p182 = por %p180, %p181
      %p183 = scmp.le.s32.totalorder 1, %s23
      %p184 = scmp.lt.s32.totalorder %s23, 3
      %p185 = pnand %p183, %p184
      %p186 = pneg %p185
      // Predicated region
      $region9: #{evaluation_forward.3} parent=5 // pred_check
        _
      $region10: #{evaluation_forward.3} parent=5 // pred_check_branch
        %188 = sbr.rel (%p185) target = $region12
      $region11: #{evaluation_forward.3} parent=5 // pred_region
        %s189 = ssub.s32 %s23, 1
      $region12: #{evaluation_forward.3} parent=5 // pred_fallthru
        _
      %p190 = scmp.lt.s32.totalorder %s23, 2
      // Predicated region
      $region13: #{evaluation_forward.3} parent=5 // pred_check
        %p191 = pneg %p190
      $region14: #{evaluation_forward.3} parent=5 // pred_check_branch
        %193 = sbr.rel (%p191) target = $region16
      $region15: #{evaluation_forward.3} parent=5 // pred_region
        // Predicated region
        $region17: #{evaluation_forward.3} parent=15 // pred_check
          %p194 = pneg %p57
        $region18: #{evaluation_forward.3} parent=15 // pred_check_branch
          %196 = sbr.rel (%p194) target = $region20
        $region19: #{evaluation_forward.3} parent=15 // pred_region
          %s197 = sand.u32 %s47, 1
          %s198 = scalar_lea.sflag [#allocation3], %s197
          %s199 = sand.u32 %s47, 1
          %s200 = smul.addr %s199, 36
          %s201 = scalar_lea.vmem [#allocation2], %s200
          %s203 = ssub.s32 576, 576
          %204 = vsyncadd %s198, %s203
          %s205 = smul.addr %s30, 18
          %s206 = sadd.s32 %s31, %s205
          %s207 = smul.addr %s206, 64
          %s208 = scalar_lea.hbm %s0, %s207
          %s209 = sshll.u32 %s201, 4
          %s210 = int_to_ptr.vmem [resolvable:$true] %s209
          %215 = dma.hbm_to_vmem [thread:$0]  %s208, 576, %s210, %s198, 128, 64, 4
        $region20: #{evaluation_forward.3} parent=15 // pred_fallthru
          _
        // Predicated region
        $region21: #{evaluation_forward.3} parent=15 // pred_check
          %p216 = pneg %p85
        $region22: #{evaluation_forward.3} parent=15 // pred_check_branch
          %218 = sbr.rel (%p216) target = $region24
        $region23: #{evaluation_forward.3} parent=15 // pred_region
          %s219 = sand.u32 %s23, 1
          %s220 = scalar_lea.sflag [#allocation6], %s219
          %s221 = sand.u32 %s75, 1
          %s222 = smul.addr %s221, 36
          %s223 = scalar_lea.vmem [#allocation5], %s222
          %s225 = ssub.s32 576, 576
          %226 = vsyncadd %s220, %s225
          %s227 = smul.addr %s30, 18
          %s228 = sadd.s32 %s31, %s227
          %s229 = smul.addr %s228, 64
          %s230 = scalar_lea.hbm %s1, %s229
          %s231 = sshll.u32 %s223, 4
          %s232 = int_to_ptr.vmem [resolvable:$true] %s231
          %237 = dma.hbm_to_vmem [thread:$0]  %s230, 576, %s232, %s220, 128, 64, 4
        $region24: #{evaluation_forward.3} parent=15 // pred_fallthru
          _
        // Predicated region
        $region25: #{evaluation_forward.3} parent=15 // pred_check
          %p238 = pneg %p113
        $region26: #{evaluation_forward.3} parent=15 // pred_check_branch
          %240 = sbr.rel (%p238) target = $region28
        $region27: #{evaluation_forward.3} parent=15 // pred_region
          %s241 = sand.u32 %s23, 1
          %s242 = scalar_lea.sflag [#allocation6], %s241
          %s243 = sand.u32 %s103, 1
          %s244 = smul.addr %s243, 8
          %s245 = scalar_lea.vmem [#allocation7], %s244
          %s247 = ssub.s32 128, 128
          %248 = vsyncadd %s242, %s247
          %s249 = smul.addr %s30, 2
          %s250 = sadd.s32 %s31, %s249
          %s251 = smul.addr %s250, 128
          %s252 = scalar_lea.hbm %s2, %s251
          %s254 = sshll.u32 %s245, 4
          %s255 = int_to_ptr.vmem [resolvable:$true] %s254
          %257 = dma.hbm_to_vmem [thread:$0]  %s252, 128, %s255, %s242
        $region28: #{evaluation_forward.3} parent=15 // pred_fallthru
          _
      $region16: #{evaluation_forward.3} parent=5 // pred_fallthru
        _
      %p258 = scmp.le.s32.totalorder 1, %s23
      %p259 = scmp.lt.s32.totalorder %s23, 3
      %p260 = pnand %p258, %p259
      %p261 = pneg %p260
      // Predicated region
      $region29: #{evaluation_forward.3} parent=5 // pred_check
        _
      $region30: #{evaluation_forward.3} parent=5 // pred_check_branch
        %263 = sbr.rel (%p260) target = $region32
      $region31: #{evaluation_forward.3} parent=5 // pred_region
        %s264 = ssub.s32 %s23, 1
        %s265 = sand.u32 %s50, 1
        %s266 = scalar_lea.sflag [#allocation3], %s265
        %s267 = sand.u32 %s50, 1
        %s268 = smul.addr %s267, 36
        %s269 = scalar_lea.vmem [#allocation2], %s268
        // Predicated region
        $region33: #{evaluation_forward.3} parent=31 // pred_check
          %p270 = pneg %p63
        $region34: #{evaluation_forward.3} parent=31 // pred_check_branch
          %272 = sbr.rel (%p270) target = $region36
        $region35: #{evaluation_forward.3} parent=31 // pred_region
          %273 = dma.done %s266, 576
        $region36: #{evaluation_forward.3} parent=31 // pred_fallthru
          _
        %s274 = sand.u32 %s28, 1
        %s275 = scalar_lea.sflag [#allocation6], %s274
        %s276 = sand.u32 %s78, 1
        %s277 = smul.addr %s276, 36
        %s278 = scalar_lea.vmem [#allocation5], %s277
        // Predicated region
        $region37: #{evaluation_forward.3} parent=31 // pred_check
          %p279 = pneg %p91
        $region38: #{evaluation_forward.3} parent=31 // pred_check_branch
          %281 = sbr.rel (%p279) target = $region40
        $region39: #{evaluation_forward.3} parent=31 // pred_region
          %282 = dma.done %s275, 576
        $region40: #{evaluation_forward.3} parent=31 // pred_fallthru
          _
        %s283 = sand.u32 %s28, 1
        %s284 = scalar_lea.sflag [#allocation6], %s283
        %s285 = sand.u32 %s106, 1
        %s286 = smul.addr %s285, 8
        %s287 = scalar_lea.vmem [#allocation7], %s286
        // Predicated region
        $region41: #{evaluation_forward.3} parent=31 // pred_check
          %p288 = pneg %p119
        $region42: #{evaluation_forward.3} parent=31 // pred_check_branch
          %290 = sbr.rel (%p288) target = $region44
        $region43: #{evaluation_forward.3} parent=31 // pred_region
          %291 = dma.done %s284, 128
        $region44: #{evaluation_forward.3} parent=31 // pred_fallthru
          _
        %s292 = sand.u32 %s50, 1
        %s293 = scalar_lea.sflag [#allocation3], %s292
        %s294 = sand.u32 %s50, 1
        %s295 = smul.addr %s294, 36
        %s296 = scalar_lea.vmem [#allocation2], %s295
        %p297 = pneg %p63
        %p298 = pneg %p60
        %s299 = sand.u32 %s28, 1
        %s300 = scalar_lea.sflag [#allocation6], %s299
        %s301 = sand.u32 %s78, 1
        %s302 = smul.addr %s301, 36
        %s303 = scalar_lea.vmem [#allocation5], %s302
        %p304 = pneg %p91
        %p305 = pneg %p88
        %s306 = sand.u32 %s28, 1
        %s307 = scalar_lea.sflag [#allocation6], %s306
        %s308 = sand.u32 %s106, 1
        %s309 = smul.addr %s308, 8
        %s310 = scalar_lea.vmem [#allocation7], %s309
        %p311 = pneg %p119
        %p312 = pneg %p116
        %p313 = pneg %p147
        %p314 = pneg %p144
        %s315 = sand.u32 %s134, 1
        %s316 = scalar_lea.sflag [#allocation4], %s315
        %s317 = sand.u32 %s134, 1
        %s318 = smul.addr %s317, 8
        %s319 = scalar_lea.vmem [#allocation8], %s318
        %p320 = pneg %p175
        %p321 = pneg %p172
        %s322 = sand.u32 %s162, 1
        %s323 = scalar_lea.sflag [#allocation10], %s322
        %s324 = sand.u32 %s162, 1
        %s325 = scalar_lea.vmem [#allocation9], %s324
        %v326 = vld [vmem:[%s269] sm:$0xf]
        %v327 = vunpack.c.l.bf16 %v326
        %v328 = vld [vmem:[%s278] sm:$0xf]
        %v329 = vunpack.c.l.bf16 %v328
        %v330 = vmul.f32 %v327, %v329
        %s331 = scalar_lea.vmem %s269, 4 [#allocation2]
        %v332 = vld [vmem:[%s331] sm:$0xf]
        %v333 = vunpack.c.l.bf16 %v332
        %s334 = scalar_lea.vmem %s278, 4 [#allocation5]
        %v335 = vld [vmem:[%s334] sm:$0xf]
        %v336 = vunpack.c.l.bf16 %v335
        %v337 = vmul.f32 %v333, %v336
        %v338 = vadd.f32 %v330, %v337
        %s339 = scalar_lea.vmem %s269, 8 [#allocation2]
        %v340 = vld [vmem:[%s339] sm:$0xf]
        %v341 = vunpack.c.l.bf16 %v340
        %s342 = scalar_lea.vmem %s278, 8 [#allocation5]
        %v343 = vld [vmem:[%s342] sm:$0xf]
        %v344 = vunpack.c.l.bf16 %v343
        %v345 = vmul.f32 %v341, %v344
        %v346 = vadd.f32 %v338, %v345
        %s347 = scalar_lea.vmem %s269, 12 [#allocation2]
        %v348 = vld [vmem:[%s347] sm:$0xf]
        %v349 = vunpack.c.l.bf16 %v348
        %s350 = scalar_lea.vmem %s278, 12 [#allocation5]
        %v351 = vld [vmem:[%s350] sm:$0xf]
        %v352 = vunpack.c.l.bf16 %v351
        %v353 = vmul.f32 %v349, %v352
        %v354 = vadd.f32 %v346, %v353
        %s355 = scalar_lea.vmem %s269, 16 [#allocation2]
        %v356 = vld [vmem:[%s355] sm:$0xf]
        %v357 = vunpack.c.l.bf16 %v356
        %s358 = scalar_lea.vmem %s278, 16 [#allocation5]
        %v359 = vld [vmem:[%s358] sm:$0xf]
        %v360 = vunpack.c.l.bf16 %v359
        %v361 = vmul.f32 %v357, %v360
        %v362 = vadd.f32 %v354, %v361
        %s363 = scalar_lea.vmem %s269, 20 [#allocation2]
        %v364 = vld [vmem:[%s363] sm:$0xf]
        %v365 = vunpack.c.l.bf16 %v364
        %s366 = scalar_lea.vmem %s278, 20 [#allocation5]
        %v367 = vld [vmem:[%s366] sm:$0xf]
        %v368 = vunpack.c.l.bf16 %v367
        %v369 = vmul.f32 %v365, %v368
        %v370 = vadd.f32 %v362, %v369
        %s371 = scalar_lea.vmem %s269, 24 [#allocation2]
        %v372 = vld [vmem:[%s371] sm:$0xf]
        %v373 = vunpack.c.l.bf16 %v372
        %s374 = scalar_lea.vmem %s278, 24 [#allocation5]
        %v375 = vld [vmem:[%s374] sm:$0xf]
        %v376 = vunpack.c.l.bf16 %v375
        %v377 = vmul.f32 %v373, %v376
        %v378 = vadd.f32 %v370, %v377
        %s379 = scalar_lea.vmem %s269, 28 [#allocation2]
        %v380 = vld [vmem:[%s379] sm:$0xf]
        %v381 = vunpack.c.l.bf16 %v380
        %s382 = scalar_lea.vmem %s278, 28 [#allocation5]
        %v383 = vld [vmem:[%s382] sm:$0xf]
        %v384 = vunpack.c.l.bf16 %v383
        %v385 = vmul.f32 %v381, %v384
        %v386 = vadd.f32 %v378, %v385
        %s387 = scalar_lea.vmem %s269, 32 [#allocation2]
        %v388 = vld [vmem:[%s387] sm:$0xf]
        %v389 = vunpack.c.l.bf16 %v388
        %s390 = scalar_lea.vmem %s278, 32 [#allocation5]
        %v391 = vld [vmem:[%s390] sm:$0xf]
        %v392 = vunpack.c.l.bf16 %v391
        %v393 = vmul.f32 %v389, %v392
        %v394 = vadd.f32 %v386, %v393
        %v395 = vrot.slane %v394, 4
        %v396 = vmax.f32 %v394, %v395
        %v397 = vrot.slane %v396, 2
        %v398 = vmax.f32 %v396, %v397
        %v399 = vrot.slane %v398, 1
        %v400 = vmax.f32 %v398, %v399
        %v401 = vsub.f32 %v394, %v400
        %v402 = vmul.f32 %v401, 1.442695
        %v403 = vpow.pop %v402
        %v404 = vrot.slane %v403, 4
        %v405 = vadd.f32 %v403, %v404
        %v406 = vrot.slane %v405, 2
        %v407 = vadd.f32 %v405, %v406
        %v408 = vrot.slane %v407, 1
        %v409 = vadd.f32 %v407, %v408
        %v410 = vrcp.pop %v409
        %v411 = vmul.f32 %v403, %v410
        %412 = vst [vmem:[%s319] sm:$0xff] %v411
        %v413 = vld [vmem:[%s287] sm:$0xff]
        %v414 = vmul.f32 %v413, %v411
        %v415 = vrot.slane %v414, 4
        %v416 = vadd.f32 %v414, %v415
        %v417 = vrot.slane %v416, 2
        %v418 = vadd.f32 %v416, %v417
        %v419 = vrot.slane %v418, 1
        %v420 = vadd.f32 %v418, %v419
        %421 = vst [vmem:[%s325] sm:$0x1] %v420
        %s422 = sand.u32 %s134, 1
        %s423 = scalar_lea.sflag [#allocation4], %s422
        %s424 = sand.u32 %s134, 1
        %s425 = smul.addr %s424, 8
        %s426 = scalar_lea.vmem [#allocation8], %s425
        %s427 = sand.u32 %s162, 1
        %s428 = scalar_lea.sflag [#allocation10], %s427
        %s429 = sand.u32 %s162, 1
        %s430 = scalar_lea.vmem [#allocation9], %s429
        // Predicated region
        $region45: #{evaluation_forward.3} parent=31 // pred_check
          %p431 = pneg %p144
        $region46: #{evaluation_forward.3} parent=31 // pred_check_branch
          %433 = sbr.rel (%p431) target = $region48
        $region47: #{evaluation_forward.3} parent=31 // pred_region
          %s435 = ssub.s32 128, 128
          %436 = vsyncadd %s423, %s435
          %s437 = smul.addr %s32, 2
          %s438 = sadd.s32 %s33, %s437
          %s439 = smul.addr %s438, 128
          %s440 = scalar_lea.hbm %s3, %s439
          %s442 = sshll.u32 %s426, 4
          %s443 = int_to_ptr.vmem [resolvable:$true] %s442
          %445 = dma.vmem_to_hbm [thread:$0]  %s443, 128, %s440, %s423
        $region48: #{evaluation_forward.3} parent=31 // pred_fallthru
          _
        // Predicated region
        $region49: #{evaluation_forward.3} parent=31 // pred_check
          %p446 = pneg %p172
        $region50: #{evaluation_forward.3} parent=31 // pred_check_branch
          %448 = sbr.rel (%p446) target = $region52
        $region51: #{evaluation_forward.3} parent=31 // pred_region
          %s450 = ssub.s32 16, 16
          %451 = vsyncadd %s428, %s450
          %s452 = smul.addr %s32, 2
          %s453 = sadd.s32 %s33, %s452
          %s454 = smul.addr %s453, 16
          %s455 = scalar_lea.hbm %s4, %s454
          %s457 = sshll.u32 %s430, 4
          %s458 = int_to_ptr.vmem [resolvable:$true] %s457
          %460 = dma.vmem_to_hbm [thread:$0]  %s458, 16, %s455, %s428
        $region52: #{evaluation_forward.3} parent=31 // pred_fallthru
          _
      $region32: #{evaluation_forward.3} parent=5 // pred_fallthru
        _
      %p461 = scmp.le.s32.totalorder 2, %s23
      // Predicated region
      $region53: #{evaluation_forward.3} parent=5 // pred_check
        %p462 = pneg %p461
      $region54: #{evaluation_forward.3} parent=5 // pred_check_branch
        %464 = sbr.rel (%p462) target = $region56
      $region55: #{evaluation_forward.3} parent=5 // pred_region
        %s465 = ssub.s32 %s23, 2
        // Predicated region
        $region57: #{evaluation_forward.3} parent=55 // pred_check
          %p466 = pneg %p150
        $region58: #{evaluation_forward.3} parent=55 // pred_check_branch
          %468 = sbr.rel (%p466) target = $region60
        $region59: #{evaluation_forward.3} parent=55 // pred_region
          %s469 = sand.u32 %s135, 1
          %s470 = scalar_lea.sflag [#allocation4], %s469
          %s471 = sand.u32 %s135, 1
          %s472 = smul.addr %s471, 8
          %s473 = scalar_lea.vmem [#allocation8], %s472
          %474 = dma.done %s470, 128
        $region60: #{evaluation_forward.3} parent=55 // pred_fallthru
          _
        // Predicated region
        $region61: #{evaluation_forward.3} parent=55 // pred_check
          %p475 = pneg %p178
        $region62: #{evaluation_forward.3} parent=55 // pred_check_branch
          %477 = sbr.rel (%p475) target = $region64
        $region63: #{evaluation_forward.3} parent=55 // pred_region
          %s478 = sand.u32 %s163, 1
          %s479 = scalar_lea.sflag [#allocation10], %s478
          %s480 = sand.u32 %s163, 1
          %s481 = scalar_lea.vmem [#allocation9], %s480
          %482 = dma.done %s479, 16
        $region64: #{evaluation_forward.3} parent=55 // pred_fallthru
          _
      $region56: #{evaluation_forward.3} parent=5 // pred_fallthru
        _
    $region6: #{evaluation_forward.3} parent=1 // loop_footer
      %s27 = sadd.s32 1, %s23
    $region7: #{evaluation_forward.3} parent=1 // loop_footer_branch
      %22 = sbr.rel target = $region3
    $region8: #{evaluation_forward.3} parent=1 // loop_exit
      _
    %483 = vsyncpa [#allocation3], 1
    %s484 = scalar_lea.sflag [#allocation3], 1
    %485 = vsyncpa %s484, 1
    %486 = vsyncpa [#allocation6], 1
    %s487 = scalar_lea.sflag [#allocation6], 1
    %488 = vsyncpa %s487, 1
    %489 = vsyncpa [#allocation4], 1
    %s490 = scalar_lea.sflag [#allocation4], 1
    %491 = vsyncpa %s490, 1
    %492 = vsyncpa [#allocation10], 1
    %s493 = scalar_lea.sflag [#allocation10], 1
    %494 = vsyncpa %s493, 1

</llo_original>
